<compile_context>
chip_gen: v7x
topology: tpu7x:2x2x1
jax: 0.10.0
libtpu: 0.0.40
codegen_flags: <defaults>
</compile_context>

<pallas_src>
import numpy as np

import jax
import jax.numpy as jnp
from jax.experimental import pallas as pl
from jax.experimental.pallas import tpu as pltpu

_NEG_SLOPE = 0.01  # nn.LeakyReLU() default
_BN_EPS = 1e-5


# ---------------------------------------------------------------------------
# Host-side helpers (run once at build time)
# ---------------------------------------------------------------------------
def _interp_matrix(out_size, in_size):
    """(out, in) weights matching F.interpolate(bilinear, align_corners=True)."""
    m = np.zeros((out_size, in_size), np.float64)
    if out_size == 1:
        src = np.zeros((1,), np.float64)
    else:
        src = np.arange(out_size, dtype=np.float64) * (in_size - 1) / (out_size - 1)
    i0 = np.clip(np.floor(src).astype(np.int64), 0, in_size - 1)
    i1 = np.minimum(i0 + 1, in_size - 1)
    f = src - i0
    for o in range(out_size):
        m[o, i0[o]] += 1.0 - f[o]
        m[o, i1[o]] += f[o]
    return m


def _resize_matrix(in_hw, out_hw):
    """(Hin*Win, Hout*Wout): flat_out = flat_in @ M (row-major flattening)."""
    wy = _interp_matrix(out_hw[0], in_hw[0])
    wx = _interp_matrix(out_hw[1], in_hw[1])
    return jnp.asarray(np.kron(wy.T, wx.T), jnp.float32)


def _edge_masks(h, w):
    """(4, H*W) {0,1} masks: [row>=1, row<=h-2, col>=1, col<=w-2]."""
    hw = h * w
    row = np.arange(hw) // w
    col = np.arange(hw) % w
    m = np.zeros((4, hw), np.float32)
    m[0] = (row >= 1)
    m[1] = (row <= h - 2)
    m[2] = (col >= 1)
    m[3] = (col <= w - 2)
    return jnp.asarray(m)


# ---------------------------------------------------------------------------
# In-kernel building blocks
# ---------------------------------------------------------------------------
def _leaky(t):
    return jnp.maximum(t, _NEG_SLOPE * t)


def _roll_lanes(t, shift, hw):
    """Circular roll along the lane (last) axis; jnp.roll semantics."""
    shift = shift % hw
    if shift == 0:
        return t
    if hw % 128 == 0:
        # XLU lane rotation -- the XLU slot is otherwise idle in this kernel.
        return pltpu.roll(t, shift, axis=1)
    # Tiny early blocks (H*W = 16/64): keep the slice+concat lowering.
    return jnp.roll(t, shift, axis=1)


def _depthwise3x3(t, kmat, bias, masks, w):
    """Depthwise 3x3 conv (pad=1), folded-BN bias, LeakyReLU.

    t     : (C, H*W) activation, spatial flattened row-major (W fastest)
    kmat  : (C, 9)  BN-folded weights, tap index = ky*3 + kx
    bias  : (C, 1)  folded BN bias
    masks : (4, H*W) edge masks [row>=1, row<=h-2, col>=1, col<=w-2]
    w     : python int, row stride of the flattened layout
    """
    hw = t.shape[1]
    # dy-outer with per-dx accumulators: at most one shifted tile live at once.
    acc = [None, None, None]
    for dyi, dy in enumerate((-1, 0, 1)):
        if dy == 0:
            ty = t
        else:
            rmask = masks[0:1, :] if dy < 0 else masks[1:2, :]
            ty = _roll_lanes(t, -dy * w, hw) * rmask
        for dxi in range(3):
            tap = dyi * 3 + dxi
            term = ty * kmat[:, tap:tap + 1]
            acc[dxi] = term if acc[dxi] is None else acc[dxi] + term
    out = acc[1]
    out = out + _roll_lanes(acc[0], 1, hw) * masks[2:3, :]    # dx = -1
    out = out + _roll_lanes(acc[2], -1, hw) * masks[3:4, :]   # dx = +1
    return _leaky(out + bias)


def _make_decoder_kernel(block_hw):
    """block_hw: tuple of per-block output (H, W) (static)."""
    nb = len(block_hw)

    def kernel(*refs):
        x_ref = refs[0]
        skip_refs = refs[1:1 + nb]
        wrefs = refs[1 + nb:1 + nb + 6 * nb]
        out_ref = refs[-1]

        feat = x_ref[...]                                    # (C0, H0*W0) f32
        for b in range(nb):
            (m_ref, mask_ref, dwk_ref, dwb_ref,
             pww_ref, pwb_ref) = wrefs[6 * b:6 * b + 6]
            h, w = block_hw[b]

            # 1) bilinear upsample (align_corners=True) as one MXU matmul,
            #    bf16 operands / f32 accumulation.
            feat = jnp.dot(feat.astype(jnp.bfloat16), m_ref[...],
                           preferred_element_type=jnp.float32)

            # 2) channel concat with the skip -> one stacked (Cin, H*W) tile.
            y = jnp.concatenate([feat, skip_refs[b][...]], axis=0)

            # 3) depthwise 3x3 + folded BN + LeakyReLU (f32 VPU path).
            t = _depthwise3x3(y, dwk_ref[...], dwb_ref[...], mask_ref[...], w)

            # 4) pointwise 1x1 + folded BN + LeakyReLU; (Cout, H*W) lane-dense.
            o = jnp.dot(pww_ref[...], t.astype(jnp.bfloat16),
                        preferred_element_type=jnp.float32)
            feat = _leaky(o + pwb_ref[...])

        out_ref[...] = feat                                  # (Cout, H*W)

    return kernel


# ---------------------------------------------------------------------------
# Builder: BN folding, resize matrices, masks + jit'd forward
# ---------------------------------------------------------------------------
def build_decoder(params_list, x_shape, skip_shapes):
    _, c0, hx, wx = x_shape
    nb = len(params_list)
    skip_shapes_used = [skip_shapes[-1 - b] for b in range(nb)]

    weight_arrays = []
    block_hw = []
    in_hw = (hx, wx)
    in_c = c0
    for b, p in enumerate(params_list):
        _, cs, h, w = skip_shapes_used[b]
        cin = p["dw_w"].shape[0]
        assert cin == in_c + cs, (cin, in_c, cs)
        cout = p["pw_w"].shape[0]

        m = _resize_matrix(in_hw, (h, w)).astype(jnp.bfloat16)   # (hwin, hwout)
        masks = _edge_masks(h, w)                                # (4, hw) f32

        # Fold eval-mode BN scales into the conv weights; keep only biases.
        dwk = (p["dw_w"][:, 0].reshape(cin, 9) *
               p["dw_scale"][:, None]).astype(jnp.float32)
        dwb = p["dw_bias"][:, None].astype(jnp.float32)
        pww = (p["pw_w"] * p["pw_scale"][:, None]).astype(jnp.bfloat16)
        pwb = p["pw_bias"][:, None].astype(jnp.float32)

        weight_arrays += [m, masks, dwk, dwb, pww, pwb]
        block_hw.append((h, w))
        in_hw = (h, w)
        in_c = cout

    out_c, (out_h, out_w) = in_c, in_hw
    kernel = _make_decoder_kernel(tuple(block_hw))

    # Grid-invariant constants: whole-array VMEM residents (single buffer).
    const_spec = pl.BlockSpec(memory_space=pltpu.MemorySpace.VMEM)

    def forward(x, skip_buff):
        n = x.shape[0]
        # NCHW -> (N, C, H*W) is free (W already minor-most).
        inputs = [x.reshape(n, c0, hx * wx)]
        in_specs = [pl.BlockSpec((pl.Squeezed(), c0, hx * wx),
                                 lambda i: (i, 0, 0))]
        for b in range(nb):
            s = skip_buff[-1 - b]
            sc, sh, sw = s.shape[1], s.shape[2], s.shape[3]
            s_flat = s.reshape(n, sc, sh * sw)
            inputs.append(s_flat)
            in_specs.append(pl.BlockSpec((pl.Squeezed(), sc, sh * sw),
                                         lambda i: (i, 0, 0)))
        for a in weight_arrays:
            inputs.append(a)
            in_specs.append(const_spec)

        out_flat = pl.pallas_call(
            kernel,
            out_shape=jax.ShapeDtypeStruct((n, out_c, out_h * out_w),
                                           jnp.float32),
            grid=(n,),
            in_specs=in_specs,
            out_specs=pl.BlockSpec((pl.Squeezed(), out_c, out_h * out_w),
                                   lambda i: (i, 0, 0)),
            compiler_params=pltpu.CompilerParams(
                dimension_semantics=("parallel",)),
        )(*inputs)
        return out_flat.reshape(n, out_c, out_h, out_w)

    return jax.jit(forward)


# ---------------------------------------------------------------------------
# Pure-JAX f32 reference (eval-mode BN), for correctness check
# ---------------------------------------------------------------------------
def _bilinear_resize_nchw(x, out_h, out_w):
    _, _, h, w = x.shape

    def coords(out_size, in_size):
        if out_size == 1:
            src = jnp.zeros((out_size,), jnp.float32)
        else:
            src = jnp.arange(out_size, dtype=jnp.float32) * (
                (in_size - 1) / (out_size - 1))
        i0 = jnp.clip(jnp.floor(src).astype(jnp.int32), 0, in_size - 1)
        i1 = jnp.clip(i0 + 1, 0, in_size - 1)
        return i0, i1, src - i0.astype(jnp.float32)

    y0, y1, fy = coords(out_h, h)
    x0, x1, fx = coords(out_w, w)
    r0, r1 = x[:, :, y0, :], x[:, :, y1, :]
    t00, t01 = r0[:, :, :, x0], r0[:, :, :, x1]
    t10, t11 = r1[:, :, :, x0], r1[:, :, :, x1]
    fx_ = fx[None, None, None, :]
    fy_ = fy[None, None, :, None]
    top = t00 * (1 - fx_) + t01 * fx_
    bot = t10 * (1 - fx_) + t11 * fx_
    return top * (1 - fy_) + bot * fy_


def decoder_reference(x, skip_buff, params_list):
    feat = x
    for b, p in enumerate(params_list):
        skip = skip_buff[-1 - b]
        feat = _bilinear_resize_nchw(feat, skip.shape[2], skip.shape[3])
        y = jnp.concatenate([feat, skip], axis=1)
        cin = y.shape[1]
        t = jax.lax.conv_general_dilated(
            y, p["dw_w"], window_strides=(1, 1), padding=((1, 1), (1, 1)),
            dimension_numbers=("NCHW", "OIHW", "NCHW"),
            feature_group_count=cin, precision=jax.lax.Precision.HIGHEST)
        t = t * p["dw_scale"][None, :, None, None] + p["dw_bias"][None, :, None, None]
        t = jnp.where(t > 0, t, _NEG_SLOPE * t)
        o = jnp.einsum("nchw,oc->nohw", t, p["pw_w"],
                       precision=jax.lax.Precision.HIGHEST)
        o = o * p["pw_scale"][None, :, None, None] + p["pw_bias"][None, :, None, None]
        feat = jnp.where(o > 0, o, _NEG_SLOPE * o)
    return feat


# ---------------------------------------------------------------------------
# Deterministic synthetic parameters (not a checkpoint load)
# ---------------------------------------------------------------------------
def init_block_params(key, in_ch, out_ch):
    ks = jax.random.split(key, 10)
    dw_w = 0.1 * jax.random.normal(ks[0], (in_ch, 1, 3, 3), jnp.float32)
    bn1_gamma = 1.0 + 0.1 * jax.random.normal(ks[1], (in_ch,), jnp.float32)
    bn1_beta = 0.1 * jax.random.normal(ks[2], (in_ch,), jnp.float32)
    bn1_mean = 0.05 * jax.random.normal(ks[3], (in_ch,), jnp.float32)
    bn1_var = 1.0 + 0.1 * jnp.abs(jax.random.normal(ks[4], (in_ch,), jnp.float32))
    pw_w = 0.1 * jax.random.normal(ks[5], (out_ch, in_ch), jnp.float32)
    bn2_gamma = 1.0 + 0.1 * jax.random.normal(ks[6], (out_ch,), jnp.float32)
    bn2_beta = 0.1 * jax.random.normal(ks[7], (out_ch,), jnp.float32)
    bn2_mean = 0.05 * jax.random.normal(ks[8], (out_ch,), jnp.float32)
    bn2_var = 1.0 + 0.1 * jnp.abs(jax.random.normal(ks[9], (out_ch,), jnp.float32))
    dw_scale = bn1_gamma / jnp.sqrt(bn1_var + _BN_EPS)
    pw_scale = bn2_gamma / jnp.sqrt(bn2_var + _BN_EPS)
    return dict(dw_w=dw_w, dw_scale=dw_scale, dw_bias=bn1_beta - bn1_mean * dw_scale,
                pw_w=pw_w, pw_scale=pw_scale, pw_bias=bn2_beta - bn2_mean * pw_scale)


if __name__ == "__main__":
    feat_ch = [32, 16, 16, 8, 8]
    dim = 8
    # Channel bookkeeping (mirrors Decoder.__init__):
    block_dims = [
        (feat_ch[0] + feat_ch[1], dim * 8),   # 48 -> 64
        (dim * 8 + feat_ch[2], dim * 4),      # 80 -> 32
        (dim * 4 + feat_ch[3], dim * 2),      # 40 -> 16
        (dim * 2 + feat_ch[4], dim * 1),      # 24 -> 8
    ]

    root = jax.random.PRNGKey(0)
    pk, xk, k1, k2, k3, k4 = jax.random.split(root, 6)
    param_keys = jax.random.split(pk, 4)
    params_list = [init_block_params(k, ic, oc)
                   for k, (ic, oc) in zip(param_keys, block_dims)]

    # Inputs (NCHW, PyTorch convention). Spatial chain 2 -> 4 -> 8 -> 16 -> 32.
    n = 2
    x = jax.random.normal(xk, (n, feat_ch[0], 2, 2), jnp.float32)
    skip_buff = [
        jax.random.normal(k1, (n, feat_ch[4], 32, 32), jnp.float32),  # [-4]
        jax.random.normal(k2, (n, feat_ch[3], 16, 16), jnp.float32),  # [-3]
        jax.random.normal(k3, (n, feat_ch[2], 8, 8), jnp.float32),    # [-2]
        jax.random.normal(k4, (n, feat_ch[1], 4, 4), jnp.float32),    # [-1]
    ]

    fwd = build_decoder(params_list, x.shape, [s.shape for s in skip_buff])
    out = fwd(x, skip_buff)
    jax.block_until_ready(out)

    assert out.shape == (n, dim, 32, 32), out.shape
    assert bool(jnp.all(jnp.isfinite(out)))

    ref = decoder_reference(x, skip_buff, params_list)
    err = float(jnp.max(jnp.abs(out - ref)))
    assert err < 5e-2, f"max abs err vs reference: {err}"

    print("KERNEL_OK")
</pallas_src>

<mosaic_0001>
module attributes {stable_mosaic.version = 11 : i64} {
  func.func @kernel(%arg0: i32, %arg1: memref<1x32x4xf32, #tpu.memory_space<vmem>>, %arg2: memref<1x16x16xf32, #tpu.memory_space<vmem>>, %arg3: memref<1x16x64xf32, #tpu.memory_space<vmem>>, %arg4: memref<1x8x256xf32, #tpu.memory_space<vmem>>, %arg5: memref<1x8x1024xf32, #tpu.memory_space<vmem>>, %arg6: memref<4x16xbf16, #tpu.memory_space<vmem>>, %arg7: memref<4x16xf32, #tpu.memory_space<vmem>>, %arg8: memref<48x9xf32, #tpu.memory_space<vmem>>, %arg9: memref<48x1xf32, #tpu.memory_space<vmem>>, %arg10: memref<64x48xbf16, #tpu.memory_space<vmem>>, %arg11: memref<64x1xf32, #tpu.memory_space<vmem>>, %arg12: memref<16x64xbf16, #tpu.memory_space<vmem>>, %arg13: memref<4x64xf32, #tpu.memory_space<vmem>>, %arg14: memref<80x9xf32, #tpu.memory_space<vmem>>, %arg15: memref<80x1xf32, #tpu.memory_space<vmem>>, %arg16: memref<32x80xbf16, #tpu.memory_space<vmem>>, %arg17: memref<32x1xf32, #tpu.memory_space<vmem>>, %arg18: memref<64x256xbf16, #tpu.memory_space<vmem>>, %arg19: memref<4x256xf32, #tpu.memory_space<vmem>>, %arg20: memref<40x9xf32, #tpu.memory_space<vmem>>, %arg21: memref<40x1xf32, #tpu.memory_space<vmem>>, %arg22: memref<16x40xbf16, #tpu.memory_space<vmem>>, %arg23: memref<16x1xf32, #tpu.memory_space<vmem>>, %arg24: memref<256x1024xbf16, #tpu.memory_space<vmem>>, %arg25: memref<4x1024xf32, #tpu.memory_space<vmem>>, %arg26: memref<24x9xf32, #tpu.memory_space<vmem>>, %arg27: memref<24x1xf32, #tpu.memory_space<vmem>>, %arg28: memref<8x24xbf16, #tpu.memory_space<vmem>>, %arg29: memref<8x1xf32, #tpu.memory_space<vmem>>, %arg30: memref<1x8x1024xf32, #tpu.memory_space<vmem>>) attributes {dimension_semantics = [#tpu.dimension_semantics<parallel>], iteration_bounds = array<i64: 2>, scalar_prefetch = 0 : i64, scratch_operands = 0 : i64, tpu.core_type = #tpu.core_type<tc>, window_params = [{transform_indices = @transform_0, window_bounds = array<i64: 1, 32, 4>}, {transform_indices = @transform_1, window_bounds = array<i64: 1, 16, 16>}, {transform_indices = @transform_2, window_bounds = array<i64: 1, 16, 64>}, {transform_indices = @transform_3, window_bounds = array<i64: 1, 8, 256>}, {transform_indices = @transform_4, window_bounds = array<i64: 1, 8, 1024>}, {pipeline_mode = #tpu.pipeline_mode<synchronous>, transform_indices = @transform_5, window_bounds = array<i64: 4, 16>}, {pipeline_mode = #tpu.pipeline_mode<synchronous>, transform_indices = @transform_6, window_bounds = array<i64: 4, 16>}, {pipeline_mode = #tpu.pipeline_mode<synchronous>, transform_indices = @transform_7, window_bounds = array<i64: 48, 9>}, {pipeline_mode = #tpu.pipeline_mode<synchronous>, transform_indices = @transform_8, window_bounds = array<i64: 48, 1>}, {pipeline_mode = #tpu.pipeline_mode<synchronous>, transform_indices = @transform_9, window_bounds = array<i64: 64, 48>}, {pipeline_mode = #tpu.pipeline_mode<synchronous>, transform_indices = @transform_10, window_bounds = array<i64: 64, 1>}, {pipeline_mode = #tpu.pipeline_mode<synchronous>, transform_indices = @transform_11, window_bounds = array<i64: 16, 64>}, {pipeline_mode = #tpu.pipeline_mode<synchronous>, transform_indices = @transform_12, window_bounds = array<i64: 4, 64>}, {pipeline_mode = #tpu.pipeline_mode<synchronous>, transform_indices = @transform_13, window_bounds = array<i64: 80, 9>}, {pipeline_mode = #tpu.pipeline_mode<synchronous>, transform_indices = @transform_14, window_bounds = array<i64: 80, 1>}, {pipeline_mode = #tpu.pipeline_mode<synchronous>, transform_indices = @transform_15, window_bounds = array<i64: 32, 80>}, {pipeline_mode = #tpu.pipeline_mode<synchronous>, transform_indices = @transform_16, window_bounds = array<i64: 32, 1>}, {pipeline_mode = #tpu.pipeline_mode<synchronous>, transform_indices = @transform_17, window_bounds = array<i64: 64, 256>}, {pipeline_mode = #tpu.pipeline_mode<synchronous>, transform_indices = @transform_18, window_bounds = array<i64: 4, 256>}, {pipeline_mode = #tpu.pipeline_mode<synchronous>, transform_indices = @transform_19, window_bounds = array<i64: 40, 9>}, {pipeline_mode = #tpu.pipeline_mode<synchronous>, transform_indices = @transform_20, window_bounds = array<i64: 40, 1>}, {pipeline_mode = #tpu.pipeline_mode<synchronous>, transform_indices = @transform_21, window_bounds = array<i64: 16, 40>}, {pipeline_mode = #tpu.pipeline_mode<synchronous>, transform_indices = @transform_22, window_bounds = array<i64: 16, 1>}, {pipeline_mode = #tpu.pipeline_mode<synchronous>, transform_indices = @transform_23, window_bounds = array<i64: 256, 1024>}, {pipeline_mode = #tpu.pipeline_mode<synchronous>, transform_indices = @transform_24, window_bounds = array<i64: 4, 1024>}, {pipeline_mode = #tpu.pipeline_mode<synchronous>, transform_indices = @transform_25, window_bounds = array<i64: 24, 9>}, {pipeline_mode = #tpu.pipeline_mode<synchronous>, transform_indices = @transform_26, window_bounds = array<i64: 24, 1>}, {pipeline_mode = #tpu.pipeline_mode<synchronous>, transform_indices = @transform_27, window_bounds = array<i64: 8, 24>}, {pipeline_mode = #tpu.pipeline_mode<synchronous>, transform_indices = @transform_28, window_bounds = array<i64: 8, 1>}, {transform_indices = @transform_29, window_bounds = array<i64: 1, 8, 1024>}]} {
    %c0 = arith.constant 0 : index
    %c0_0 = arith.constant 0 : index
    %c0_1 = arith.constant 0 : index
    %0 = vector.load %arg1[%c0, %c0_0, %c0_1] : memref<1x32x4xf32, #tpu.memory_space<vmem>>, vector<1x32x4xf32>
    %1 = vector.shape_cast %0 : vector<1x32x4xf32> to vector<32x4xf32>
    %2 = arith.truncf %1 : vector<32x4xf32> to vector<32x4xbf16>
    %c0_2 = arith.constant 0 : index
    %c0_3 = arith.constant 0 : index
    %3 = vector.load %arg6[%c0_2, %c0_3] : memref<4x16xbf16, #tpu.memory_space<vmem>>, vector<4x16xbf16>
    %cst = arith.constant dense<0.000000e+00> : vector<32x16xf32>
    %4 = tpu.matmul %2, %3, %cst {dimension_numbers = #tpu.dot_dimension_numbers<[1], [0], [0], [1], [0, 0, 1, 1], [], []>} : vector<32x4xbf16>, vector<4x16xbf16>, vector<32x16xf32> -> vector<32x16xf32>
    %c0_4 = arith.constant 0 : index
    %c0_5 = arith.constant 0 : index
    %c0_6 = arith.constant 0 : index
    %5 = vector.load %arg2[%c0_4, %c0_5, %c0_6] : memref<1x16x16xf32, #tpu.memory_space<vmem>>, vector<1x16x16xf32>
    %6 = vector.shape_cast %5 : vector<1x16x16xf32> to vector<16x16xf32>
    %7 = tpu.concatenate %4, %6 in 0 : vector<32x16xf32>, vector<16x16xf32> -> vector<48x16xf32>
    %c0_7 = arith.constant 0 : index
    %c0_8 = arith.constant 0 : index
    %8 = vector.load %arg8[%c0_7, %c0_8] : memref<48x9xf32, #tpu.memory_space<vmem>>, vector<48x9xf32>
    %c0_9 = arith.constant 0 : index
    %c0_10 = arith.constant 0 : index
    %9 = vector.load %arg9[%c0_9, %c0_10] : memref<48x1xf32, #tpu.memory_space<vmem>>, vector<48x1xf32>
    %c0_11 = arith.constant 0 : index
    %c0_12 = arith.constant 0 : index
    %10 = vector.load %arg7[%c0_11, %c0_12] : memref<4x16xf32, #tpu.memory_space<vmem>>, vector<4x16xf32>
    %11 = vector.extract_strided_slice %10 {offsets = [0, 0], sizes = [1, 16], strides = [1, 1]} : vector<4x16xf32> to vector<1x16xf32>
    %12 = vector.extract_strided_slice %7 {offsets = [0, 12], sizes = [48, 4], strides = [1, 1]} : vector<48x16xf32> to vector<48x4xf32>
    %13 = vector.extract_strided_slice %7 {offsets = [0, 0], sizes = [48, 12], strides = [1, 1]} : vector<48x16xf32> to vector<48x12xf32>
    %14 = tpu.concatenate %12, %13 in 1 : vector<48x4xf32>, vector<48x12xf32> -> vector<48x16xf32>
    %15 = vector.broadcast %11 : vector<1x16xf32> to vector<48x16xf32>
    %16 = arith.mulf %14, %15 : vector<48x16xf32>
    %17 = vector.extract_strided_slice %8 {offsets = [0, 0], sizes = [48, 1], strides = [1, 1]} : vector<48x9xf32> to vector<48x1xf32>
    %18 = vector.broadcast %17 : vector<48x1xf32> to vector<48x16xf32>
    %19 = arith.mulf %16, %18 : vector<48x16xf32>
    %20 = vector.extract_strided_slice %8 {offsets = [0, 1], sizes = [48, 1], strides = [1, 1]} : vector<48x9xf32> to vector<48x1xf32>
    %21 = vector.broadcast %20 : vector<48x1xf32> to vector<48x16xf32>
    %22 = arith.mulf %16, %21 : vector<48x16xf32>
    %23 = vector.extract_strided_slice %8 {offsets = [0, 2], sizes = [48, 1], strides = [1, 1]} : vector<48x9xf32> to vector<48x1xf32>
    %24 = vector.broadcast %23 : vector<48x1xf32> to vector<48x16xf32>
    %25 = arith.mulf %16, %24 : vector<48x16xf32>
    %26 = vector.extract_strided_slice %8 {offsets = [0, 3], sizes = [48, 1], strides = [1, 1]} : vector<48x9xf32> to vector<48x1xf32>
    %27 = vector.broadcast %26 : vector<48x1xf32> to vector<48x16xf32>
    %28 = arith.mulf %7, %27 : vector<48x16xf32>
    %29 = arith.addf %19, %28 : vector<48x16xf32>
    %30 = vector.extract_strided_slice %8 {offsets = [0, 4], sizes = [48, 1], strides = [1, 1]} : vector<48x9xf32> to vector<48x1xf32>
    %31 = vector.broadcast %30 : vector<48x1xf32> to vector<48x16xf32>
    %32 = arith.mulf %7, %31 : vector<48x16xf32>
    %33 = arith.addf %22, %32 : vector<48x16xf32>
    %34 = vector.extract_strided_slice %8 {offsets = [0, 5], sizes = [48, 1], strides = [1, 1]} : vector<48x9xf32> to vector<48x1xf32>
    %35 = vector.broadcast %34 : vector<48x1xf32> to vector<48x16xf32>
    %36 = arith.mulf %7, %35 : vector<48x16xf32>
    %37 = arith.addf %25, %36 : vector<48x16xf32>
    %38 = vector.extract_strided_slice %10 {offsets = [1, 0], sizes = [1, 16], strides = [1, 1]} : vector<4x16xf32> to vector<1x16xf32>
    %39 = vector.extract_strided_slice %7 {offsets = [0, 4], sizes = [48, 12], strides = [1, 1]} : vector<48x16xf32> to vector<48x12xf32>
    %40 = vector.extract_strided_slice %7 {offsets = [0, 0], sizes = [48, 4], strides = [1, 1]} : vector<48x16xf32> to vector<48x4xf32>
    %41 = tpu.concatenate %39, %40 in 1 : vector<48x12xf32>, vector<48x4xf32> -> vector<48x16xf32>
    %42 = vector.broadcast %38 : vector<1x16xf32> to vector<48x16xf32>
    %43 = arith.mulf %41, %42 : vector<48x16xf32>
    %44 = vector.extract_strided_slice %8 {offsets = [0, 6], sizes = [48, 1], strides = [1, 1]} : vector<48x9xf32> to vector<48x1xf32>
    %45 = vector.broadcast %44 : vector<48x1xf32> to vector<48x16xf32>
    %46 = arith.mulf %43, %45 : vector<48x16xf32>
    %47 = arith.addf %29, %46 : vector<48x16xf32>
    %48 = vector.extract_strided_slice %8 {offsets = [0, 7], sizes = [48, 1], strides = [1, 1]} : vector<48x9xf32> to vector<48x1xf32>
    %49 = vector.broadcast %48 : vector<48x1xf32> to vector<48x16xf32>
    %50 = arith.mulf %43, %49 : vector<48x16xf32>
    %51 = arith.addf %33, %50 : vector<48x16xf32>
    %52 = vector.extract_strided_slice %8 {offsets = [0, 8], sizes = [48, 1], strides = [1, 1]} : vector<48x9xf32> to vector<48x1xf32>
    %53 = vector.broadcast %52 : vector<48x1xf32> to vector<48x16xf32>
    %54 = arith.mulf %43, %53 : vector<48x16xf32>
    %55 = arith.addf %37, %54 : vector<48x16xf32>
    %56 = vector.extract_strided_slice %47 {offsets = [0, 15], sizes = [48, 1], strides = [1, 1]} : vector<48x16xf32> to vector<48x1xf32>
    %57 = vector.extract_strided_slice %47 {offsets = [0, 0], sizes = [48, 15], strides = [1, 1]} : vector<48x16xf32> to vector<48x15xf32>
    %58 = tpu.concatenate %56, %57 in 1 : vector<48x1xf32>, vector<48x15xf32> -> vector<48x16xf32>
    %59 = vector.extract_strided_slice %10 {offsets = [2, 0], sizes = [1, 16], strides = [1, 1]} : vector<4x16xf32> to vector<1x16xf32>
    %60 = vector.broadcast %59 : vector<1x16xf32> to vector<48x16xf32>
    %61 = arith.mulf %58, %60 : vector<48x16xf32>
    %62 = arith.addf %51, %61 : vector<48x16xf32>
    %63 = vector.extract_strided_slice %55 {offsets = [0, 1], sizes = [48, 15], strides = [1, 1]} : vector<48x16xf32> to vector<48x15xf32>
    %64 = vector.extract_strided_slice %55 {offsets = [0, 0], sizes = [48, 1], strides = [1, 1]} : vector<48x16xf32> to vector<48x1xf32>
    %65 = tpu.concatenate %63, %64 in 1 : vector<48x15xf32>, vector<48x1xf32> -> vector<48x16xf32>
    %66 = vector.extract_strided_slice %10 {offsets = [3, 0], sizes = [1, 16], strides = [1, 1]} : vector<4x16xf32> to vector<1x16xf32>
    %67 = vector.broadcast %66 : vector<1x16xf32> to vector<48x16xf32>
    %68 = arith.mulf %65, %67 : vector<48x16xf32>
    %69 = arith.addf %62, %68 : vector<48x16xf32>
    %70 = vector.broadcast %9 : vector<48x1xf32> to vector<48x16xf32>
    %71 = arith.addf %69, %70 : vector<48x16xf32>
    %cst_13 = arith.constant 0.00999999977 : f32
    %72 = vector.broadcast %cst_13 : f32 to vector<48x16xf32>
    %73 = arith.mulf %72, %71 : vector<48x16xf32>
    %74 = arith.maximumf %71, %73 : vector<48x16xf32>
    %c0_14 = arith.constant 0 : index
    %c0_15 = arith.constant 0 : index
    %75 = vector.load %arg10[%c0_14, %c0_15] : memref<64x48xbf16, #tpu.memory_space<vmem>>, vector<64x48xbf16>
    %76 = arith.truncf %74 : vector<48x16xf32> to vector<48x16xbf16>
    %cst_16 = arith.constant dense<0.000000e+00> : vector<64x16xf32>
    %77 = tpu.matmul %75, %76, %cst_16 {dimension_numbers = #tpu.dot_dimension_numbers<[1], [0], [0], [1], [0, 0, 1, 1], [], []>} : vector<64x48xbf16>, vector<48x16xbf16>, vector<64x16xf32> -> vector<64x16xf32>
    %c0_17 = arith.constant 0 : index
    %c0_18 = arith.constant 0 : index
    %78 = vector.load %arg11[%c0_17, %c0_18] : memref<64x1xf32, #tpu.memory_space<vmem>>, vector<64x1xf32>
    %79 = vector.broadcast %78 : vector<64x1xf32> to vector<64x16xf32>
    %80 = arith.addf %77, %79 : vector<64x16xf32>
    %cst_19 = arith.constant 0.00999999977 : f32
    %81 = vector.broadcast %cst_19 : f32 to vector<64x16xf32>
    %82 = arith.mulf %81, %80 : vector<64x16xf32>
    %83 = arith.maximumf %80, %82 : vector<64x16xf32>
    %84 = arith.truncf %83 : vector<64x16xf32> to vector<64x16xbf16>
    %c0_20 = arith.constant 0 : index
    %c0_21 = arith.constant 0 : index
    %85 = vector.load %arg12[%c0_20, %c0_21] : memref<16x64xbf16, #tpu.memory_space<vmem>>, vector<16x64xbf16>
    %cst_22 = arith.constant dense<0.000000e+00> : vector<64x64xf32>
    %86 = tpu.matmul %84, %85, %cst_22 {dimension_numbers = #tpu.dot_dimension_numbers<[1], [0], [0], [1], [0, 0, 1, 1], [], []>} : vector<64x16xbf16>, vector<16x64xbf16>, vector<64x64xf32> -> vector<64x64xf32>
    %c0_23 = arith.constant 0 : index
    %c0_24 = arith.constant 0 : index
    %c0_25 = arith.constant 0 : index
    %87 = vector.load %arg3[%c0_23, %c0_24, %c0_25] : memref<1x16x64xf32, #tpu.memory_space<vmem>>, vector<1x16x64xf32>
    %88 = vector.shape_cast %87 : vector<1x16x64xf32> to vector<16x64xf32>
    %89 = tpu.concatenate %86, %88 in 0 : vector<64x64xf32>, vector<16x64xf32> -> vector<80x64xf32>
    %c0_26 = arith.constant 0 : index
    %c0_27 = arith.constant 0 : index
    %90 = vector.load %arg14[%c0_26, %c0_27] : memref<80x9xf32, #tpu.memory_space<vmem>>, vector<80x9xf32>
    %c0_28 = arith.constant 0 : index
    %c0_29 = arith.constant 0 : index
    %91 = vector.load %arg15[%c0_28, %c0_29] : memref<80x1xf32, #tpu.memory_space<vmem>>, vector<80x1xf32>
    %c0_30 = arith.constant 0 : index
    %c0_31 = arith.constant 0 : index
    %92 = vector.load %arg13[%c0_30, %c0_31] : memref<4x64xf32, #tpu.memory_space<vmem>>, vector<4x64xf32>
    %93 = vector.extract_strided_slice %92 {offsets = [0, 0], sizes = [1, 64], strides = [1, 1]} : vector<4x64xf32> to vector<1x64xf32>
    %94 = vector.extract_strided_slice %89 {offsets = [0, 56], sizes = [80, 8], strides = [1, 1]} : vector<80x64xf32> to vector<80x8xf32>
    %95 = vector.extract_strided_slice %89 {offsets = [0, 0], sizes = [80, 56], strides = [1, 1]} : vector<80x64xf32> to vector<80x56xf32>
    %96 = tpu.concatenate %94, %95 in 1 : vector<80x8xf32>, vector<80x56xf32> -> vector<80x64xf32>
    %97 = vector.broadcast %93 : vector<1x64xf32> to vector<80x64xf32>
    %98 = arith.mulf %96, %97 : vector<80x64xf32>
    %99 = vector.extract_strided_slice %90 {offsets = [0, 0], sizes = [80, 1], strides = [1, 1]} : vector<80x9xf32> to vector<80x1xf32>
    %100 = vector.broadcast %99 : vector<80x1xf32> to vector<80x64xf32>
    %101 = arith.mulf %98, %100 : vector<80x64xf32>
    %102 = vector.extract_strided_slice %90 {offsets = [0, 1], sizes = [80, 1], strides = [1, 1]} : vector<80x9xf32> to vector<80x1xf32>
    %103 = vector.broadcast %102 : vector<80x1xf32> to vector<80x64xf32>
    %104 = arith.mulf %98, %103 : vector<80x64xf32>
    %105 = vector.extract_strided_slice %90 {offsets = [0, 2], sizes = [80, 1], strides = [1, 1]} : vector<80x9xf32> to vector<80x1xf32>
    %106 = vector.broadcast %105 : vector<80x1xf32> to vector<80x64xf32>
    %107 = arith.mulf %98, %106 : vector<80x64xf32>
    %108 = vector.extract_strided_slice %90 {offsets = [0, 3], sizes = [80, 1], strides = [1, 1]} : vector<80x9xf32> to vector<80x1xf32>
    %109 = vector.broadcast %108 : vector<80x1xf32> to vector<80x64xf32>
    %110 = arith.mulf %89, %109 : vector<80x64xf32>
    %111 = arith.addf %101, %110 : vector<80x64xf32>
    %112 = vector.extract_strided_slice %90 {offsets = [0, 4], sizes = [80, 1], strides = [1, 1]} : vector<80x9xf32> to vector<80x1xf32>
    %113 = vector.broadcast %112 : vector<80x1xf32> to vector<80x64xf32>
    %114 = arith.mulf %89, %113 : vector<80x64xf32>
    %115 = arith.addf %104, %114 : vector<80x64xf32>
    %116 = vector.extract_strided_slice %90 {offsets = [0, 5], sizes = [80, 1], strides = [1, 1]} : vector<80x9xf32> to vector<80x1xf32>
    %117 = vector.broadcast %116 : vector<80x1xf32> to vector<80x64xf32>
    %118 = arith.mulf %89, %117 : vector<80x64xf32>
    %119 = arith.addf %107, %118 : vector<80x64xf32>
    %120 = vector.extract_strided_slice %92 {offsets = [1, 0], sizes = [1, 64], strides = [1, 1]} : vector<4x64xf32> to vector<1x64xf32>
    %121 = vector.extract_strided_slice %89 {offsets = [0, 8], sizes = [80, 56], strides = [1, 1]} : vector<80x64xf32> to vector<80x56xf32>
    %122 = vector.extract_strided_slice %89 {offsets = [0, 0], sizes = [80, 8], strides = [1, 1]} : vector<80x64xf32> to vector<80x8xf32>
    %123 = tpu.concatenate %121, %122 in 1 : vector<80x56xf32>, vector<80x8xf32> -> vector<80x64xf32>
    %124 = vector.broadcast %120 : vector<1x64xf32> to vector<80x64xf32>
    %125 = arith.mulf %123, %124 : vector<80x64xf32>
    %126 = vector.extract_strided_slice %90 {offsets = [0, 6], sizes = [80, 1], strides = [1, 1]} : vector<80x9xf32> to vector<80x1xf32>
    %127 = vector.broadcast %126 : vector<80x1xf32> to vector<80x64xf32>
    %128 = arith.mulf %125, %127 : vector<80x64xf32>
    %129 = arith.addf %111, %128 : vector<80x64xf32>
    %130 = vector.extract_strided_slice %90 {offsets = [0, 7], sizes = [80, 1], strides = [1, 1]} : vector<80x9xf32> to vector<80x1xf32>
    %131 = vector.broadcast %130 : vector<80x1xf32> to vector<80x64xf32>
    %132 = arith.mulf %125, %131 : vector<80x64xf32>
    %133 = arith.addf %115, %132 : vector<80x64xf32>
    %134 = vector.extract_strided_slice %90 {offsets = [0, 8], sizes = [80, 1], strides = [1, 1]} : vector<80x9xf32> to vector<80x1xf32>
    %135 = vector.broadcast %134 : vector<80x1xf32> to vector<80x64xf32>
    %136 = arith.mulf %125, %135 : vector<80x64xf32>
    %137 = arith.addf %119, %136 : vector<80x64xf32>
    %138 = vector.extract_strided_slice %129 {offsets = [0, 63], sizes = [80, 1], strides = [1, 1]} : vector<80x64xf32> to vector<80x1xf32>
    %139 = vector.extract_strided_slice %129 {offsets = [0, 0], sizes = [80, 63], strides = [1, 1]} : vector<80x64xf32> to vector<80x63xf32>
    %140 = tpu.concatenate %138, %139 in 1 : vector<80x1xf32>, vector<80x63xf32> -> vector<80x64xf32>
    %141 = vector.extract_strided_slice %92 {offsets = [2, 0], sizes = [1, 64], strides = [1, 1]} : vector<4x64xf32> to vector<1x64xf32>
    %142 = vector.broadcast %141 : vector<1x64xf32> to vector<80x64xf32>
    %143 = arith.mulf %140, %142 : vector<80x64xf32>
    %144 = arith.addf %133, %143 : vector<80x64xf32>
    %145 = vector.extract_strided_slice %137 {offsets = [0, 1], sizes = [80, 63], strides = [1, 1]} : vector<80x64xf32> to vector<80x63xf32>
    %146 = vector.extract_strided_slice %137 {offsets = [0, 0], sizes = [80, 1], strides = [1, 1]} : vector<80x64xf32> to vector<80x1xf32>
    %147 = tpu.concatenate %145, %146 in 1 : vector<80x63xf32>, vector<80x1xf32> -> vector<80x64xf32>
    %148 = vector.extract_strided_slice %92 {offsets = [3, 0], sizes = [1, 64], strides = [1, 1]} : vector<4x64xf32> to vector<1x64xf32>
    %149 = vector.broadcast %148 : vector<1x64xf32> to vector<80x64xf32>
    %150 = arith.mulf %147, %149 : vector<80x64xf32>
    %151 = arith.addf %144, %150 : vector<80x64xf32>
    %152 = vector.broadcast %91 : vector<80x1xf32> to vector<80x64xf32>
    %153 = arith.addf %151, %152 : vector<80x64xf32>
    %cst_32 = arith.constant 0.00999999977 : f32
    %154 = vector.broadcast %cst_32 : f32 to vector<80x64xf32>
    %155 = arith.mulf %154, %153 : vector<80x64xf32>
    %156 = arith.maximumf %153, %155 : vector<80x64xf32>
    %c0_33 = arith.constant 0 : index
    %c0_34 = arith.constant 0 : index
    %157 = vector.load %arg16[%c0_33, %c0_34] : memref<32x80xbf16, #tpu.memory_space<vmem>>, vector<32x80xbf16>
    %158 = arith.truncf %156 : vector<80x64xf32> to vector<80x64xbf16>
    %cst_35 = arith.constant dense<0.000000e+00> : vector<32x64xf32>
    %159 = tpu.matmul %157, %158, %cst_35 {dimension_numbers = #tpu.dot_dimension_numbers<[1], [0], [0], [1], [0, 0, 1, 1], [], []>} : vector<32x80xbf16>, vector<80x64xbf16>, vector<32x64xf32> -> vector<32x64xf32>
    %c0_36 = arith.constant 0 : index
    %c0_37 = arith.constant 0 : index
    %160 = vector.load %arg17[%c0_36, %c0_37] : memref<32x1xf32, #tpu.memory_space<vmem>>, vector<32x1xf32>
    %161 = vector.broadcast %160 : vector<32x1xf32> to vector<32x64xf32>
    %162 = arith.addf %159, %161 : vector<32x64xf32>
    %cst_38 = arith.constant 0.00999999977 : f32
    %163 = vector.broadcast %cst_38 : f32 to vector<32x64xf32>
    %164 = arith.mulf %163, %162 : vector<32x64xf32>
    %165 = arith.maximumf %162, %164 : vector<32x64xf32>
    %166 = arith.truncf %165 : vector<32x64xf32> to vector<32x64xbf16>
    %c0_39 = arith.constant 0 : index
    %c0_40 = arith.constant 0 : index
    %167 = vector.load %arg18[%c0_39, %c0_40] : memref<64x256xbf16, #tpu.memory_space<vmem>>, vector<64x256xbf16>
    %cst_41 = arith.constant dense<0.000000e+00> : vector<32x256xf32>
    %168 = tpu.matmul %166, %167, %cst_41 {dimension_numbers = #tpu.dot_dimension_numbers<[1], [0], [0], [1], [0, 0, 1, 1], [], []>} : vector<32x64xbf16>, vector<64x256xbf16>, vector<32x256xf32> -> vector<32x256xf32>
    %c0_42 = arith.constant 0 : index
    %c0_43 = arith.constant 0 : index
    %c0_44 = arith.constant 0 : index
    %169 = vector.load %arg4[%c0_42, %c0_43, %c0_44] : memref<1x8x256xf32, #tpu.memory_space<vmem>>, vector<1x8x256xf32>
    %170 = vector.shape_cast %169 : vector<1x8x256xf32> to vector<8x256xf32>
    %171 = tpu.concatenate %168, %170 in 0 : vector<32x256xf32>, vector<8x256xf32> -> vector<40x256xf32>
    %c0_45 = arith.constant 0 : index
    %c0_46 = arith.constant 0 : index
    %172 = vector.load %arg20[%c0_45, %c0_46] : memref<40x9xf32, #tpu.memory_space<vmem>>, vector<40x9xf32>
    %c0_47 = arith.constant 0 : index
    %c0_48 = arith.constant 0 : index
    %173 = vector.load %arg21[%c0_47, %c0_48] : memref<40x1xf32, #tpu.memory_space<vmem>>, vector<40x1xf32>
    %c0_49 = arith.constant 0 : index
    %c0_50 = arith.constant 0 : index
    %174 = vector.load %arg19[%c0_49, %c0_50] : memref<4x256xf32, #tpu.memory_space<vmem>>, vector<4x256xf32>
    %175 = vector.extract_strided_slice %174 {offsets = [0, 0], sizes = [1, 256], strides = [1, 1]} : vector<4x256xf32> to vector<1x256xf32>
    %c16_i32 = arith.constant 16 : i32
    %176 = tpu.dynamic_rotate %171 by %c16_i32 dim 1 : vector<40x256xf32>, i32 -> vector<40x256xf32>
    %177 = vector.broadcast %175 : vector<1x256xf32> to vector<40x256xf32>
    %178 = arith.mulf %176, %177 : vector<40x256xf32>
    %179 = vector.extract_strided_slice %172 {offsets = [0, 0], sizes = [40, 1], strides = [1, 1]} : vector<40x9xf32> to vector<40x1xf32>
    %180 = vector.broadcast %179 : vector<40x1xf32> to vector<40x256xf32>
    %181 = arith.mulf %178, %180 : vector<40x256xf32>
    %182 = vector.extract_strided_slice %172 {offsets = [0, 1], sizes = [40, 1], strides = [1, 1]} : vector<40x9xf32> to vector<40x1xf32>
    %183 = vector.broadcast %182 : vector<40x1xf32> to vector<40x256xf32>
    %184 = arith.mulf %178, %183 : vector<40x256xf32>
    %185 = vector.extract_strided_slice %172 {offsets = [0, 2], sizes = [40, 1], strides = [1, 1]} : vector<40x9xf32> to vector<40x1xf32>
    %186 = vector.broadcast %185 : vector<40x1xf32> to vector<40x256xf32>
    %187 = arith.mulf %178, %186 : vector<40x256xf32>
    %188 = vector.extract_strided_slice %172 {offsets = [0, 3], sizes = [40, 1], strides = [1, 1]} : vector<40x9xf32> to vector<40x1xf32>
    %189 = vector.broadcast %188 : vector<40x1xf32> to vector<40x256xf32>
    %190 = arith.mulf %171, %189 : vector<40x256xf32>
    %191 = arith.addf %181, %190 : vector<40x256xf32>
    %192 = vector.extract_strided_slice %172 {offsets = [0, 4], sizes = [40, 1], strides = [1, 1]} : vector<40x9xf32> to vector<40x1xf32>
    %193 = vector.broadcast %192 : vector<40x1xf32> to vector<40x256xf32>
    %194 = arith.mulf %171, %193 : vector<40x256xf32>
    %195 = arith.addf %184, %194 : vector<40x256xf32>
    %196 = vector.extract_strided_slice %172 {offsets = [0, 5], sizes = [40, 1], strides = [1, 1]} : vector<40x9xf32> to vector<40x1xf32>
    %197 = vector.broadcast %196 : vector<40x1xf32> to vector<40x256xf32>
    %198 = arith.mulf %171, %197 : vector<40x256xf32>
    %199 = arith.addf %187, %198 : vector<40x256xf32>
    %200 = vector.extract_strided_slice %174 {offsets = [1, 0], sizes = [1, 256], strides = [1, 1]} : vector<4x256xf32> to vector<1x256xf32>
    %c240_i32 = arith.constant 240 : i32
    %201 = tpu.dynamic_rotate %171 by %c240_i32 dim 1 : vector<40x256xf32>, i32 -> vector<40x256xf32>
    %202 = vector.broadcast %200 : vector<1x256xf32> to vector<40x256xf32>
    %203 = arith.mulf %201, %202 : vector<40x256xf32>
    %204 = vector.extract_strided_slice %172 {offsets = [0, 6], sizes = [40, 1], strides = [1, 1]} : vector<40x9xf32> to vector<40x1xf32>
    %205 = vector.broadcast %204 : vector<40x1xf32> to vector<40x256xf32>
    %206 = arith.mulf %203, %205 : vector<40x256xf32>
    %207 = arith.addf %191, %206 : vector<40x256xf32>
    %208 = vector.extract_strided_slice %172 {offsets = [0, 7], sizes = [40, 1], strides = [1, 1]} : vector<40x9xf32> to vector<40x1xf32>
    %209 = vector.broadcast %208 : vector<40x1xf32> to vector<40x256xf32>
    %210 = arith.mulf %203, %209 : vector<40x256xf32>
    %211 = arith.addf %195, %210 : vector<40x256xf32>
    %212 = vector.extract_strided_slice %172 {offsets = [0, 8], sizes = [40, 1], strides = [1, 1]} : vector<40x9xf32> to vector<40x1xf32>
    %213 = vector.broadcast %212 : vector<40x1xf32> to vector<40x256xf32>
    %214 = arith.mulf %203, %213 : vector<40x256xf32>
    %215 = arith.addf %199, %214 : vector<40x256xf32>
    %c1_i32 = arith.constant 1 : i32
    %216 = tpu.dynamic_rotate %207 by %c1_i32 dim 1 : vector<40x256xf32>, i32 -> vector<40x256xf32>
    %217 = vector.extract_strided_slice %174 {offsets = [2, 0], sizes = [1, 256], strides = [1, 1]} : vector<4x256xf32> to vector<1x256xf32>
    %218 = vector.broadcast %217 : vector<1x256xf32> to vector<40x256xf32>
    %219 = arith.mulf %216, %218 : vector<40x256xf32>
    %220 = arith.addf %211, %219 : vector<40x256xf32>
    %c255_i32 = arith.constant 255 : i32
    %221 = tpu.dynamic_rotate %215 by %c255_i32 dim 1 : vector<40x256xf32>, i32 -> vector<40x256xf32>
    %222 = vector.extract_strided_slice %174 {offsets = [3, 0], sizes = [1, 256], strides = [1, 1]} : vector<4x256xf32> to vector<1x256xf32>
    %223 = vector.broadcast %222 : vector<1x256xf32> to vector<40x256xf32>
    %224 = arith.mulf %221, %223 : vector<40x256xf32>
    %225 = arith.addf %220, %224 : vector<40x256xf32>
    %226 = vector.broadcast %173 : vector<40x1xf32> to vector<40x256xf32>
    %227 = arith.addf %225, %226 : vector<40x256xf32>
    %cst_51 = arith.constant 0.00999999977 : f32
    %228 = vector.broadcast %cst_51 : f32 to vector<40x256xf32>
    %229 = arith.mulf %228, %227 : vector<40x256xf32>
    %230 = arith.maximumf %227, %229 : vector<40x256xf32>
    %c0_52 = arith.constant 0 : index
    %c0_53 = arith.constant 0 : index
    %231 = vector.load %arg22[%c0_52, %c0_53] : memref<16x40xbf16, #tpu.memory_space<vmem>>, vector<16x40xbf16>
    %232 = arith.truncf %230 : vector<40x256xf32> to vector<40x256xbf16>
    %cst_54 = arith.constant dense<0.000000e+00> : vector<16x256xf32>
    %233 = tpu.matmul %231, %232, %cst_54 {dimension_numbers = #tpu.dot_dimension_numbers<[1], [0], [0], [1], [0, 0, 1, 1], [], []>} : vector<16x40xbf16>, vector<40x256xbf16>, vector<16x256xf32> -> vector<16x256xf32>
    %c0_55 = arith.constant 0 : index
    %c0_56 = arith.constant 0 : index
    %234 = vector.load %arg23[%c0_55, %c0_56] : memref<16x1xf32, #tpu.memory_space<vmem>>, vector<16x1xf32>
    %235 = vector.broadcast %234 : vector<16x1xf32> to vector<16x256xf32>
    %236 = arith.addf %233, %235 : vector<16x256xf32>
    %cst_57 = arith.constant 0.00999999977 : f32
    %237 = vector.broadcast %cst_57 : f32 to vector<16x256xf32>
    %238 = arith.mulf %237, %236 : vector<16x256xf32>
    %239 = arith.maximumf %236, %238 : vector<16x256xf32>
    %240 = arith.truncf %239 : vector<16x256xf32> to vector<16x256xbf16>
    %c0_58 = arith.constant 0 : index
    %c0_59 = arith.constant 0 : index
    %241 = vector.load %arg24[%c0_58, %c0_59] : memref<256x1024xbf16, #tpu.memory_space<vmem>>, vector<256x1024xbf16>
    %cst_60 = arith.constant dense<0.000000e+00> : vector<16x1024xf32>
    %242 = tpu.matmul %240, %241, %cst_60 {dimension_numbers = #tpu.dot_dimension_numbers<[1], [0], [0], [1], [0, 0, 1, 1], [], []>} : vector<16x256xbf16>, vector<256x1024xbf16>, vector<16x1024xf32> -> vector<16x1024xf32>
    %c0_61 = arith.constant 0 : index
    %c0_62 = arith.constant 0 : index
    %c0_63 = arith.constant 0 : index
    %243 = vector.load %arg5[%c0_61, %c0_62, %c0_63] : memref<1x8x1024xf32, #tpu.memory_space<vmem>>, vector<1x8x1024xf32>
    %244 = vector.shape_cast %243 : vector<1x8x1024xf32> to vector<8x1024xf32>
    %245 = tpu.concatenate %242, %244 in 0 : vector<16x1024xf32>, vector<8x1024xf32> -> vector<24x1024xf32>
    %c0_64 = arith.constant 0 : index
    %c0_65 = arith.constant 0 : index
    %246 = vector.load %arg26[%c0_64, %c0_65] : memref<24x9xf32, #tpu.memory_space<vmem>>, vector<24x9xf32>
    %c0_66 = arith.constant 0 : index
    %c0_67 = arith.constant 0 : index
    %247 = vector.load %arg27[%c0_66, %c0_67] : memref<24x1xf32, #tpu.memory_space<vmem>>, vector<24x1xf32>
    %c0_68 = arith.constant 0 : index
    %c0_69 = arith.constant 0 : index
    %248 = vector.load %arg25[%c0_68, %c0_69] : memref<4x1024xf32, #tpu.memory_space<vmem>>, vector<4x1024xf32>
    %249 = vector.extract_strided_slice %248 {offsets = [0, 0], sizes = [1, 1024], strides = [1, 1]} : vector<4x1024xf32> to vector<1x1024xf32>
    %c32_i32 = arith.constant 32 : i32
    %250 = tpu.dynamic_rotate %245 by %c32_i32 dim 1 : vector<24x1024xf32>, i32 -> vector<24x1024xf32>
    %251 = vector.broadcast %249 : vector<1x1024xf32> to vector<24x1024xf32>
    %252 = arith.mulf %250, %251 : vector<24x1024xf32>
    %253 = vector.extract_strided_slice %246 {offsets = [0, 0], sizes = [24, 1], strides = [1, 1]} : vector<24x9xf32> to vector<24x1xf32>
    %254 = vector.broadcast %253 : vector<24x1xf32> to vector<24x1024xf32>
    %255 = arith.mulf %252, %254 : vector<24x1024xf32>
    %256 = vector.extract_strided_slice %246 {offsets = [0, 1], sizes = [24, 1], strides = [1, 1]} : vector<24x9xf32> to vector<24x1xf32>
    %257 = vector.broadcast %256 : vector<24x1xf32> to vector<24x1024xf32>
    %258 = arith.mulf %252, %257 : vector<24x1024xf32>
    %259 = vector.extract_strided_slice %246 {offsets = [0, 2], sizes = [24, 1], strides = [1, 1]} : vector<24x9xf32> to vector<24x1xf32>
    %260 = vector.broadcast %259 : vector<24x1xf32> to vector<24x1024xf32>
    %261 = arith.mulf %252, %260 : vector<24x1024xf32>
    %262 = vector.extract_strided_slice %246 {offsets = [0, 3], sizes = [24, 1], strides = [1, 1]} : vector<24x9xf32> to vector<24x1xf32>
    %263 = vector.broadcast %262 : vector<24x1xf32> to vector<24x1024xf32>
    %264 = arith.mulf %245, %263 : vector<24x1024xf32>
    %265 = arith.addf %255, %264 : vector<24x1024xf32>
    %266 = vector.extract_strided_slice %246 {offsets = [0, 4], sizes = [24, 1], strides = [1, 1]} : vector<24x9xf32> to vector<24x1xf32>
    %267 = vector.broadcast %266 : vector<24x1xf32> to vector<24x1024xf32>
    %268 = arith.mulf %245, %267 : vector<24x1024xf32>
    %269 = arith.addf %258, %268 : vector<24x1024xf32>
    %270 = vector.extract_strided_slice %246 {offsets = [0, 5], sizes = [24, 1], strides = [1, 1]} : vector<24x9xf32> to vector<24x1xf32>
    %271 = vector.broadcast %270 : vector<24x1xf32> to vector<24x1024xf32>
    %272 = arith.mulf %245, %271 : vector<24x1024xf32>
    %273 = arith.addf %261, %272 : vector<24x1024xf32>
    %274 = vector.extract_strided_slice %248 {offsets = [1, 0], sizes = [1, 1024], strides = [1, 1]} : vector<4x1024xf32> to vector<1x1024xf32>
    %c992_i32 = arith.constant 992 : i32
    %275 = tpu.dynamic_rotate %245 by %c992_i32 dim 1 : vector<24x1024xf32>, i32 -> vector<24x1024xf32>
    %276 = vector.broadcast %274 : vector<1x1024xf32> to vector<24x1024xf32>
    %277 = arith.mulf %275, %276 : vector<24x1024xf32>
    %278 = vector.extract_strided_slice %246 {offsets = [0, 6], sizes = [24, 1], strides = [1, 1]} : vector<24x9xf32> to vector<24x1xf32>
    %279 = vector.broadcast %278 : vector<24x1xf32> to vector<24x1024xf32>
    %280 = arith.mulf %277, %279 : vector<24x1024xf32>
    %281 = arith.addf %265, %280 : vector<24x1024xf32>
    %282 = vector.extract_strided_slice %246 {offsets = [0, 7], sizes = [24, 1], strides = [1, 1]} : vector<24x9xf32> to vector<24x1xf32>
    %283 = vector.broadcast %282 : vector<24x1xf32> to vector<24x1024xf32>
    %284 = arith.mulf %277, %283 : vector<24x1024xf32>
    %285 = arith.addf %269, %284 : vector<24x1024xf32>
    %286 = vector.extract_strided_slice %246 {offsets = [0, 8], sizes = [24, 1], strides = [1, 1]} : vector<24x9xf32> to vector<24x1xf32>
    %287 = vector.broadcast %286 : vector<24x1xf32> to vector<24x1024xf32>
    %288 = arith.mulf %277, %287 : vector<24x1024xf32>
    %289 = arith.addf %273, %288 : vector<24x1024xf32>
    %c1_i32_70 = arith.constant 1 : i32
    %290 = tpu.dynamic_rotate %281 by %c1_i32_70 dim 1 : vector<24x1024xf32>, i32 -> vector<24x1024xf32>
    %291 = vector.extract_strided_slice %248 {offsets = [2, 0], sizes = [1, 1024], strides = [1, 1]} : vector<4x1024xf32> to vector<1x1024xf32>
    %292 = vector.broadcast %291 : vector<1x1024xf32> to vector<24x1024xf32>
    %293 = arith.mulf %290, %292 : vector<24x1024xf32>
    %294 = arith.addf %285, %293 : vector<24x1024xf32>
    %c1023_i32 = arith.constant 1023 : i32
    %295 = tpu.dynamic_rotate %289 by %c1023_i32 dim 1 : vector<24x1024xf32>, i32 -> vector<24x1024xf32>
    %296 = vector.extract_strided_slice %248 {offsets = [3, 0], sizes = [1, 1024], strides = [1, 1]} : vector<4x1024xf32> to vector<1x1024xf32>
    %297 = vector.broadcast %296 : vector<1x1024xf32> to vector<24x1024xf32>
    %298 = arith.mulf %295, %297 : vector<24x1024xf32>
    %299 = arith.addf %294, %298 : vector<24x1024xf32>
    %300 = vector.broadcast %247 : vector<24x1xf32> to vector<24x1024xf32>
    %301 = arith.addf %299, %300 : vector<24x1024xf32>
    %cst_71 = arith.constant 0.00999999977 : f32
    %302 = vector.broadcast %cst_71 : f32 to vector<24x1024xf32>
    %303 = arith.mulf %302, %301 : vector<24x1024xf32>
    %304 = arith.maximumf %301, %303 : vector<24x1024xf32>
    %c0_72 = arith.constant 0 : index
    %c0_73 = arith.constant 0 : index
    %305 = vector.load %arg28[%c0_72, %c0_73] : memref<8x24xbf16, #tpu.memory_space<vmem>>, vector<8x24xbf16>
    %306 = arith.truncf %304 : vector<24x1024xf32> to vector<24x1024xbf16>
    %cst_74 = arith.constant dense<0.000000e+00> : vector<8x1024xf32>
    %307 = tpu.matmul %305, %306, %cst_74 {dimension_numbers = #tpu.dot_dimension_numbers<[1], [0], [0], [1], [0, 0, 1, 1], [], []>} : vector<8x24xbf16>, vector<24x1024xbf16>, vector<8x1024xf32> -> vector<8x1024xf32>
    %c0_75 = arith.constant 0 : index
    %c0_76 = arith.constant 0 : index
    %308 = vector.load %arg29[%c0_75, %c0_76] : memref<8x1xf32, #tpu.memory_space<vmem>>, vector<8x1xf32>
    %309 = vector.broadcast %308 : vector<8x1xf32> to vector<8x1024xf32>
    %310 = arith.addf %307, %309 : vector<8x1024xf32>
    %cst_77 = arith.constant 0.00999999977 : f32
    %311 = vector.broadcast %cst_77 : f32 to vector<8x1024xf32>
    %312 = arith.mulf %311, %310 : vector<8x1024xf32>
    %313 = arith.maximumf %310, %312 : vector<8x1024xf32>
    %c0_78 = arith.constant 0 : index
    %c0_79 = arith.constant 0 : index
    %c0_80 = arith.constant 0 : index
    %314 = vector.load %arg30[%c0_78, %c0_79, %c0_80] : memref<1x8x1024xf32, #tpu.memory_space<vmem>>, vector<1x8x1024xf32>
    %315 = vector.shape_cast %314 : vector<1x8x1024xf32> to vector<8x1024xf32>
    %316 = vector.shape_cast %313 : vector<8x1024xf32> to vector<1x8x1024xf32>
    tpu.vector_store %arg30[%c0_78, %c0_79, %c0_80], %316 {strides = array<i32>} : memref<1x8x1024xf32, #tpu.memory_space<vmem>>, vector<1x8x1024xf32>,
    return
  }
  func.func @transform_0(%arg0: i32) -> (i32, i32, i32) {
    %c0_i32 = arith.constant 0 : i32
    %c0_i32_0 = arith.constant 0 : i32
    %c0_i32_1 = arith.constant 0 : i32
    return %arg0, %c0_i32, %c0_i32_0 : i32, i32, i32
  }
  func.func @transform_1(%arg0: i32) -> (i32, i32, i32) {
    %c0_i32 = arith.constant 0 : i32
    %c0_i32_0 = arith.constant 0 : i32
    %c0_i32_1 = arith.constant 0 : i32
    return %arg0, %c0_i32, %c0_i32_0 : i32, i32, i32
  }
  func.func @transform_2(%arg0: i32) -> (i32, i32, i32) {
    %c0_i32 = arith.constant 0 : i32
    %c0_i32_0 = arith.constant 0 : i32
    %c0_i32_1 = arith.constant 0 : i32
    return %arg0, %c0_i32, %c0_i32_0 : i32, i32, i32
  }
  func.func @transform_3(%arg0: i32) -> (i32, i32, i32) {
    %c0_i32 = arith.constant 0 : i32
    %c0_i32_0 = arith.constant 0 : i32
    %c0_i32_1 = arith.constant 0 : i32
    return %arg0, %c0_i32, %c0_i32_0 : i32, i32, i32
  }
  func.func @transform_4(%arg0: i32) -> (i32, i32, i32) {
    %c0_i32 = arith.constant 0 : i32
    %c0_i32_0 = arith.constant 0 : i32
    %c0_i32_1 = arith.constant 0 : i32
    return %arg0, %c0_i32, %c0_i32_0 : i32, i32, i32
  }
  func.func @transform_5(%arg0: i32) -> (i32, i32) {
    %c0_i32 = arith.constant 0 : i32
    %c0_i32_0 = arith.constant 0 : i32
    %c0_i32_1 = arith.constant 0 : i32
    return %c0_i32, %c0_i32_0 : i32, i32
  }
  func.func @transform_6(%arg0: i32) -> (i32, i32) {
    %c0_i32 = arith.constant 0 : i32
    %c0_i32_0 = arith.constant 0 : i32
    %c0_i32_1 = arith.constant 0 : i32
    return %c0_i32, %c0_i32_0 : i32, i32
  }
  func.func @transform_7(%arg0: i32) -> (i32, i32) {
    %c0_i32 = arith.constant 0 : i32
    %c0_i32_0 = arith.constant 0 : i32
    %c0_i32_1 = arith.constant 0 : i32
    return %c0_i32, %c0_i32_0 : i32, i32
  }
  func.func @transform_8(%arg0: i32) -> (i32, i32) {
    %c0_i32 = arith.constant 0 : i32
    %c0_i32_0 = arith.constant 0 : i32
    %c0_i32_1 = arith.constant 0 : i32
    return %c0_i32, %c0_i32_0 : i32, i32
  }
  func.func @transform_9(%arg0: i32) -> (i32, i32) {
    %c0_i32 = arith.constant 0 : i32
    %c0_i32_0 = arith.constant 0 : i32
    %c0_i32_1 = arith.constant 0 : i32
    return %c0_i32, %c0_i32_0 : i32, i32
  }
  func.func @transform_10(%arg0: i32) -> (i32, i32) {
    %c0_i32 = arith.constant 0 : i32
    %c0_i32_0 = arith.constant 0 : i32
    %c0_i32_1 = arith.constant 0 : i32
    return %c0_i32, %c0_i32_0 : i32, i32
  }
  func.func @transform_11(%arg0: i32) -> (i32, i32) {
    %c0_i32 = arith.constant 0 : i32
    %c0_i32_0 = arith.constant 0 : i32
    %c0_i32_1 = arith.constant 0 : i32
    return %c0_i32, %c0_i32_0 : i32, i32
  }
  func.func @transform_12(%arg0: i32) -> (i32, i32) {
    %c0_i32 = arith.constant 0 : i32
    %c0_i32_0 = arith.constant 0 : i32
    %c0_i32_1 = arith.constant 0 : i32
    return %c0_i32, %c0_i32_0 : i32, i32
  }
  func.func @transform_13(%arg0: i32) -> (i32, i32) {
    %c0_i32 = arith.constant 0 : i32
    %c0_i32_0 = arith.constant 0 : i32
    %c0_i32_1 = arith.constant 0 : i32
    return %c0_i32, %c0_i32_0 : i32, i32
  }
  func.func @transform_14(%arg0: i32) -> (i32, i32) {
    %c0_i32 = arith.constant 0 : i32
    %c0_i32_0 = arith.constant 0 : i32
    %c0_i32_1 = arith.constant 0 : i32
    return %c0_i32, %c0_i32_0 : i32, i32
  }
  func.func @transform_15(%arg0: i32) -> (i32, i32) {
    %c0_i32 = arith.constant 0 : i32
    %c0_i32_0 = arith.constant 0 : i32
    %c0_i32_1 = arith.constant 0 : i32
    return %c0_i32, %c0_i32_0 : i32, i32
  }
  func.func @transform_16(%arg0: i32) -> (i32, i32) {
    %c0_i32 = arith.constant 0 : i32
    %c0_i32_0 = arith.constant 0 : i32
    %c0_i32_1 = arith.constant 0 : i32
    return %c0_i32, %c0_i32_0 : i32, i32
  }
  func.func @transform_17(%arg0: i32) -> (i32, i32) {
    %c0_i32 = arith.constant 0 : i32
    %c0_i32_0 = arith.constant 0 : i32
    %c0_i32_1 = arith.constant 0 : i32
    return %c0_i32, %c0_i32_0 : i32, i32
  }
  func.func @transform_18(%arg0: i32) -> (i32, i32) {
    %c0_i32 = arith.constant 0 : i32
    %c0_i32_0 = arith.constant 0 : i32
    %c0_i32_1 = arith.constant 0 : i32
    return %c0_i32, %c0_i32_0 : i32, i32
  }
  func.func @transform_19(%arg0: i32) -> (i32, i32) {
    %c0_i32 = arith.constant 0 : i32
    %c0_i32_0 = arith.constant 0 : i32
    %c0_i32_1 = arith.constant 0 : i32
    return %c0_i32, %c0_i32_0 : i32, i32
  }
  func.func @transform_20(%arg0: i32) -> (i32, i32) {
    %c0_i32 = arith.constant 0 : i32
    %c0_i32_0 = arith.constant 0 : i32
    %c0_i32_1 = arith.constant 0 : i32
    return %c0_i32, %c0_i32_0 : i32, i32
  }
  func.func @transform_21(%arg0: i32) -> (i32, i32) {
    %c0_i32 = arith.constant 0 : i32
    %c0_i32_0 = arith.constant 0 : i32
    %c0_i32_1 = arith.constant 0 : i32
    return %c0_i32, %c0_i32_0 : i32, i32
  }
  func.func @transform_22(%arg0: i32) -> (i32, i32) {
    %c0_i32 = arith.constant 0 : i32
    %c0_i32_0 = arith.constant 0 : i32
    %c0_i32_1 = arith.constant 0 : i32
    return %c0_i32, %c0_i32_0 : i32, i32
  }
  func.func @transform_23(%arg0: i32) -> (i32, i32) {
    %c0_i32 = arith.constant 0 : i32
    %c0_i32_0 = arith.constant 0 : i32
    %c0_i32_1 = arith.constant 0 : i32
    return %c0_i32, %c0_i32_0 : i32, i32
  }
  func.func @transform_24(%arg0: i32) -> (i32, i32) {
    %c0_i32 = arith.constant 0 : i32
    %c0_i32_0 = arith.constant 0 : i32
    %c0_i32_1 = arith.constant 0 : i32
    return %c0_i32, %c0_i32_0 : i32, i32
  }
  func.func @transform_25(%arg0: i32) -> (i32, i32) {
    %c0_i32 = arith.constant 0 : i32
    %c0_i32_0 = arith.constant 0 : i32
    %c0_i32_1 = arith.constant 0 : i32
    return %c0_i32, %c0_i32_0 : i32, i32
  }
  func.func @transform_26(%arg0: i32) -> (i32, i32) {
    %c0_i32 = arith.constant 0 : i32
    %c0_i32_0 = arith.constant 0 : i32
    %c0_i32_1 = arith.constant 0 : i32
    return %c0_i32, %c0_i32_0 : i32, i32
  }
  func.func @transform_27(%arg0: i32) -> (i32, i32) {
    %c0_i32 = arith.constant 0 : i32
    %c0_i32_0 = arith.constant 0 : i32
    %c0_i32_1 = arith.constant 0 : i32
    return %c0_i32, %c0_i32_0 : i32, i32
  }
  func.func @transform_28(%arg0: i32) -> (i32, i32) {
    %c0_i32 = arith.constant 0 : i32
    %c0_i32_0 = arith.constant 0 : i32
    %c0_i32_1 = arith.constant 0 : i32
    return %c0_i32, %c0_i32_0 : i32, i32
  }
  func.func @transform_29(%arg0: i32) -> (i32, i32, i32) {
    %c0_i32 = arith.constant 0 : i32
    %c0_i32_0 = arith.constant 0 : i32
    %c0_i32_1 = arith.constant 0 : i32
    return %arg0, %c0_i32, %c0_i32_0 : i32, i32, i32
  }
}

</mosaic_0001>

<llo_original>
// kernel: forward.1
$region0: #{forward.1}
  #allocation0 [shape = 'u32[]', space=smem, size = 0x4, offset = 0x4, fixed_abs, tag = 'smem constant byte address 0x4 - core index']
  #allocation1 [shape = 'u32[144,128]{1,0:T(1,128)}', space=vmem, size = 0x12000, scoped, tag = 'internal scratch']
  %s0 = inlined_call_operand.smem [shape: u32[30], index: -1, kind: input, shape index: {}]
  %s1 = sld [smem:[%s0]]
  %s2 = scalar_lea.smem %s0, 1
  %s3 = sld [smem:[%s2]]
  %s4 = scalar_lea.smem %s0, 2
  %s5 = sld [smem:[%s4]]
  %s6 = scalar_lea.smem %s0, 3
  %s7 = sld [smem:[%s6]]
  %s8 = scalar_lea.smem %s0, 4
  %s9 = sld [smem:[%s8]]
  %s10 = scalar_lea.smem %s0, 5
  %s11 = sld [smem:[%s10]]
  %s12 = scalar_lea.smem %s0, 6
  %s13 = sld [smem:[%s12]]
  %s14 = scalar_lea.smem %s0, 7
  %s15 = sld [smem:[%s14]]
  %s16 = scalar_lea.smem %s0, 8
  %s17 = sld [smem:[%s16]]
  %s18 = scalar_lea.smem %s0, 9
  %s19 = sld [smem:[%s18]]
  %s20 = scalar_lea.smem %s0, 10
  %s21 = sld [smem:[%s20]]
  %s22 = scalar_lea.smem %s0, 11
  %s23 = sld [smem:[%s22]]
  %s24 = scalar_lea.smem %s0, 12
  %s25 = sld [smem:[%s24]]
  %s26 = scalar_lea.smem %s0, 13
  %s27 = sld [smem:[%s26]]
  %s28 = scalar_lea.smem %s0, 14
  %s29 = sld [smem:[%s28]]
  %s30 = scalar_lea.smem %s0, 15
  %s31 = sld [smem:[%s30]]
  %s32 = scalar_lea.smem %s0, 16
  %s33 = sld [smem:[%s32]]
  %s34 = scalar_lea.smem %s0, 17
  %s35 = sld [smem:[%s34]]
  %s36 = scalar_lea.smem %s0, 18
  %s37 = sld [smem:[%s36]]
  %s38 = scalar_lea.smem %s0, 19
  %s39 = sld [smem:[%s38]]
  %s40 = scalar_lea.smem %s0, 20
  %s41 = sld [smem:[%s40]]
  %s42 = scalar_lea.smem %s0, 21
  %s43 = sld [smem:[%s42]]
  %s44 = scalar_lea.smem %s0, 22
  %s45 = sld [smem:[%s44]]
  %s46 = scalar_lea.smem %s0, 23
  %s47 = sld [smem:[%s46]]
  %s48 = scalar_lea.smem %s0, 24
  %s49 = sld [smem:[%s48]]
  %s50 = scalar_lea.smem %s0, 25
  %s51 = sld [smem:[%s50]]
  %s52 = scalar_lea.smem %s0, 26
  %s53 = sld [smem:[%s52]]
  %s54 = scalar_lea.smem %s0, 27
  %s55 = sld [smem:[%s54]]
  %s56 = scalar_lea.smem %s0, 28
  %s57 = sld [smem:[%s56]]
  %s58 = scalar_lea.smem %s0, 29
  %s59 = sld [smem:[%s58]]
  %s60 = sld [smem:[#allocation0]]
  $region149: #{forward.1} parent=0
    _
  %s62 = ssub.s32 1, %s60
  %s63 = scalar_select 0, %s62, %s60
  loop: start=0, step=1, limit=4
  $region2: #{forward.1} parent=0 // loop_pre_header
    _
  $region3: #{forward.1} parent=0 // loop_header
    %s65 = sphi 0, %s69
    %p66 = scmp.ge.s32.totalorder %s65, 4
    %s75 = sphi 0, %s77
    %s78 = sphi 0, %s75
    %s79 = sphi 0, %s78
    %s95 = sphi 0, %s79
    %s101 = sphi 0, %s103
    %s104 = sphi 0, %s101
    %s105 = sphi 0, %s104
    %s121 = sphi 0, %s105
    %s127 = sphi 0, %s129
    %s130 = sphi 0, %s127
    %s131 = sphi 0, %s130
    %s147 = sphi 0, %s131
    %s153 = sphi 0, %s155
    %s156 = sphi 0, %s153
    %s157 = sphi 0, %s156
    %s173 = sphi 0, %s157
    %s179 = sphi 0, %s181
    %s182 = sphi 0, %s179
    %s183 = sphi 0, %s182
    %s199 = sphi 0, %s183
    %s203 = sphi 0, %s203
    %s205 = sphi 0, %s203
    %s206 = sphi 0, %s205
    %s220 = sphi 0, %s206
    %s224 = sphi 0, %s224
    %s226 = sphi 0, %s224
    %s227 = sphi 0, %s226
    %s241 = sphi 0, %s227
    %s245 = sphi 0, %s245
    %s247 = sphi 0, %s245
    %s248 = sphi 0, %s247
    %s262 = sphi 0, %s248
    %s266 = sphi 0, %s266
    %s268 = sphi 0, %s266
    %s269 = sphi 0, %s268
    %s283 = sphi 0, %s269
    %s287 = sphi 0, %s287
    %s289 = sphi 0, %s287
    %s290 = sphi 0, %s289
    %s304 = sphi 0, %s290
    %s308 = sphi 0, %s308
    %s310 = sphi 0, %s308
    %s311 = sphi 0, %s310
    %s325 = sphi 0, %s311
    %s329 = sphi 0, %s329
    %s331 = sphi 0, %s329
    %s332 = sphi 0, %s331
    %s346 = sphi 0, %s332
    %s350 = sphi 0, %s350
    %s352 = sphi 0, %s350
    %s353 = sphi 0, %s352
    %s367 = sphi 0, %s353
    %s371 = sphi 0, %s371
    %s373 = sphi 0, %s371
    %s374 = sphi 0, %s373
    %s388 = sphi 0, %s374
    %s392 = sphi 0, %s392
    %s394 = sphi 0, %s392
    %s395 = sphi 0, %s394
    %s409 = sphi 0, %s395
    %s413 = sphi 0, %s413
    %s415 = sphi 0, %s413
    %s416 = sphi 0, %s415
    %s430 = sphi 0, %s416
    %s434 = sphi 0, %s434
    %s436 = sphi 0, %s434
    %s437 = sphi 0, %s436
    %s451 = sphi 0, %s437
    %s455 = sphi 0, %s455
    %s457 = sphi 0, %s455
    %s458 = sphi 0, %s457
    %s472 = sphi 0, %s458
    %s476 = sphi 0, %s476
    %s478 = sphi 0, %s476
    %s479 = sphi 0, %s478
    %s493 = sphi 0, %s479
    %s497 = sphi 0, %s497
    %s499 = sphi 0, %s497
    %s500 = sphi 0, %s499
    %s514 = sphi 0, %s500
    %s518 = sphi 0, %s518
    %s520 = sphi 0, %s518
    %s521 = sphi 0, %s520
    %s535 = sphi 0, %s521
    %s539 = sphi 0, %s539
    %s541 = sphi 0, %s539
    %s542 = sphi 0, %s541
    %s556 = sphi 0, %s542
    %s560 = sphi 0, %s560
    %s562 = sphi 0, %s560
    %s563 = sphi 0, %s562
    %s577 = sphi 0, %s563
    %s581 = sphi 0, %s581
    %s583 = sphi 0, %s581
    %s584 = sphi 0, %s583
    %s598 = sphi 0, %s584
    %s602 = sphi 0, %s602
    %s604 = sphi 0, %s602
    %s605 = sphi 0, %s604
    %s619 = sphi 0, %s605
    %s623 = sphi 0, %s623
    %s625 = sphi 0, %s623
    %s626 = sphi 0, %s625
    %s640 = sphi 0, %s626
    %s644 = sphi 0, %s644
    %s646 = sphi 0, %s644
    %s647 = sphi 0, %s646
    %s661 = sphi 0, %s647
    %s665 = sphi 0, %s665
    %s667 = sphi 0, %s665
    %s668 = sphi 0, %s667
    %s682 = sphi 0, %s668
    %s686 = sphi 0, %s686
    %s688 = sphi 0, %s686
    %s689 = sphi 0, %s688
    %s703 = sphi 0, %s689
    %s709 = sphi 0, %s711
    %s712 = sphi 0, %s709
    %s713 = sphi 0, %s712
    %s729 = sphi 0, %s713
  $region4: #{forward.1} parent=0 // loop_header_branch
    %68 = sbr.rel (%p66) target = $region8
  $region5: #{forward.1} parent=0 // loop_body
    %s70 = ssub.s32 %s65, 1
    %s71 = ssub.s32 %s65, 2
    %s72 = sadd.s32 %s65, 1
    %s73 = ssub.s32 %s65, %s72
    %p74 = scmp.eq.s32.totalorder %s73, 0
    %s76 = sadd.s32 %s75, 1
    %s77 = scalar_select %p74, %s75, %s76
    %p80 = pneg %p74
    %p81 = scmp.eq.s32.totalorder %s65, 1
    %p82 = por %p80, %p81
    %p83 = scmp.ne.s32.totalorder %s75, %s78
    %p84 = scmp.eq.s32.totalorder %s65, 0
    %p85 = por %p83, %p84
    %p86 = scmp.ne.s32.totalorder %s75, %s78
    %p87 = scmp.eq.s32.totalorder %s70, 1
    %p88 = por %p86, %p87
    %p89 = scmp.ne.s32.totalorder %s78, %s79
    %p90 = scmp.eq.s32.totalorder %s70, 0
    %p91 = por %p89, %p90
    %p92 = scmp.ne.s32.totalorder %s78, %s79
    %p93 = scmp.eq.s32.totalorder %s71, 1
    %p94 = por %p92, %p93
    %p96 = scmp.ne.s32.totalorder %s79, %s95
    %p97 = scmp.eq.s32.totalorder %s71, 0
    %p98 = por %p96, %p97
    %s99 = ssub.s32 %s65, %s72
    %p100 = scmp.eq.s32.totalorder %s99, 0
    %s102 = sadd.s32 %s101, 1
    %s103 = scalar_select %p100, %s101, %s102
    %p106 = pneg %p100
    %p107 = scmp.eq.s32.totalorder %s65, 1
    %p108 = por %p106, %p107
    %p109 = scmp.ne.s32.totalorder %s101, %s104
    %p110 = scmp.eq.s32.totalorder %s65, 0
    %p111 = por %p109, %p110
    %p112 = scmp.ne.s32.totalorder %s101, %s104
    %p113 = scmp.eq.s32.totalorder %s70, 1
    %p114 = por %p112, %p113
    %p115 = scmp.ne.s32.totalorder %s104, %s105
    %p116 = scmp.eq.s32.totalorder %s70, 0
    %p117 = por %p115, %p116
    %p118 = scmp.ne.s32.totalorder %s104, %s105
    %p119 = scmp.eq.s32.totalorder %s71, 1
    %p120 = por %p118, %p119
    %p122 = scmp.ne.s32.totalorder %s105, %s121
    %p123 = scmp.eq.s32.totalorder %s71, 0
    %p124 = por %p122, %p123
    %s125 = ssub.s32 %s65, %s72
    %p126 = scmp.eq.s32.totalorder %s125, 0
    %s128 = sadd.s32 %s127, 1
    %s129 = scalar_select %p126, %s127, %s128
    %p132 = pneg %p126
    %p133 = scmp.eq.s32.totalorder %s65, 1
    %p134 = por %p132, %p133
    %p135 = scmp.ne.s32.totalorder %s127, %s130
    %p136 = scmp.eq.s32.totalorder %s65, 0
    %p137 = por %p135, %p136
    %p138 = scmp.ne.s32.totalorder %s127, %s130
    %p139 = scmp.eq.s32.totalorder %s70, 1
    %p140 = por %p138, %p139
    %p141 = scmp.ne.s32.totalorder %s130, %s131
    %p142 = scmp.eq.s32.totalorder %s70, 0
    %p143 = por %p141, %p142
    %p144 = scmp.ne.s32.totalorder %s130, %s131
    %p145 = scmp.eq.s32.totalorder %s71, 1
    %p146 = por %p144, %p145
    %p148 = scmp.ne.s32.totalorder %s131, %s147
    %p149 = scmp.eq.s32.totalorder %s71, 0
    %p150 = por %p148, %p149
    %s151 = ssub.s32 %s65, %s72
    %p152 = scmp.eq.s32.totalorder %s151, 0
    %s154 = sadd.s32 %s153, 1
    %s155 = scalar_select %p152, %s153, %s154
    %p158 = pneg %p152
    %p159 = scmp.eq.s32.totalorder %s65, 1
    %p160 = por %p158, %p159
    %p161 = scmp.ne.s32.totalorder %s153, %s156
    %p162 = scmp.eq.s32.totalorder %s65, 0
    %p163 = por %p161, %p162
    %p164 = scmp.ne.s32.totalorder %s153, %s156
    %p165 = scmp.eq.s32.totalorder %s70, 1
    %p166 = por %p164, %p165
    %p167 = scmp.ne.s32.totalorder %s156, %s157
    %p168 = scmp.eq.s32.totalorder %s70, 0
    %p169 = por %p167, %p168
    %p170 = scmp.ne.s32.totalorder %s156, %s157
    %p171 = scmp.eq.s32.totalorder %s71, 1
    %p172 = por %p170, %p171
    %p174 = scmp.ne.s32.totalorder %s157, %s173
    %p175 = scmp.eq.s32.totalorder %s71, 0
    %p176 = por %p174, %p175
    %s177 = ssub.s32 %s65, %s72
    %p178 = scmp.eq.s32.totalorder %s177, 0
    %s180 = sadd.s32 %s179, 1
    %s181 = scalar_select %p178, %s179, %s180
    %p184 = pneg %p178
    %p185 = scmp.eq.s32.totalorder %s65, 1
    %p186 = por %p184, %p185
    %p187 = scmp.ne.s32.totalorder %s179, %s182
    %p188 = scmp.eq.s32.totalorder %s65, 0
    %p189 = por %p187, %p188
    %p190 = scmp.ne.s32.totalorder %s179, %s182
    %p191 = scmp.eq.s32.totalorder %s70, 1
    %p192 = por %p190, %p191
    %p193 = scmp.ne.s32.totalorder %s182, %s183
    %p194 = scmp.eq.s32.totalorder %s70, 0
    %p195 = por %p193, %p194
    %p196 = scmp.ne.s32.totalorder %s182, %s183
    %p197 = scmp.eq.s32.totalorder %s71, 1
    %p198 = por %p196, %p197
    %p200 = scmp.ne.s32.totalorder %s183, %s199
    %p201 = scmp.eq.s32.totalorder %s71, 0
    %p202 = por %p200, %p201
    %s204 = sadd.s32 %s203, 1
    %p207 = scmp.eq.s32.totalorder %s65, 1
    %p208 = scmp.ne.s32.totalorder %s203, %s205
    %p209 = scmp.eq.s32.totalorder %s65, 0
    %p210 = por %p208, %p209
    %p211 = scmp.ne.s32.totalorder %s203, %s205
    %p212 = scmp.eq.s32.totalorder %s70, 1
    %p213 = por %p211, %p212
    %p214 = scmp.ne.s32.totalorder %s205, %s206
    %p215 = scmp.eq.s32.totalorder %s70, 0
    %p216 = por %p214, %p215
    %p217 = scmp.ne.s32.totalorder %s205, %s206
    %p218 = scmp.eq.s32.totalorder %s71, 1
    %p219 = por %p217, %p218
    %p221 = scmp.ne.s32.totalorder %s206, %s220
    %p222 = scmp.eq.s32.totalorder %s71, 0
    %p223 = por %p221, %p222
    %s225 = sadd.s32 %s224, 1
    %p228 = scmp.eq.s32.totalorder %s65, 1
    %p229 = scmp.ne.s32.totalorder %s224, %s226
    %p230 = scmp.eq.s32.totalorder %s65, 0
    %p231 = por %p229, %p230
    %p232 = scmp.ne.s32.totalorder %s224, %s226
    %p233 = scmp.eq.s32.totalorder %s70, 1
    %p234 = por %p232, %p233
    %p235 = scmp.ne.s32.totalorder %s226, %s227
    %p236 = scmp.eq.s32.totalorder %s70, 0
    %p237 = por %p235, %p236
    %p238 = scmp.ne.s32.totalorder %s226, %s227
    %p239 = scmp.eq.s32.totalorder %s71, 1
    %p240 = por %p238, %p239
    %p242 = scmp.ne.s32.totalorder %s227, %s241
    %p243 = scmp.eq.s32.totalorder %s71, 0
    %p244 = por %p242, %p243
    %s246 = sadd.s32 %s245, 1
    %p249 = scmp.eq.s32.totalorder %s65, 1
    %p250 = scmp.ne.s32.totalorder %s245, %s247
    %p251 = scmp.eq.s32.totalorder %s65, 0
    %p252 = por %p250, %p251
    %p253 = scmp.ne.s32.totalorder %s245, %s247
    %p254 = scmp.eq.s32.totalorder %s70, 1
    %p255 = por %p253, %p254
    %p256 = scmp.ne.s32.totalorder %s247, %s248
    %p257 = scmp.eq.s32.totalorder %s70, 0
    %p258 = por %p256, %p257
    %p259 = scmp.ne.s32.totalorder %s247, %s248
    %p260 = scmp.eq.s32.totalorder %s71, 1
    %p261 = por %p259, %p260
    %p263 = scmp.ne.s32.totalorder %s248, %s262
    %p264 = scmp.eq.s32.totalorder %s71, 0
    %p265 = por %p263, %p264
    %s267 = sadd.s32 %s266, 1
    %p270 = scmp.eq.s32.totalorder %s65, 1
    %p271 = scmp.ne.s32.totalorder %s266, %s268
    %p272 = scmp.eq.s32.totalorder %s65, 0
    %p273 = por %p271, %p272
    %p274 = scmp.ne.s32.totalorder %s266, %s268
    %p275 = scmp.eq.s32.totalorder %s70, 1
    %p276 = por %p274, %p275
    %p277 = scmp.ne.s32.totalorder %s268, %s269
    %p278 = scmp.eq.s32.totalorder %s70, 0
    %p279 = por %p277, %p278
    %p280 = scmp.ne.s32.totalorder %s268, %s269
    %p281 = scmp.eq.s32.totalorder %s71, 1
    %p282 = por %p280, %p281
    %p284 = scmp.ne.s32.totalorder %s269, %s283
    %p285 = scmp.eq.s32.totalorder %s71, 0
    %p286 = por %p284, %p285
    %s288 = sadd.s32 %s287, 1
    %p291 = scmp.eq.s32.totalorder %s65, 1
    %p292 = scmp.ne.s32.totalorder %s287, %s289
    %p293 = scmp.eq.s32.totalorder %s65, 0
    %p294 = por %p292, %p293
    %p295 = scmp.ne.s32.totalorder %s287, %s289
    %p296 = scmp.eq.s32.totalorder %s70, 1
    %p297 = por %p295, %p296
    %p298 = scmp.ne.s32.totalorder %s289, %s290
    %p299 = scmp.eq.s32.totalorder %s70, 0
    %p300 = por %p298, %p299
    %p301 = scmp.ne.s32.totalorder %s289, %s290
    %p302 = scmp.eq.s32.totalorder %s71, 1
    %p303 = por %p301, %p302
    %p305 = scmp.ne.s32.totalorder %s290, %s304
    %p306 = scmp.eq.s32.totalorder %s71, 0
    %p307 = por %p305, %p306
    %s309 = sadd.s32 %s308, 1
    %p312 = scmp.eq.s32.totalorder %s65, 1
    %p313 = scmp.ne.s32.totalorder %s308, %s310
    %p314 = scmp.eq.s32.totalorder %s65, 0
    %p315 = por %p313, %p314
    %p316 = scmp.ne.s32.totalorder %s308, %s310
    %p317 = scmp.eq.s32.totalorder %s70, 1
    %p318 = por %p316, %p317
    %p319 = scmp.ne.s32.totalorder %s310, %s311
    %p320 = scmp.eq.s32.totalorder %s70, 0
    %p321 = por %p319, %p320
    %p322 = scmp.ne.s32.totalorder %s310, %s311
    %p323 = scmp.eq.s32.totalorder %s71, 1
    %p324 = por %p322, %p323
    %p326 = scmp.ne.s32.totalorder %s311, %s325
    %p327 = scmp.eq.s32.totalorder %s71, 0
    %p328 = por %p326, %p327
    %s330 = sadd.s32 %s329, 1
    %p333 = scmp.eq.s32.totalorder %s65, 1
    %p334 = scmp.ne.s32.totalorder %s329, %s331
    %p335 = scmp.eq.s32.totalorder %s65, 0
    %p336 = por %p334, %p335
    %p337 = scmp.ne.s32.totalorder %s329, %s331
    %p338 = scmp.eq.s32.totalorder %s70, 1
    %p339 = por %p337, %p338
    %p340 = scmp.ne.s32.totalorder %s331, %s332
    %p341 = scmp.eq.s32.totalorder %s70, 0
    %p342 = por %p340, %p341
    %p343 = scmp.ne.s32.totalorder %s331, %s332
    %p344 = scmp.eq.s32.totalorder %s71, 1
    %p345 = por %p343, %p344
    %p347 = scmp.ne.s32.totalorder %s332, %s346
    %p348 = scmp.eq.s32.totalorder %s71, 0
    %p349 = por %p347, %p348
    %s351 = sadd.s32 %s350, 1
    %p354 = scmp.eq.s32.totalorder %s65, 1
    %p355 = scmp.ne.s32.totalorder %s350, %s352
    %p356 = scmp.eq.s32.totalorder %s65, 0
    %p357 = por %p355, %p356
    %p358 = scmp.ne.s32.totalorder %s350, %s352
    %p359 = scmp.eq.s32.totalorder %s70, 1
    %p360 = por %p358, %p359
    %p361 = scmp.ne.s32.totalorder %s352, %s353
    %p362 = scmp.eq.s32.totalorder %s70, 0
    %p363 = por %p361, %p362
    %p364 = scmp.ne.s32.totalorder %s352, %s353
    %p365 = scmp.eq.s32.totalorder %s71, 1
    %p366 = por %p364, %p365
    %p368 = scmp.ne.s32.totalorder %s353, %s367
    %p369 = scmp.eq.s32.totalorder %s71, 0
    %p370 = por %p368, %p369
    %s372 = sadd.s32 %s371, 1
    %p375 = scmp.eq.s32.totalorder %s65, 1
    %p376 = scmp.ne.s32.totalorder %s371, %s373
    %p377 = scmp.eq.s32.totalorder %s65, 0
    %p378 = por %p376, %p377
    %p379 = scmp.ne.s32.totalorder %s371, %s373
    %p380 = scmp.eq.s32.totalorder %s70, 1
    %p381 = por %p379, %p380
    %p382 = scmp.ne.s32.totalorder %s373, %s374
    %p383 = scmp.eq.s32.totalorder %s70, 0
    %p384 = por %p382, %p383
    %p385 = scmp.ne.s32.totalorder %s373, %s374
    %p386 = scmp.eq.s32.totalorder %s71, 1
    %p387 = por %p385, %p386
    %p389 = scmp.ne.s32.totalorder %s374, %s388
    %p390 = scmp.eq.s32.totalorder %s71, 0
    %p391 = por %p389, %p390
    %s393 = sadd.s32 %s392, 1
    %p396 = scmp.eq.s32.totalorder %s65, 1
    %p397 = scmp.ne.s32.totalorder %s392, %s394
    %p398 = scmp.eq.s32.totalorder %s65, 0
    %p399 = por %p397, %p398
    %p400 = scmp.ne.s32.totalorder %s392, %s394
    %p401 = scmp.eq.s32.totalorder %s70, 1
    %p402 = por %p400, %p401
    %p403 = scmp.ne.s32.totalorder %s394, %s395
    %p404 = scmp.eq.s32.totalorder %s70, 0
    %p405 = por %p403, %p404
    %p406 = scmp.ne.s32.totalorder %s394, %s395
    %p407 = scmp.eq.s32.totalorder %s71, 1
    %p408 = por %p406, %p407
    %p410 = scmp.ne.s32.totalorder %s395, %s409
    %p411 = scmp.eq.s32.totalorder %s71, 0
    %p412 = por %p410, %p411
    %s414 = sadd.s32 %s413, 1
    %p417 = scmp.eq.s32.totalorder %s65, 1
    %p418 = scmp.ne.s32.totalorder %s413, %s415
    %p419 = scmp.eq.s32.totalorder %s65, 0
    %p420 = por %p418, %p419
    %p421 = scmp.ne.s32.totalorder %s413, %s415
    %p422 = scmp.eq.s32.totalorder %s70, 1
    %p423 = por %p421, %p422
    %p424 = scmp.ne.s32.totalorder %s415, %s416
    %p425 = scmp.eq.s32.totalorder %s70, 0
    %p426 = por %p424, %p425
    %p427 = scmp.ne.s32.totalorder %s415, %s416
    %p428 = scmp.eq.s32.totalorder %s71, 1
    %p429 = por %p427, %p428
    %p431 = scmp.ne.s32.totalorder %s416, %s430
    %p432 = scmp.eq.s32.totalorder %s71, 0
    %p433 = por %p431, %p432
    %s435 = sadd.s32 %s434, 1
    %p438 = scmp.eq.s32.totalorder %s65, 1
    %p439 = scmp.ne.s32.totalorder %s434, %s436
    %p440 = scmp.eq.s32.totalorder %s65, 0
    %p441 = por %p439, %p440
    %p442 = scmp.ne.s32.totalorder %s434, %s436
    %p443 = scmp.eq.s32.totalorder %s70, 1
    %p444 = por %p442, %p443
    %p445 = scmp.ne.s32.totalorder %s436, %s437
    %p446 = scmp.eq.s32.totalorder %s70, 0
    %p447 = por %p445, %p446
    %p448 = scmp.ne.s32.totalorder %s436, %s437
    %p449 = scmp.eq.s32.totalorder %s71, 1
    %p450 = por %p448, %p449
    %p452 = scmp.ne.s32.totalorder %s437, %s451
    %p453 = scmp.eq.s32.totalorder %s71, 0
    %p454 = por %p452, %p453
    %s456 = sadd.s32 %s455, 1
    %p459 = scmp.eq.s32.totalorder %s65, 1
    %p460 = scmp.ne.s32.totalorder %s455, %s457
    %p461 = scmp.eq.s32.totalorder %s65, 0
    %p462 = por %p460, %p461
    %p463 = scmp.ne.s32.totalorder %s455, %s457
    %p464 = scmp.eq.s32.totalorder %s70, 1
    %p465 = por %p463, %p464
    %p466 = scmp.ne.s32.totalorder %s457, %s458
    %p467 = scmp.eq.s32.totalorder %s70, 0
    %p468 = por %p466, %p467
    %p469 = scmp.ne.s32.totalorder %s457, %s458
    %p470 = scmp.eq.s32.totalorder %s71, 1
    %p471 = por %p469, %p470
    %p473 = scmp.ne.s32.totalorder %s458, %s472
    %p474 = scmp.eq.s32.totalorder %s71, 0
    %p475 = por %p473, %p474
    %s477 = sadd.s32 %s476, 1
    %p480 = scmp.eq.s32.totalorder %s65, 1
    %p481 = scmp.ne.s32.totalorder %s476, %s478
    %p482 = scmp.eq.s32.totalorder %s65, 0
    %p483 = por %p481, %p482
    %p484 = scmp.ne.s32.totalorder %s476, %s478
    %p485 = scmp.eq.s32.totalorder %s70, 1
    %p486 = por %p484, %p485
    %p487 = scmp.ne.s32.totalorder %s478, %s479
    %p488 = scmp.eq.s32.totalorder %s70, 0
    %p489 = por %p487, %p488
    %p490 = scmp.ne.s32.totalorder %s478, %s479
    %p491 = scmp.eq.s32.totalorder %s71, 1
    %p492 = por %p490, %p491
    %p494 = scmp.ne.s32.totalorder %s479, %s493
    %p495 = scmp.eq.s32.totalorder %s71, 0
    %p496 = por %p494, %p495
    %s498 = sadd.s32 %s497, 1
    %p501 = scmp.eq.s32.totalorder %s65, 1
    %p502 = scmp.ne.s32.totalorder %s497, %s499
    %p503 = scmp.eq.s32.totalorder %s65, 0
    %p504 = por %p502, %p503
    %p505 = scmp.ne.s32.totalorder %s497, %s499
    %p506 = scmp.eq.s32.totalorder %s70, 1
    %p507 = por %p505, %p506
    %p508 = scmp.ne.s32.totalorder %s499, %s500
    %p509 = scmp.eq.s32.totalorder %s70, 0
    %p510 = por %p508, %p509
    %p511 = scmp.ne.s32.totalorder %s499, %s500
    %p512 = scmp.eq.s32.totalorder %s71, 1
    %p513 = por %p511, %p512
    %p515 = scmp.ne.s32.totalorder %s500, %s514
    %p516 = scmp.eq.s32.totalorder %s71, 0
    %p517 = por %p515, %p516
    %s519 = sadd.s32 %s518, 1
    %p522 = scmp.eq.s32.totalorder %s65, 1
    %p523 = scmp.ne.s32.totalorder %s518, %s520
    %p524 = scmp.eq.s32.totalorder %s65, 0
    %p525 = por %p523, %p524
    %p526 = scmp.ne.s32.totalorder %s518, %s520
    %p527 = scmp.eq.s32.totalorder %s70, 1
    %p528 = por %p526, %p527
    %p529 = scmp.ne.s32.totalorder %s520, %s521
    %p530 = scmp.eq.s32.totalorder %s70, 0
    %p531 = por %p529, %p530
    %p532 = scmp.ne.s32.totalorder %s520, %s521
    %p533 = scmp.eq.s32.totalorder %s71, 1
    %p534 = por %p532, %p533
    %p536 = scmp.ne.s32.totalorder %s521, %s535
    %p537 = scmp.eq.s32.totalorder %s71, 0
    %p538 = por %p536, %p537
    %s540 = sadd.s32 %s539, 1
    %p543 = scmp.eq.s32.totalorder %s65, 1
    %p544 = scmp.ne.s32.totalorder %s539, %s541
    %p545 = scmp.eq.s32.totalorder %s65, 0
    %p546 = por %p544, %p545
    %p547 = scmp.ne.s32.totalorder %s539, %s541
    %p548 = scmp.eq.s32.totalorder %s70, 1
    %p549 = por %p547, %p548
    %p550 = scmp.ne.s32.totalorder %s541, %s542
    %p551 = scmp.eq.s32.totalorder %s70, 0
    %p552 = por %p550, %p551
    %p553 = scmp.ne.s32.totalorder %s541, %s542
    %p554 = scmp.eq.s32.totalorder %s71, 1
    %p555 = por %p553, %p554
    %p557 = scmp.ne.s32.totalorder %s542, %s556
    %p558 = scmp.eq.s32.totalorder %s71, 0
    %p559 = por %p557, %p558
    %s561 = sadd.s32 %s560, 1
    %p564 = scmp.eq.s32.totalorder %s65, 1
    %p565 = scmp.ne.s32.totalorder %s560, %s562
    %p566 = scmp.eq.s32.totalorder %s65, 0
    %p567 = por %p565, %p566
    %p568 = scmp.ne.s32.totalorder %s560, %s562
    %p569 = scmp.eq.s32.totalorder %s70, 1
    %p570 = por %p568, %p569
    %p571 = scmp.ne.s32.totalorder %s562, %s563
    %p572 = scmp.eq.s32.totalorder %s70, 0
    %p573 = por %p571, %p572
    %p574 = scmp.ne.s32.totalorder %s562, %s563
    %p575 = scmp.eq.s32.totalorder %s71, 1
    %p576 = por %p574, %p575
    %p578 = scmp.ne.s32.totalorder %s563, %s577
    %p579 = scmp.eq.s32.totalorder %s71, 0
    %p580 = por %p578, %p579
    %s582 = sadd.s32 %s581, 1
    %p585 = scmp.eq.s32.totalorder %s65, 1
    %p586 = scmp.ne.s32.totalorder %s581, %s583
    %p587 = scmp.eq.s32.totalorder %s65, 0
    %p588 = por %p586, %p587
    %p589 = scmp.ne.s32.totalorder %s581, %s583
    %p590 = scmp.eq.s32.totalorder %s70, 1
    %p591 = por %p589, %p590
    %p592 = scmp.ne.s32.totalorder %s583, %s584
    %p593 = scmp.eq.s32.totalorder %s70, 0
    %p594 = por %p592, %p593
    %p595 = scmp.ne.s32.totalorder %s583, %s584
    %p596 = scmp.eq.s32.totalorder %s71, 1
    %p597 = por %p595, %p596
    %p599 = scmp.ne.s32.totalorder %s584, %s598
    %p600 = scmp.eq.s32.totalorder %s71, 0
    %p601 = por %p599, %p600
    %s603 = sadd.s32 %s602, 1
    %p606 = scmp.eq.s32.totalorder %s65, 1
    %p607 = scmp.ne.s32.totalorder %s602, %s604
    %p608 = scmp.eq.s32.totalorder %s65, 0
    %p609 = por %p607, %p608
    %p610 = scmp.ne.s32.totalorder %s602, %s604
    %p611 = scmp.eq.s32.totalorder %s70, 1
    %p612 = por %p610, %p611
    %p613 = scmp.ne.s32.totalorder %s604, %s605
    %p614 = scmp.eq.s32.totalorder %s70, 0
    %p615 = por %p613, %p614
    %p616 = scmp.ne.s32.totalorder %s604, %s605
    %p617 = scmp.eq.s32.totalorder %s71, 1
    %p618 = por %p616, %p617
    %p620 = scmp.ne.s32.totalorder %s605, %s619
    %p621 = scmp.eq.s32.totalorder %s71, 0
    %p622 = por %p620, %p621
    %s624 = sadd.s32 %s623, 1
    %p627 = scmp.eq.s32.totalorder %s65, 1
    %p628 = scmp.ne.s32.totalorder %s623, %s625
    %p629 = scmp.eq.s32.totalorder %s65, 0
    %p630 = por %p628, %p629
    %p631 = scmp.ne.s32.totalorder %s623, %s625
    %p632 = scmp.eq.s32.totalorder %s70, 1
    %p633 = por %p631, %p632
    %p634 = scmp.ne.s32.totalorder %s625, %s626
    %p635 = scmp.eq.s32.totalorder %s70, 0
    %p636 = por %p634, %p635
    %p637 = scmp.ne.s32.totalorder %s625, %s626
    %p638 = scmp.eq.s32.totalorder %s71, 1
    %p639 = por %p637, %p638
    %p641 = scmp.ne.s32.totalorder %s626, %s640
    %p642 = scmp.eq.s32.totalorder %s71, 0
    %p643 = por %p641, %p642
    %s645 = sadd.s32 %s644, 1
    %p648 = scmp.eq.s32.totalorder %s65, 1
    %p649 = scmp.ne.s32.totalorder %s644, %s646
    %p650 = scmp.eq.s32.totalorder %s65, 0
    %p651 = por %p649, %p650
    %p652 = scmp.ne.s32.totalorder %s644, %s646
    %p653 = scmp.eq.s32.totalorder %s70, 1
    %p654 = por %p652, %p653
    %p655 = scmp.ne.s32.totalorder %s646, %s647
    %p656 = scmp.eq.s32.totalorder %s70, 0
    %p657 = por %p655, %p656
    %p658 = scmp.ne.s32.totalorder %s646, %s647
    %p659 = scmp.eq.s32.totalorder %s71, 1
    %p660 = por %p658, %p659
    %p662 = scmp.ne.s32.totalorder %s647, %s661
    %p663 = scmp.eq.s32.totalorder %s71, 0
    %p664 = por %p662, %p663
    %s666 = sadd.s32 %s665, 1
    %p669 = scmp.eq.s32.totalorder %s65, 1
    %p670 = scmp.ne.s32.totalorder %s665, %s667
    %p671 = scmp.eq.s32.totalorder %s65, 0
    %p672 = por %p670, %p671
    %p673 = scmp.ne.s32.totalorder %s665, %s667
    %p674 = scmp.eq.s32.totalorder %s70, 1
    %p675 = por %p673, %p674
    %p676 = scmp.ne.s32.totalorder %s667, %s668
    %p677 = scmp.eq.s32.totalorder %s70, 0
    %p678 = por %p676, %p677
    %p679 = scmp.ne.s32.totalorder %s667, %s668
    %p680 = scmp.eq.s32.totalorder %s71, 1
    %p681 = por %p679, %p680
    %p683 = scmp.ne.s32.totalorder %s668, %s682
    %p684 = scmp.eq.s32.totalorder %s71, 0
    %p685 = por %p683, %p684
    %s687 = sadd.s32 %s686, 1
    %p690 = scmp.eq.s32.totalorder %s65, 1
    %p691 = scmp.ne.s32.totalorder %s686, %s688
    %p692 = scmp.eq.s32.totalorder %s65, 0
    %p693 = por %p691, %p692
    %p694 = scmp.ne.s32.totalorder %s686, %s688
    %p695 = scmp.eq.s32.totalorder %s70, 1
    %p696 = por %p694, %p695
    %p697 = scmp.ne.s32.totalorder %s688, %s689
    %p698 = scmp.eq.s32.totalorder %s70, 0
    %p699 = por %p697, %p698
    %p700 = scmp.ne.s32.totalorder %s688, %s689
    %p701 = scmp.eq.s32.totalorder %s71, 1
    %p702 = por %p700, %p701
    %p704 = scmp.ne.s32.totalorder %s689, %s703
    %p705 = scmp.eq.s32.totalorder %s71, 0
    %p706 = por %p704, %p705
    %s707 = ssub.s32 %s65, %s72
    %p708 = scmp.eq.s32.totalorder %s707, 0
    %s710 = sadd.s32 %s709, 1
    %s711 = scalar_select %p708, %s709, %s710
    %p714 = pneg %p708
    %p715 = scmp.eq.s32.totalorder %s65, 1
    %p716 = por %p714, %p715
    %p717 = scmp.ne.s32.totalorder %s709, %s712
    %p718 = scmp.eq.s32.totalorder %s65, 0
    %p719 = por %p717, %p718
    %p720 = scmp.ne.s32.totalorder %s709, %s712
    %p721 = scmp.eq.s32.totalorder %s70, 1
    %p722 = por %p720, %p721
    %p723 = scmp.ne.s32.totalorder %s712, %s713
    %p724 = scmp.eq.s32.totalorder %s70, 0
    %p725 = por %p723, %p724
    %p726 = scmp.ne.s32.totalorder %s712, %s713
    %p727 = scmp.eq.s32.totalorder %s71, 1
    %p728 = por %p726, %p727
    %p730 = scmp.ne.s32.totalorder %s713, %s729
    %p731 = scmp.eq.s32.totalorder %s71, 0
    %p732 = por %p730, %p731
    %p733 = scmp.le.s32.totalorder 1, %s65
    %p734 = scmp.lt.s32.totalorder %s65, 3
    %p735 = pnand %p733, %p734
    %p736 = pneg %p735
    // Predicated region
    $region9: #{forward.1} parent=5 // pred_check
      _
    $region10: #{forward.1} parent=5 // pred_check_branch
      %738 = sbr.rel (%p735) target = $region12
    $region11: #{forward.1} parent=5 // pred_region
      %s739 = ssub.s32 %s65, 1
      // Predicated region
      $region13: #{forward.1} parent=11 // pred_check
        %p740 = pneg %p216
      $region14: #{forward.1} parent=11 // pred_check_branch
        %742 = sbr.rel (%p740) target = $region16
      $region15: #{forward.1} parent=11 // pred_region
        _
      $region16: #{forward.1} parent=11 // pred_fallthru
        _
      // Predicated region
      $region17: #{forward.1} parent=11 // pred_check
        %p743 = pneg %p237
      $region18: #{forward.1} parent=11 // pred_check_branch
        %745 = sbr.rel (%p743) target = $region20
      $region19: #{forward.1} parent=11 // pred_region
        _
      $region20: #{forward.1} parent=11 // pred_fallthru
        _
      // Predicated region
      $region21: #{forward.1} parent=11 // pred_check
        %p746 = pneg %p258
      $region22: #{forward.1} parent=11 // pred_check_branch
        %748 = sbr.rel (%p746) target = $region24
      $region23: #{forward.1} parent=11 // pred_region
        _
      $region24: #{forward.1} parent=11 // pred_fallthru
        _
      // Predicated region
      $region25: #{forward.1} parent=11 // pred_check
        %p749 = pneg %p279
      $region26: #{forward.1} parent=11 // pred_check_branch
        %751 = sbr.rel (%p749) target = $region28
      $region27: #{forward.1} parent=11 // pred_region
        _
      $region28: #{forward.1} parent=11 // pred_fallthru
        _
      // Predicated region
      $region29: #{forward.1} parent=11 // pred_check
        %p752 = pneg %p300
      $region30: #{forward.1} parent=11 // pred_check_branch
        %754 = sbr.rel (%p752) target = $region32
      $region31: #{forward.1} parent=11 // pred_region
        _
      $region32: #{forward.1} parent=11 // pred_fallthru
        _
      // Predicated region
      $region33: #{forward.1} parent=11 // pred_check
        %p755 = pneg %p321
      $region34: #{forward.1} parent=11 // pred_check_branch
        %757 = sbr.rel (%p755) target = $region36
      $region35: #{forward.1} parent=11 // pred_region
        _
      $region36: #{forward.1} parent=11 // pred_fallthru
        _
      // Predicated region
      $region37: #{forward.1} parent=11 // pred_check
        %p758 = pneg %p342
      $region38: #{forward.1} parent=11 // pred_check_branch
        %760 = sbr.rel (%p758) target = $region40
      $region39: #{forward.1} parent=11 // pred_region
        _
      $region40: #{forward.1} parent=11 // pred_fallthru
        _
      // Predicated region
      $region41: #{forward.1} parent=11 // pred_check
        %p761 = pneg %p363
      $region42: #{forward.1} parent=11 // pred_check_branch
        %763 = sbr.rel (%p761) target = $region44
      $region43: #{forward.1} parent=11 // pred_region
        _
      $region44: #{forward.1} parent=11 // pred_fallthru
        _
      // Predicated region
      $region45: #{forward.1} parent=11 // pred_check
        %p764 = pneg %p384
      $region46: #{forward.1} parent=11 // pred_check_branch
        %766 = sbr.rel (%p764) target = $region48
      $region47: #{forward.1} parent=11 // pred_region
        _
      $region48: #{forward.1} parent=11 // pred_fallthru
        _
      // Predicated region
      $region49: #{forward.1} parent=11 // pred_check
        %p767 = pneg %p405
      $region50: #{forward.1} parent=11 // pred_check_branch
        %769 = sbr.rel (%p767) target = $region52
      $region51: #{forward.1} parent=11 // pred_region
        _
      $region52: #{forward.1} parent=11 // pred_fallthru
        _
      // Predicated region
      $region53: #{forward.1} parent=11 // pred_check
        %p770 = pneg %p426
      $region54: #{forward.1} parent=11 // pred_check_branch
        %772 = sbr.rel (%p770) target = $region56
      $region55: #{forward.1} parent=11 // pred_region
        _
      $region56: #{forward.1} parent=11 // pred_fallthru
        _
      // Predicated region
      $region57: #{forward.1} parent=11 // pred_check
        %p773 = pneg %p447
      $region58: #{forward.1} parent=11 // pred_check_branch
        %775 = sbr.rel (%p773) target = $region60
      $region59: #{forward.1} parent=11 // pred_region
        _
      $region60: #{forward.1} parent=11 // pred_fallthru
        _
      // Predicated region
      $region61: #{forward.1} parent=11 // pred_check
        %p776 = pneg %p468
      $region62: #{forward.1} parent=11 // pred_check_branch
        %778 = sbr.rel (%p776) target = $region64
      $region63: #{forward.1} parent=11 // pred_region
        _
      $region64: #{forward.1} parent=11 // pred_fallthru
        _
      // Predicated region
      $region65: #{forward.1} parent=11 // pred_check
        %p779 = pneg %p489
      $region66: #{forward.1} parent=11 // pred_check_branch
        %781 = sbr.rel (%p779) target = $region68
      $region67: #{forward.1} parent=11 // pred_region
        _
      $region68: #{forward.1} parent=11 // pred_fallthru
        _
      // Predicated region
      $region69: #{forward.1} parent=11 // pred_check
        %p782 = pneg %p510
      $region70: #{forward.1} parent=11 // pred_check_branch
        %784 = sbr.rel (%p782) target = $region72
      $region71: #{forward.1} parent=11 // pred_region
        _
      $region72: #{forward.1} parent=11 // pred_fallthru
        _
      // Predicated region
      $region73: #{forward.1} parent=11 // pred_check
        %p785 = pneg %p531
      $region74: #{forward.1} parent=11 // pred_check_branch
        %787 = sbr.rel (%p785) target = $region76
      $region75: #{forward.1} parent=11 // pred_region
        _
      $region76: #{forward.1} parent=11 // pred_fallthru
        _
      // Predicated region
      $region77: #{forward.1} parent=11 // pred_check
        %p788 = pneg %p552
      $region78: #{forward.1} parent=11 // pred_check_branch
        %790 = sbr.rel (%p788) target = $region80
      $region79: #{forward.1} parent=11 // pred_region
        _
      $region80: #{forward.1} parent=11 // pred_fallthru
        _
      // Predicated region
      $region81: #{forward.1} parent=11 // pred_check
        %p791 = pneg %p573
      $region82: #{forward.1} parent=11 // pred_check_branch
        %793 = sbr.rel (%p791) target = $region84
      $region83: #{forward.1} parent=11 // pred_region
        _
      $region84: #{forward.1} parent=11 // pred_fallthru
        _
      // Predicated region
      $region85: #{forward.1} parent=11 // pred_check
        %p794 = pneg %p594
      $region86: #{forward.1} parent=11 // pred_check_branch
        %796 = sbr.rel (%p794) target = $region88
      $region87: #{forward.1} parent=11 // pred_region
        _
      $region88: #{forward.1} parent=11 // pred_fallthru
        _
      // Predicated region
      $region89: #{forward.1} parent=11 // pred_check
        %p797 = pneg %p615
      $region90: #{forward.1} parent=11 // pred_check_branch
        %799 = sbr.rel (%p797) target = $region92
      $region91: #{forward.1} parent=11 // pred_region
        _
      $region92: #{forward.1} parent=11 // pred_fallthru
        _
      // Predicated region
      $region93: #{forward.1} parent=11 // pred_check
        %p800 = pneg %p636
      $region94: #{forward.1} parent=11 // pred_check_branch
        %802 = sbr.rel (%p800) target = $region96
      $region95: #{forward.1} parent=11 // pred_region
        _
      $region96: #{forward.1} parent=11 // pred_fallthru
        _
      // Predicated region
      $region97: #{forward.1} parent=11 // pred_check
        %p803 = pneg %p657
      $region98: #{forward.1} parent=11 // pred_check_branch
        %805 = sbr.rel (%p803) target = $region100
      $region99: #{forward.1} parent=11 // pred_region
        _
      $region100: #{forward.1} parent=11 // pred_fallthru
        _
      // Predicated region
      $region101: #{forward.1} parent=11 // pred_check
        %p806 = pneg %p678
      $region102: #{forward.1} parent=11 // pred_check_branch
        %808 = sbr.rel (%p806) target = $region104
      $region103: #{forward.1} parent=11 // pred_region
        _
      $region104: #{forward.1} parent=11 // pred_fallthru
        _
      // Predicated region
      $region105: #{forward.1} parent=11 // pred_check
        %p809 = pneg %p699
      $region106: #{forward.1} parent=11 // pred_check_branch
        %811 = sbr.rel (%p809) target = $region108
      $region107: #{forward.1} parent=11 // pred_region
        _
      $region108: #{forward.1} parent=11 // pred_fallthru
        _
    $region12: #{forward.1} parent=5 // pred_fallthru
      _
    %p812 = scmp.lt.s32.totalorder %s65, 2
    // Predicated region
    $region109: #{forward.1} parent=5 // pred_check
      %p813 = pneg %p812
    $region110: #{forward.1} parent=5 // pred_check_branch
      %815 = sbr.rel (%p813) target = $region112
    $region111: #{forward.1} parent=5 // pred_region
      // Predicated region
      $region113: #{forward.1} parent=111 // pred_check
        %p816 = pneg %p85
      $region114: #{forward.1} parent=111 // pred_check_branch
        %818 = sbr.rel (%p816) target = $region116
      $region115: #{forward.1} parent=111 // pred_region
        %p819 = scmp.lt.s32.totalorder %s65, 1
        %s820 = scalar_select %p819, %s65, 1
        %s821 = smul.addr %s820, 4
        %s822 = smul.addr %s821, 8
        %s823 = scalar_lea.vmem %s1, %s822
      $region116: #{forward.1} parent=111 // pred_fallthru
        _
      // Predicated region
      $region117: #{forward.1} parent=111 // pred_check
        %p824 = pneg %p111
      $region118: #{forward.1} parent=111 // pred_check_branch
        %826 = sbr.rel (%p824) target = $region120
      $region119: #{forward.1} parent=111 // pred_region
        %p827 = scmp.lt.s32.totalorder %s65, 1
        %s828 = scalar_select %p827, %s65, 1
        %s829 = smul.addr %s828, 2
        %s830 = smul.addr %s829, 8
        %s831 = scalar_lea.vmem %s3, %s830
      $region120: #{forward.1} parent=111 // pred_fallthru
        _
      // Predicated region
      $region121: #{forward.1} parent=111 // pred_check
        %p832 = pneg %p137
      $region122: #{forward.1} parent=111 // pred_check_branch
        %834 = sbr.rel (%p832) target = $region124
      $region123: #{forward.1} parent=111 // pred_region
        %p835 = scmp.lt.s32.totalorder %s65, 1
        %s836 = scalar_select %p835, %s65, 1
        %s837 = smul.addr %s836, 2
        %s838 = smul.addr %s837, 8
        %s839 = scalar_lea.vmem %s5, %s838
      $region124: #{forward.1} parent=111 // pred_fallthru
        _
      // Predicated region
      $region125: #{forward.1} parent=111 // pred_check
        %p840 = pneg %p163
      $region126: #{forward.1} parent=111 // pred_check_branch
        %842 = sbr.rel (%p840) target = $region128
      $region127: #{forward.1} parent=111 // pred_region
        %p843 = scmp.lt.s32.totalorder %s65, 1
        %s844 = scalar_select %p843, %s65, 1
        %s845 = smul.addr %s844, 2
        %s846 = smul.addr %s845, 8
        %s847 = scalar_lea.vmem %s7, %s846
      $region128: #{forward.1} parent=111 // pred_fallthru
        _
      // Predicated region
      $region129: #{forward.1} parent=111 // pred_check
        %p848 = pneg %p189
      $region130: #{forward.1} parent=111 // pred_check_branch
        %850 = sbr.rel (%p848) target = $region132
      $region131: #{forward.1} parent=111 // pred_region
        %p851 = scmp.lt.s32.totalorder %s65, 1
        %s852 = scalar_select %p851, %s65, 1
        %s853 = smul.addr %s852, 8
        %s854 = smul.addr %s853, 8
        %s855 = scalar_lea.vmem %s9, %s854
      $region132: #{forward.1} parent=111 // pred_fallthru
        _
    $region112: #{forward.1} parent=5 // pred_fallthru
      _
    %p856 = scmp.le.s32.totalorder 1, %s65
    %p857 = scmp.lt.s32.totalorder %s65, 3
    %p858 = pnand %p856, %p857
    %p859 = pneg %p858
    // Predicated region
    $region133: #{forward.1} parent=5 // pred_check
      _
    $region134: #{forward.1} parent=5 // pred_check_branch
      %861 = sbr.rel (%p858) target = $region136
    $region135: #{forward.1} parent=5 // pred_region
      %s862 = ssub.s32 %s65, 1
      %p863 = scmp.lt.s32.totalorder %s70, 1
      %s864 = scalar_select %p863, %s70, 1
      %s865 = smul.addr %s864, 4
      %s866 = smul.addr %s865, 8
      %s867 = scalar_lea.vmem %s1, %s866
      %p868 = pneg %p91
      %p869 = pneg %p88
      %p870 = scmp.lt.s32.totalorder %s70, 1
      %s871 = scalar_select %p870, %s70, 1
      %s872 = smul.addr %s871, 2
      %s873 = smul.addr %s872, 8
      %s874 = scalar_lea.vmem %s3, %s873
      %p875 = pneg %p117
      %p876 = pneg %p114
      %p877 = scmp.lt.s32.totalorder %s70, 1
      %s878 = scalar_select %p877, %s70, 1
      %s879 = smul.addr %s878, 2
      %s880 = smul.addr %s879, 8
      %s881 = scalar_lea.vmem %s5, %s880
      %p882 = pneg %p143
      %p883 = pneg %p140
      %p884 = scmp.lt.s32.totalorder %s70, 1
      %s885 = scalar_select %p884, %s70, 1
      %s886 = smul.addr %s885, 2
      %s887 = smul.addr %s886, 8
      %s888 = scalar_lea.vmem %s7, %s887
      %p889 = pneg %p169
      %p890 = pneg %p166
      %p891 = scmp.lt.s32.totalorder %s70, 1
      %s892 = scalar_select %p891, %s70, 1
      %s893 = smul.addr %s892, 8
      %s894 = smul.addr %s893, 8
      %s895 = scalar_lea.vmem %s9, %s894
      %p896 = pneg %p195
      %p897 = pneg %p192
      %p898 = pneg %p216
      %p899 = pneg %p213
      %p900 = pneg %p237
      %p901 = pneg %p234
      %p902 = pneg %p258
      %p903 = pneg %p255
      %p904 = pneg %p279
      %p905 = pneg %p276
      %p906 = pneg %p300
      %p907 = pneg %p297
      %p908 = pneg %p321
      %p909 = pneg %p318
      %p910 = pneg %p342
      %p911 = pneg %p339
      %p912 = pneg %p363
      %p913 = pneg %p360
      %p914 = pneg %p384
      %p915 = pneg %p381
      %p916 = pneg %p405
      %p917 = pneg %p402
      %p918 = pneg %p426
      %p919 = pneg %p423
      %p920 = pneg %p447
      %p921 = pneg %p444
      %p922 = pneg %p468
      %p923 = pneg %p465
      %p924 = pneg %p489
      %p925 = pneg %p486
      %p926 = pneg %p510
      %p927 = pneg %p507
      %p928 = pneg %p531
      %p929 = pneg %p528
      %p930 = pneg %p552
      %p931 = pneg %p549
      %p932 = pneg %p573
      %p933 = pneg %p570
      %p934 = pneg %p594
      %p935 = pneg %p591
      %p936 = pneg %p615
      %p937 = pneg %p612
      %p938 = pneg %p636
      %p939 = pneg %p633
      %p940 = pneg %p657
      %p941 = pneg %p654
      %p942 = pneg %p678
      %p943 = pneg %p675
      %p944 = pneg %p699
      %p945 = pneg %p696
      %p946 = pneg %p725
      %p947 = pneg %p722
      %p948 = scmp.lt.s32.totalorder %s70, 1
      %s949 = scalar_select %p948, %s70, 1
      %s950 = smul.addr %s949, 8
      %s951 = smul.addr %s950, 8
      %s952 = scalar_lea.vmem %s59, %s951
      %p953 = scmp.lt.s32.totalorder %s70, 1
      %s954 = scalar_select %p953, %s70, 1
      %s955 = smul.addr %s954, 4
      %s956 = smul.addr %s955, 8
      %s957 = scalar_lea.vmem %s1, %s956
      %p958 = scmp.lt.s32.totalorder %s70, 1
      %s959 = scalar_select %p958, %s70, 1
      %s960 = smul.addr %s959, 2
      %s961 = smul.addr %s960, 8
      %s962 = scalar_lea.vmem %s3, %s961
      %p963 = scmp.lt.s32.totalorder %s70, 1
      %s964 = scalar_select %p963, %s70, 1
      %s965 = smul.addr %s964, 2
      %s966 = smul.addr %s965, 8
      %s967 = scalar_lea.vmem %s5, %s966
      %p968 = scmp.lt.s32.totalorder %s70, 1
      %s969 = scalar_select %p968, %s70, 1
      %s970 = smul.addr %s969, 2
      %s971 = smul.addr %s970, 8
      %s972 = scalar_lea.vmem %s7, %s971
      %p973 = scmp.lt.s32.totalorder %s70, 1
      %s974 = scalar_select %p973, %s70, 1
      %s975 = smul.addr %s974, 8
      %s976 = smul.addr %s975, 8
      %s977 = scalar_lea.vmem %s9, %s976
      %p978 = scmp.lt.s32.totalorder %s70, 1
      %s979 = scalar_select %p978, %s70, 1
      %s980 = smul.addr %s979, 8
      %s981 = smul.addr %s980, 8
      %s982 = scalar_lea.vmem %s59, %s981
      %v984 = vld [vmem:[%s957] sm:$0xff]
      %v985 = vld [vmem:[%s957 + $0x8] sm:$0xff]
      %v986 = vld [vmem:[%s957 + $0x10] sm:$0xff]
      %v987 = vld [vmem:[%s957 + $0x18] sm:$0xff]
      %v988 = vpack.c.bf16 %v985, %v984
      %v989 = vpack.c.bf16 %v987, %v986
      %v990 = vld [vmem:[%s11] sm:$0x3]
      %vm991 = vcmask 31744
      %v993 = vsel %vm991, %v988, 0
      %v996 = vsel %vm991, %v989, 0
      %vm998 = vcmask 1041408
      %v1000 = vsel %vm998, %v990, 0
      %1002 = vmatprep.subr.bf16.mxu0 0
      %1003 = vmatpush1.bf16.msra.mxu0 %v1000
      %1004 = vmatprep.subr.bf16.mxu0 0
      %1005 = vmatpush1.bf16.msra.mxu0 0
      %1006 = vmatprep.subr.bf16.mxu0 0
      %1007 = vmatpush1.bf16.msra.mxu0 0
      %1008 = vmatprep.subr.bf16.mxu0 0
      %1009 = vmatpush1.bf16.msra.mxu0 0
      %1010 = vmatprep.subr.bf16.mxu0 0
      %1011 = vmatpush1.bf16.msra.mxu0 0
      %1012 = vmatprep.subr.bf16.mxu0 0
      %1013 = vmatpush1.bf16.msra.mxu0 0
      %1014 = vmatprep.subr.bf16.mxu0 0
      %1015 = vmatpush1.bf16.msra.mxu0 0
      %1016 = vmatprep.subr.bf16.mxu0 0
      %1017 = vmatpush1.bf16.msra.mxu0 0
      %1018 = vmatprep.subr.bf16.mxu0 0
      %1019 = vmatpush1.bf16.msra.mxu0 0
      %1020 = vmatprep.subr.bf16.mxu0 0
      %1021 = vmatpush1.bf16.msra.mxu0 0
      %1022 = vmatprep.subr.bf16.mxu0 0
      %1023 = vmatpush1.bf16.msra.mxu0 0
      %1024 = vmatprep.subr.bf16.mxu0 0
      %1025 = vmatpush1.bf16.msra.mxu0 0
      %1026 = vmatprep.subr.bf16.mxu0 0
      %1027 = vmatpush1.bf16.msra.mxu0 0
      %1028 = vmatprep.subr.bf16.mxu0 0
      %1029 = vmatpush1.bf16.msra.mxu0 0
      %1030 = vmatprep.subr.bf16.mxu0 0
      %1031 = vmatpush1.bf16.msra.mxu0 0
      %1032 = vmatprep.subr.bf16.mxu0 0
      %1033 = vmatpush1.bf16.msra.mxu0 0
      %1034 = vmatprep.mubr.bf16.mxu0 0
      %1035 = vmatmul.mubr.bf16.gmra.mrb[0].mxu0 %v993
      %v1036 = vpop.f32.mrb[0].mxu0
      %v1037 = vadd.f32 0.0, %v1036
      %v1038 = vpop.f32.mrb[0].mxu0
      %v1039 = vpop.f32.mrb[0].mxu0
      %v1040 = vadd.f32 0.0, %v1039
      %v1041 = vpop.f32.mrb[0].mxu0
      %1042 = vmatprep.mubr.bf16.mxu0 0
      %1043 = vmatmul.mubr.bf16.gmra.mrb[0].mxu0 %v996
      %v1044 = vpop.f32.mrb[0].mxu0
      %v1045 = vadd.f32 0.0, %v1044
      %v1046 = vpop.f32.mrb[0].mxu0
      %v1047 = vpop.f32.mrb[0].mxu0
      %v1048 = vadd.f32 0.0, %v1047
      %v1049 = vpop.f32.mrb[0].mxu0
      %1050 = vdwg.mxu0
      %v1051 = vld [vmem:[%s962] sm:$0xff]
      %v1052 = vld [vmem:[%s962 + $0x8] sm:$0xff]
      %v1053 = vld [vmem:[%s15] sm:$0xff]
      %v1054 = vld [vmem:[%s15 + $0x8] sm:$0xff]
      %v1055 = vld [vmem:[%s15 + $0x10] sm:$0xff]
      %v1056 = vld [vmem:[%s15 + $0x18] sm:$0xff]
      %v1057 = vld [vmem:[%s15 + $0x20] sm:$0xff]
      %v1058 = vld [vmem:[%s15 + $0x28] sm:$0xff]
      %v1059 = vld [vmem:[%s17] sm:$0xff]
      %v1060 = vld [vmem:[%s17 + $0x8] sm:$0xff]
      %v1061 = vld [vmem:[%s17 + $0x10] sm:$0xff]
      %v1062 = vld [vmem:[%s17 + $0x18] sm:$0xff]
      %v1063 = vld [vmem:[%s17 + $0x20] sm:$0xff]
      %v1064 = vld [vmem:[%s17 + $0x28] sm:$0xff]
      %v1065 = vld [vmem:[%s13] sm:$0xf]
      %1072 = vrot.lane.b32.xlu0 %v1037, 116
      %v1073 = vpop.permute.xlu0 %1072
      %1074 = vrot.lane.b32.xlu0 %v1040, 116
      %v1075 = vpop.permute.xlu0 %1074
      %1076 = vrot.lane.b32.xlu0 %v1045, 116
      %v1077 = vpop.permute.xlu0 %1076
      %1078 = vrot.lane.b32.xlu0 %v1048, 116
      %v1079 = vpop.permute.xlu0 %1078
      %1080 = vrot.lane.b32.xlu0 %v1051, 116
      %v1081 = vpop.permute.xlu0 %1080
      %1082 = vrot.lane.b32.xlu0 %v1052, 116
      %v1083 = vpop.permute.xlu0 %1082
      %1090 = vrot.lane.b32.xlu0 %v1037, 4
      %v1091 = vpop.permute.xlu0 %1090
      %1092 = vrot.lane.b32.xlu0 %v1040, 4
      %v1093 = vpop.permute.xlu0 %1092
      %1094 = vrot.lane.b32.xlu0 %v1045, 4
      %v1095 = vpop.permute.xlu0 %1094
      %1096 = vrot.lane.b32.xlu0 %v1048, 4
      %v1097 = vpop.permute.xlu0 %1096
      %1098 = vrot.lane.b32.xlu0 %v1051, 4
      %v1099 = vpop.permute.xlu0 %1098
      %1100 = vrot.lane.b32.xlu0 %v1052, 4
      %v1101 = vpop.permute.xlu0 %1100
      %v1108 = vsel %vm991, %v1073, %v1091
      %v1109 = vsel %vm991, %v1075, %v1093
      %v1110 = vsel %vm991, %v1077, %v1095
      %v1111 = vsel %vm991, %v1079, %v1097
      %v1112 = vsel %vm991, %v1081, %v1099
      %v1113 = vsel %vm991, %v1083, %v1101
      %v1114 = vlaneseq
      %v1115 = vshrl.u32 %v1114, 7
      %v1116 = vsub.s32 0, %v1115
      %v1117 = vrot.slane %v1065, %v1116
      %v1118 = vmul.f32 %v1108, %v1117
      %v1119 = vmul.f32 %v1109, %v1117
      %v1120 = vmul.f32 %v1110, %v1117
      %v1121 = vmul.f32 %v1111, %v1117
      %v1122 = vmul.f32 %v1112, %v1117
      %v1123 = vmul.f32 %v1113, %v1117
      %1125 = vset.pattern.permute.xlu0 0
      %1126 = vperm.xlu0 %1125, %v1053
      %v1127 = vpop.permute.xlu0 %1126
      %1130 = vset.pattern.permute.xlu0 0
      %1131 = vperm.xlu0 %1130, %v1054
      %v1132 = vpop.permute.xlu0 %1131
      %1135 = vset.pattern.permute.xlu0 0
      %1136 = vperm.xlu0 %1135, %v1055
      %v1137 = vpop.permute.xlu0 %1136
      %1140 = vset.pattern.permute.xlu0 0
      %1141 = vperm.xlu0 %1140, %v1056
      %v1142 = vpop.permute.xlu0 %1141
      %1145 = vset.pattern.permute.xlu0 0
      %1146 = vperm.xlu0 %1145, %v1057
      %v1147 = vpop.permute.xlu0 %1146
      %1150 = vset.pattern.permute.xlu0 0
      %1151 = vperm.xlu0 %1150, %v1058
      %v1152 = vpop.permute.xlu0 %1151
      %v1154 = vmul.f32 %v1118, %v1127
      %v1155 = vmul.f32 %v1119, %v1132
      %v1156 = vmul.f32 %v1120, %v1137
      %v1157 = vmul.f32 %v1121, %v1142
      %v1158 = vmul.f32 %v1122, %v1147
      %v1159 = vmul.f32 %v1123, %v1152
      %1160 = vset.pattern.permute.xlu0 1
      %1161 = vperm.xlu0 %1160, %v1053
      %v1162 = vpop.permute.xlu0 %1161
      %1164 = vset.pattern.permute.xlu0 1
      %1165 = vperm.xlu0 %1164, %v1054
      %v1166 = vpop.permute.xlu0 %1165
      %1168 = vset.pattern.permute.xlu0 1
      %1169 = vperm.xlu0 %1168, %v1055
      %v1170 = vpop.permute.xlu0 %1169
      %1172 = vset.pattern.permute.xlu0 1
      %1173 = vperm.xlu0 %1172, %v1056
      %v1174 = vpop.permute.xlu0 %1173
      %1176 = vset.pattern.permute.xlu0 1
      %1177 = vperm.xlu0 %1176, %v1057
      %v1178 = vpop.permute.xlu0 %1177
      %1180 = vset.pattern.permute.xlu0 1
      %1181 = vperm.xlu0 %1180, %v1058
      %v1182 = vpop.permute.xlu0 %1181
      %v1184 = vmul.f32 %v1118, %v1162
      %v1185 = vmul.f32 %v1119, %v1166
      %v1186 = vmul.f32 %v1120, %v1170
      %v1187 = vmul.f32 %v1121, %v1174
      %v1188 = vmul.f32 %v1122, %v1178
      %v1189 = vmul.f32 %v1123, %v1182
      %1190 = vset.pattern.permute.xlu0 2
      %1191 = vperm.xlu0 %1190, %v1053
      %v1192 = vpop.permute.xlu0 %1191
      %1194 = vset.pattern.permute.xlu0 2
      %1195 = vperm.xlu0 %1194, %v1054
      %v1196 = vpop.permute.xlu0 %1195
      %1198 = vset.pattern.permute.xlu0 2
      %1199 = vperm.xlu0 %1198, %v1055
      %v1200 = vpop.permute.xlu0 %1199
      %1202 = vset.pattern.permute.xlu0 2
      %1203 = vperm.xlu0 %1202, %v1056
      %v1204 = vpop.permute.xlu0 %1203
      %1206 = vset.pattern.permute.xlu0 2
      %1207 = vperm.xlu0 %1206, %v1057
      %v1208 = vpop.permute.xlu0 %1207
      %1210 = vset.pattern.permute.xlu0 2
      %1211 = vperm.xlu0 %1210, %v1058
      %v1212 = vpop.permute.xlu0 %1211
      %v1214 = vmul.f32 %v1118, %v1192
      %v1215 = vmul.f32 %v1119, %v1196
      %v1216 = vmul.f32 %v1120, %v1200
      %v1217 = vmul.f32 %v1121, %v1204
      %v1218 = vmul.f32 %v1122, %v1208
      %v1219 = vmul.f32 %v1123, %v1212
      %1220 = vset.pattern.permute.xlu0 3
      %1221 = vperm.xlu0 %1220, %v1053
      %v1222 = vpop.permute.xlu0 %1221
      %1224 = vset.pattern.permute.xlu0 3
      %1225 = vperm.xlu0 %1224, %v1054
      %v1226 = vpop.permute.xlu0 %1225
      %1228 = vset.pattern.permute.xlu0 3
      %1229 = vperm.xlu0 %1228, %v1055
      %v1230 = vpop.permute.xlu0 %1229
      %1232 = vset.pattern.permute.xlu0 3
      %1233 = vperm.xlu0 %1232, %v1056
      %v1234 = vpop.permute.xlu0 %1233
      %1236 = vset.pattern.permute.xlu0 3
      %1237 = vperm.xlu0 %1236, %v1057
      %v1238 = vpop.permute.xlu0 %1237
      %1240 = vset.pattern.permute.xlu0 3
      %1241 = vperm.xlu0 %1240, %v1058
      %v1242 = vpop.permute.xlu0 %1241
      %v1244 = vmul.f32 %v1037, %v1222
      %v1245 = vmul.f32 %v1040, %v1226
      %v1246 = vmul.f32 %v1045, %v1230
      %v1247 = vmul.f32 %v1048, %v1234
      %v1248 = vmul.f32 %v1051, %v1238
      %v1249 = vmul.f32 %v1052, %v1242
      %v1250 = vadd.f32 %v1154, %v1244
      %v1251 = vadd.f32 %v1155, %v1245
      %v1252 = vadd.f32 %v1156, %v1246
      %v1253 = vadd.f32 %v1157, %v1247
      %v1254 = vadd.f32 %v1158, %v1248
      %v1255 = vadd.f32 %v1159, %v1249
      %1256 = vset.pattern.permute.xlu0 4
      %1257 = vperm.xlu0 %1256, %v1053
      %v1258 = vpop.permute.xlu0 %1257
      %1260 = vset.pattern.permute.xlu0 4
      %1261 = vperm.xlu0 %1260, %v1054
      %v1262 = vpop.permute.xlu0 %1261
      %1264 = vset.pattern.permute.xlu0 4
      %1265 = vperm.xlu0 %1264, %v1055
      %v1266 = vpop.permute.xlu0 %1265
      %1268 = vset.pattern.permute.xlu0 4
      %1269 = vperm.xlu0 %1268, %v1056
      %v1270 = vpop.permute.xlu0 %1269
      %1272 = vset.pattern.permute.xlu0 4
      %1273 = vperm.xlu0 %1272, %v1057
      %v1274 = vpop.permute.xlu0 %1273
      %1276 = vset.pattern.permute.xlu0 4
      %1277 = vperm.xlu0 %1276, %v1058
      %v1278 = vpop.permute.xlu0 %1277
      %v1280 = vmul.f32 %v1037, %v1258
      %v1281 = vmul.f32 %v1040, %v1262
      %v1282 = vmul.f32 %v1045, %v1266
      %v1283 = vmul.f32 %v1048, %v1270
      %v1284 = vmul.f32 %v1051, %v1274
      %v1285 = vmul.f32 %v1052, %v1278
      %v1286 = vadd.f32 %v1184, %v1280
      %v1287 = vadd.f32 %v1185, %v1281
      %v1288 = vadd.f32 %v1186, %v1282
      %v1289 = vadd.f32 %v1187, %v1283
      %v1290 = vadd.f32 %v1188, %v1284
      %v1291 = vadd.f32 %v1189, %v1285
      %1292 = vset.pattern.permute.xlu0 5
      %1293 = vperm.xlu0 %1292, %v1053
      %v1294 = vpop.permute.xlu0 %1293
      %1296 = vset.pattern.permute.xlu0 5
      %1297 = vperm.xlu0 %1296, %v1054
      %v1298 = vpop.permute.xlu0 %1297
      %1300 = vset.pattern.permute.xlu0 5
      %1301 = vperm.xlu0 %1300, %v1055
      %v1302 = vpop.permute.xlu0 %1301
      %1304 = vset.pattern.permute.xlu0 5
      %1305 = vperm.xlu0 %1304, %v1056
      %v1306 = vpop.permute.xlu0 %1305
      %1308 = vset.pattern.permute.xlu0 5
      %1309 = vperm.xlu0 %1308, %v1057
      %v1310 = vpop.permute.xlu0 %1309
      %1312 = vset.pattern.permute.xlu0 5
      %1313 = vperm.xlu0 %1312, %v1058
      %v1314 = vpop.permute.xlu0 %1313
      %v1316 = vmul.f32 %v1037, %v1294
      %v1317 = vmul.f32 %v1040, %v1298
      %v1318 = vmul.f32 %v1045, %v1302
      %v1319 = vmul.f32 %v1048, %v1306
      %v1320 = vmul.f32 %v1051, %v1310
      %v1321 = vmul.f32 %v1052, %v1314
      %v1322 = vadd.f32 %v1214, %v1316
      %v1323 = vadd.f32 %v1215, %v1317
      %v1324 = vadd.f32 %v1216, %v1318
      %v1325 = vadd.f32 %v1217, %v1319
      %v1326 = vadd.f32 %v1218, %v1320
      %v1327 = vadd.f32 %v1219, %v1321
      %1328 = vrot.lane.b32.xlu0 %v1037, 124
      %v1329 = vpop.permute.xlu0 %1328
      %1330 = vrot.lane.b32.xlu0 %v1040, 124
      %v1331 = vpop.permute.xlu0 %1330
      %1332 = vrot.lane.b32.xlu0 %v1045, 124
      %v1333 = vpop.permute.xlu0 %1332
      %1334 = vrot.lane.b32.xlu0 %v1048, 124
      %v1335 = vpop.permute.xlu0 %1334
      %1336 = vrot.lane.b32.xlu0 %v1051, 124
      %v1337 = vpop.permute.xlu0 %1336
      %1338 = vrot.lane.b32.xlu0 %v1052, 124
      %v1339 = vpop.permute.xlu0 %1338
      %1346 = vrot.lane.b32.xlu0 %v1037, 12
      %v1347 = vpop.permute.xlu0 %1346
      %1348 = vrot.lane.b32.xlu0 %v1040, 12
      %v1349 = vpop.permute.xlu0 %1348
      %1350 = vrot.lane.b32.xlu0 %v1045, 12
      %v1351 = vpop.permute.xlu0 %1350
      %1352 = vrot.lane.b32.xlu0 %v1048, 12
      %v1353 = vpop.permute.xlu0 %1352
      %1354 = vrot.lane.b32.xlu0 %v1051, 12
      %v1355 = vpop.permute.xlu0 %1354
      %1356 = vrot.lane.b32.xlu0 %v1052, 12
      %v1357 = vpop.permute.xlu0 %1356
      %vm1364 = vcmask 97280
      %v1365 = vsel %vm1364, %v1329, %v1347
      %v1366 = vsel %vm1364, %v1331, %v1349
      %v1367 = vsel %vm1364, %v1333, %v1351
      %v1368 = vsel %vm1364, %v1335, %v1353
      %v1369 = vsel %vm1364, %v1337, %v1355
      %v1370 = vsel %vm1364, %v1339, %v1357
      %v1371 = vlaneseq
      %v1372 = vshrl.u32 %v1371, 7
      %v1373 = vsub.s32 1, %v1372
      %v1374 = vrot.slane %v1065, %v1373
      %v1375 = vmul.f32 %v1365, %v1374
      %v1376 = vmul.f32 %v1366, %v1374
      %v1377 = vmul.f32 %v1367, %v1374
      %v1378 = vmul.f32 %v1368, %v1374
      %v1379 = vmul.f32 %v1369, %v1374
      %v1380 = vmul.f32 %v1370, %v1374
      %1381 = vset.pattern.permute.xlu0 6
      %1382 = vperm.xlu0 %1381, %v1053
      %v1383 = vpop.permute.xlu0 %1382
      %1385 = vset.pattern.permute.xlu0 6
      %1386 = vperm.xlu0 %1385, %v1054
      %v1387 = vpop.permute.xlu0 %1386
      %1389 = vset.pattern.permute.xlu0 6
      %1390 = vperm.xlu0 %1389, %v1055
      %v1391 = vpop.permute.xlu0 %1390
      %1393 = vset.pattern.permute.xlu0 6
      %1394 = vperm.xlu0 %1393, %v1056
      %v1395 = vpop.permute.xlu0 %1394
      %1397 = vset.pattern.permute.xlu0 6
      %1398 = vperm.xlu0 %1397, %v1057
      %v1399 = vpop.permute.xlu0 %1398
      %1401 = vset.pattern.permute.xlu0 6
      %1402 = vperm.xlu0 %1401, %v1058
      %v1403 = vpop.permute.xlu0 %1402
      %v1405 = vmul.f32 %v1375, %v1383
      %v1406 = vmul.f32 %v1376, %v1387
      %v1407 = vmul.f32 %v1377, %v1391
      %v1408 = vmul.f32 %v1378, %v1395
      %v1409 = vmul.f32 %v1379, %v1399
      %v1410 = vmul.f32 %v1380, %v1403
      %v1411 = vadd.f32 %v1250, %v1405
      %v1412 = vadd.f32 %v1251, %v1406
      %v1413 = vadd.f32 %v1252, %v1407
      %v1414 = vadd.f32 %v1253, %v1408
      %v1415 = vadd.f32 %v1254, %v1409
      %v1416 = vadd.f32 %v1255, %v1410
      %1417 = vset.pattern.permute.xlu0 7
      %1418 = vperm.xlu0 %1417, %v1053
      %v1419 = vpop.permute.xlu0 %1418
      %1421 = vset.pattern.permute.xlu0 7
      %1422 = vperm.xlu0 %1421, %v1054
      %v1423 = vpop.permute.xlu0 %1422
      %1425 = vset.pattern.permute.xlu0 7
      %1426 = vperm.xlu0 %1425, %v1055
      %v1427 = vpop.permute.xlu0 %1426
      %1429 = vset.pattern.permute.xlu0 7
      %1430 = vperm.xlu0 %1429, %v1056
      %v1431 = vpop.permute.xlu0 %1430
      %1433 = vset.pattern.permute.xlu0 7
      %1434 = vperm.xlu0 %1433, %v1057
      %v1435 = vpop.permute.xlu0 %1434
      %1437 = vset.pattern.permute.xlu0 7
      %1438 = vperm.xlu0 %1437, %v1058
      %v1439 = vpop.permute.xlu0 %1438
      %v1441 = vmul.f32 %v1375, %v1419
      %v1442 = vmul.f32 %v1376, %v1423
      %v1443 = vmul.f32 %v1377, %v1427
      %v1444 = vmul.f32 %v1378, %v1431
      %v1445 = vmul.f32 %v1379, %v1435
      %v1446 = vmul.f32 %v1380, %v1439
      %v1447 = vadd.f32 %v1286, %v1441
      %v1448 = vadd.f32 %v1287, %v1442
      %v1449 = vadd.f32 %v1288, %v1443
      %v1450 = vadd.f32 %v1289, %v1444
      %v1451 = vadd.f32 %v1290, %v1445
      %v1452 = vadd.f32 %v1291, %v1446
      %1453 = vset.pattern.permute.xlu0 8
      %1454 = vperm.xlu0 %1453, %v1053
      %v1455 = vpop.permute.xlu0 %1454
      %1457 = vset.pattern.permute.xlu0 8
      %1458 = vperm.xlu0 %1457, %v1054
      %v1459 = vpop.permute.xlu0 %1458
      %1461 = vset.pattern.permute.xlu0 8
      %1462 = vperm.xlu0 %1461, %v1055
      %v1463 = vpop.permute.xlu0 %1462
      %1465 = vset.pattern.permute.xlu0 8
      %1466 = vperm.xlu0 %1465, %v1056
      %v1467 = vpop.permute.xlu0 %1466
      %1469 = vset.pattern.permute.xlu0 8
      %1470 = vperm.xlu0 %1469, %v1057
      %v1471 = vpop.permute.xlu0 %1470
      %1473 = vset.pattern.permute.xlu0 8
      %1474 = vperm.xlu0 %1473, %v1058
      %v1475 = vpop.permute.xlu0 %1474
      %v1477 = vmul.f32 %v1375, %v1455
      %v1478 = vmul.f32 %v1376, %v1459
      %v1479 = vmul.f32 %v1377, %v1463
      %v1480 = vmul.f32 %v1378, %v1467
      %v1481 = vmul.f32 %v1379, %v1471
      %v1482 = vmul.f32 %v1380, %v1475
      %v1483 = vadd.f32 %v1322, %v1477
      %v1484 = vadd.f32 %v1323, %v1478
      %v1485 = vadd.f32 %v1324, %v1479
      %v1486 = vadd.f32 %v1325, %v1480
      %v1487 = vadd.f32 %v1326, %v1481
      %v1488 = vadd.f32 %v1327, %v1482
      %1495 = vrot.lane.b32.xlu0 %v1411, 113
      %v1496 = vpop.permute.xlu0 %1495
      %1497 = vrot.lane.b32.xlu0 %v1412, 113
      %v1498 = vpop.permute.xlu0 %1497
      %1499 = vrot.lane.b32.xlu0 %v1413, 113
      %v1500 = vpop.permute.xlu0 %1499
      %1501 = vrot.lane.b32.xlu0 %v1414, 113
      %v1502 = vpop.permute.xlu0 %1501
      %1503 = vrot.lane.b32.xlu0 %v1415, 113
      %v1504 = vpop.permute.xlu0 %1503
      %1505 = vrot.lane.b32.xlu0 %v1416, 113
      %v1506 = vpop.permute.xlu0 %1505
      %1513 = vrot.lane.b32.xlu0 %v1411, 1
      %v1514 = vpop.permute.xlu0 %1513
      %1515 = vrot.lane.b32.xlu0 %v1412, 1
      %v1516 = vpop.permute.xlu0 %1515
      %1517 = vrot.lane.b32.xlu0 %v1413, 1
      %v1518 = vpop.permute.xlu0 %1517
      %1519 = vrot.lane.b32.xlu0 %v1414, 1
      %v1520 = vpop.permute.xlu0 %1519
      %1521 = vrot.lane.b32.xlu0 %v1415, 1
      %v1522 = vpop.permute.xlu0 %1521
      %1523 = vrot.lane.b32.xlu0 %v1416, 1
      %v1524 = vpop.permute.xlu0 %1523
      %vm1531 = vcmask 7168
      %v1532 = vsel %vm1531, %v1496, %v1514
      %v1533 = vsel %vm1531, %v1498, %v1516
      %v1534 = vsel %vm1531, %v1500, %v1518
      %v1535 = vsel %vm1531, %v1502, %v1520
      %v1536 = vsel %vm1531, %v1504, %v1522
      %v1537 = vsel %vm1531, %v1506, %v1524
      %v1538 = vlaneseq
      %v1539 = vshrl.u32 %v1538, 7
      %v1540 = vsub.s32 2, %v1539
      %v1541 = vrot.slane %v1065, %v1540
      %v1542 = vmul.f32 %v1532, %v1541
      %v1543 = vmul.f32 %v1533, %v1541
      %v1544 = vmul.f32 %v1534, %v1541
      %v1545 = vmul.f32 %v1535, %v1541
      %v1546 = vmul.f32 %v1536, %v1541
      %v1547 = vmul.f32 %v1537, %v1541
      %v1548 = vadd.f32 %v1447, %v1542
      %v1549 = vadd.f32 %v1448, %v1543
      %v1550 = vadd.f32 %v1449, %v1544
      %v1551 = vadd.f32 %v1450, %v1545
      %v1552 = vadd.f32 %v1451, %v1546
      %v1553 = vadd.f32 %v1452, %v1547
      %1560 = vrot.lane.b32.xlu0 %v1483, 127
      %v1561 = vpop.permute.xlu0 %1560
      %1562 = vrot.lane.b32.xlu0 %v1484, 127
      %v1563 = vpop.permute.xlu0 %1562
      %1564 = vrot.lane.b32.xlu0 %v1485, 127
      %v1565 = vpop.permute.xlu0 %1564
      %1566 = vrot.lane.b32.xlu0 %v1486, 127
      %v1567 = vpop.permute.xlu0 %1566
      %1568 = vrot.lane.b32.xlu0 %v1487, 127
      %v1569 = vpop.permute.xlu0 %1568
      %1570 = vrot.lane.b32.xlu0 %v1488, 127
      %v1571 = vpop.permute.xlu0 %1570
      %1578 = vrot.lane.b32.xlu0 %v1483, 15
      %v1579 = vpop.permute.xlu0 %1578
      %1580 = vrot.lane.b32.xlu0 %v1484, 15
      %v1581 = vpop.permute.xlu0 %1580
      %1582 = vrot.lane.b32.xlu0 %v1485, 15
      %v1583 = vpop.permute.xlu0 %1582
      %1584 = vrot.lane.b32.xlu0 %v1486, 15
      %v1585 = vpop.permute.xlu0 %1584
      %1586 = vrot.lane.b32.xlu0 %v1487, 15
      %v1587 = vpop.permute.xlu0 %1586
      %1588 = vrot.lane.b32.xlu0 %v1488, 15
      %v1589 = vpop.permute.xlu0 %1588
      %vm1596 = vcmask 121856
      %v1597 = vsel %vm1596, %v1561, %v1579
      %v1598 = vsel %vm1596, %v1563, %v1581
      %v1599 = vsel %vm1596, %v1565, %v1583
      %v1600 = vsel %vm1596, %v1567, %v1585
      %v1601 = vsel %vm1596, %v1569, %v1587
      %v1602 = vsel %vm1596, %v1571, %v1589
      %v1603 = vlaneseq
      %v1604 = vshrl.u32 %v1603, 7
      %v1605 = vsub.s32 3, %v1604
      %v1606 = vrot.slane %v1065, %v1605
      %v1607 = vmul.f32 %v1597, %v1606
      %v1608 = vmul.f32 %v1598, %v1606
      %v1609 = vmul.f32 %v1599, %v1606
      %v1610 = vmul.f32 %v1600, %v1606
      %v1611 = vmul.f32 %v1601, %v1606
      %v1612 = vmul.f32 %v1602, %v1606
      %v1613 = vadd.f32 %v1548, %v1607
      %v1614 = vadd.f32 %v1549, %v1608
      %v1615 = vadd.f32 %v1550, %v1609
      %v1616 = vadd.f32 %v1551, %v1610
      %v1617 = vadd.f32 %v1552, %v1611
      %v1618 = vadd.f32 %v1553, %v1612
      %1620 = vset.pattern.permute.xlu0 0
      %1621 = vperm.xlu0 %1620, %v1059
      %v1622 = vpop.permute.xlu0 %1621
      %1625 = vset.pattern.permute.xlu0 0
      %1626 = vperm.xlu0 %1625, %v1060
      %v1627 = vpop.permute.xlu0 %1626
      %1630 = vset.pattern.permute.xlu0 0
      %1631 = vperm.xlu0 %1630, %v1061
      %v1632 = vpop.permute.xlu0 %1631
      %1635 = vset.pattern.permute.xlu0 0
      %1636 = vperm.xlu0 %1635, %v1062
      %v1637 = vpop.permute.xlu0 %1636
      %1640 = vset.pattern.permute.xlu0 0
      %1641 = vperm.xlu0 %1640, %v1063
      %v1642 = vpop.permute.xlu0 %1641
      %1645 = vset.pattern.permute.xlu0 0
      %1646 = vperm.xlu0 %1645, %v1064
      %v1647 = vpop.permute.xlu0 %1646
      %v1649 = vadd.f32 %v1613, %v1622
      %v1650 = vadd.f32 %v1614, %v1627
      %v1651 = vadd.f32 %v1615, %v1632
      %v1652 = vadd.f32 %v1616, %v1637
      %v1653 = vadd.f32 %v1617, %v1642
      %v1654 = vadd.f32 %v1618, %v1647
      %v1655 = vmul.f32 %v1649, 0.01
      %v1656 = vmul.f32 %v1650, 0.01
      %v1657 = vmul.f32 %v1651, 0.01
      %v1658 = vmul.f32 %v1652, 0.01
      %v1659 = vmul.f32 %v1653, 0.01
      %v1660 = vmul.f32 %v1654, 0.01
      %v1661 = vmax.f32 %v1649, %v1655
      %v1662 = vmax.f32 %v1650, %v1656
      %v1663 = vmax.f32 %v1651, %v1657
      %v1664 = vmax.f32 %v1652, %v1658
      %v1665 = vmax.f32 %v1653, %v1659
      %v1666 = vmax.f32 %v1654, %v1660
      %v1667 = vld [vmem:[%s19] sm:$0xf]
      %v1668 = vld [vmem:[%s19 + $0x4] sm:$0xf]
      %v1669 = vld [vmem:[%s19 + $0x8] sm:$0xf]
      %v1670 = vld [vmem:[%s19 + $0xc] sm:$0xf]
      %v1671 = vld [vmem:[%s19 + $0x10] sm:$0xf]
      %v1672 = vld [vmem:[%s19 + $0x14] sm:$0xf]
      %v1673 = vld [vmem:[%s19 + $0x18] sm:$0xf]
      %v1674 = vld [vmem:[%s19 + $0x1c] sm:$0xf]
      %v1675 = vpack.c.bf16 %v1662, %v1661
      %v1676 = vpack.c.bf16 %v1664, %v1663
      %v1677 = vpack.c.bf16 %v1666, %v1665
      %v1678 = vld [vmem:[%s21] sm:$0xff]
      %v1679 = vld [vmem:[%s21 + $0x8] sm:$0xff]
      %v1680 = vld [vmem:[%s21 + $0x10] sm:$0xff]
      %v1681 = vld [vmem:[%s21 + $0x18] sm:$0xff]
      %v1682 = vld [vmem:[%s21 + $0x20] sm:$0xff]
      %v1683 = vld [vmem:[%s21 + $0x28] sm:$0xff]
      %v1684 = vld [vmem:[%s21 + $0x30] sm:$0xff]
      %v1685 = vld [vmem:[%s21 + $0x38] sm:$0xff]
      %1687 = vset.pattern.permute.xlu0 0
      %1688 = vperm.xlu0 %1687, %v1678
      %v1689 = vpop.permute.xlu0 %1688
      %1692 = vset.pattern.permute.xlu0 0
      %1693 = vperm.xlu0 %1692, %v1679
      %v1694 = vpop.permute.xlu0 %1693
      %1697 = vset.pattern.permute.xlu0 0
      %1698 = vperm.xlu0 %1697, %v1680
      %v1699 = vpop.permute.xlu0 %1698
      %1702 = vset.pattern.permute.xlu0 0
      %1703 = vperm.xlu0 %1702, %v1681
      %v1704 = vpop.permute.xlu0 %1703
      %1707 = vset.pattern.permute.xlu0 0
      %1708 = vperm.xlu0 %1707, %v1682
      %v1709 = vpop.permute.xlu0 %1708
      %1712 = vset.pattern.permute.xlu0 0
      %1713 = vperm.xlu0 %1712, %v1683
      %v1714 = vpop.permute.xlu0 %1713
      %1717 = vset.pattern.permute.xlu0 0
      %1718 = vperm.xlu0 %1717, %v1684
      %v1719 = vpop.permute.xlu0 %1718
      %1722 = vset.pattern.permute.xlu0 0
      %1723 = vperm.xlu0 %1722, %v1685
      %v1724 = vpop.permute.xlu0 %1723
      %v1734 = vunpack.c.l.b16 %v1667
      %v1735 = vunpack.c.l.b16 %v1668
      %v1736 = vunpack.c.l.b16 %v1669
      %v1737 = vunpack.c.l.b16 %v1670
      %v1738 = vunpack.c.l.b16 %v1671
      %v1739 = vunpack.c.l.b16 %v1672
      %v1740 = vunpack.c.l.b16 %v1673
      %v1741 = vunpack.c.l.b16 %v1674
      %v1742 = vpack.c.b16 %v1735, %v1734
      %v1743 = vpack.c.b16 %v1737, %v1736
      %v1744 = vpack.c.b16 %v1739, %v1738
      %v1745 = vpack.c.b16 %v1741, %v1740
      %vm1746 = vcmask 392192
      %v1748 = vsel %vm1746, %v1742, 0
      %v1751 = vsel %vm1746, %v1743, 0
      %v1754 = vsel %vm1746, %v1744, 0
      %v1757 = vsel %vm1746, %v1745, 0
      %1759 = vmatprep.subr.bf16.mxu0 0
      %1760 = vmatpush1.bf16.msra.mxu0 %v1675
      %1761 = vmatprep.subr.bf16.mxu0 0
      %1762 = vmatpush1.bf16.msra.mxu0 %v1676
      %1763 = vmatprep.subr.bf16.mxu0 0
      %1764 = vmatpush1.bf16.msra.mxu0 %v1677
      %1765 = vmatprep.subr.bf16.mxu0 0
      %1766 = vmatpush1.bf16.msra.mxu0 0
      %1767 = vmatprep.subr.bf16.mxu0 0
      %1768 = vmatpush1.bf16.msra.mxu0 0
      %1769 = vmatprep.subr.bf16.mxu0 0
      %1770 = vmatpush1.bf16.msra.mxu0 0
      %1771 = vmatprep.subr.bf16.mxu0 0
      %1772 = vmatpush1.bf16.msra.mxu0 0
      %1773 = vmatprep.subr.bf16.mxu0 0
      %1774 = vmatpush1.bf16.msra.mxu0 0
      %1775 = vmatprep.subr.bf16.mxu0 0
      %1776 = vmatpush1.bf16.msra.mxu0 0
      %1777 = vmatprep.subr.bf16.mxu0 0
      %1778 = vmatpush1.bf16.msra.mxu0 0
      %1779 = vmatprep.subr.bf16.mxu0 0
      %1780 = vmatpush1.bf16.msra.mxu0 0
      %1781 = vmatprep.subr.bf16.mxu0 0
      %1782 = vmatpush1.bf16.msra.mxu0 0
      %1783 = vmatprep.subr.bf16.mxu0 0
      %1784 = vmatpush1.bf16.msra.mxu0 0
      %1785 = vmatprep.subr.bf16.mxu0 0
      %1786 = vmatpush1.bf16.msra.mxu0 0
      %1787 = vmatprep.subr.bf16.mxu0 0
      %1788 = vmatpush1.bf16.msra.mxu0 0
      %1789 = vmatprep.subr.bf16.mxu0 0
      %1790 = vmatpush1.bf16.msra.mxu0 0
      %1791 = vmatprep.mubr.bf16.mxu0 0
      %1792 = vmatmul.mubr.bf16.gmra.mrb[0].mxu0 %v1748
      %v1793 = vpop.f32.mrb[0].mxu0
      %v1794 = vadd.f32 %v1689, %v1793
      %v1795 = vpop.f32.mrb[0].mxu0
      %v1796 = vpop.f32.mrb[0].mxu0
      %v1797 = vadd.f32 %v1694, %v1796
      %v1798 = vpop.f32.mrb[0].mxu0
      %1799 = vmatprep.mubr.bf16.mxu0 0
      %1800 = vmatmul.mubr.bf16.gmra.mrb[0].mxu0 %v1751
      %v1801 = vpop.f32.mrb[0].mxu0
      %v1802 = vadd.f32 %v1699, %v1801
      %v1803 = vpop.f32.mrb[0].mxu0
      %v1804 = vpop.f32.mrb[0].mxu0
      %v1805 = vadd.f32 %v1704, %v1804
      %v1806 = vpop.f32.mrb[0].mxu0
      %1807 = vmatprep.mubr.bf16.mxu0 0
      %1808 = vmatmul.mubr.bf16.gmra.mrb[0].mxu0 %v1754
      %v1809 = vpop.f32.mrb[0].mxu0
      %v1810 = vadd.f32 %v1709, %v1809
      %v1811 = vpop.f32.mrb[0].mxu0
      %v1812 = vpop.f32.mrb[0].mxu0
      %v1813 = vadd.f32 %v1714, %v1812
      %v1814 = vpop.f32.mrb[0].mxu0
      %1815 = vmatprep.mubr.bf16.mxu0 0
      %1816 = vmatmul.mubr.bf16.gmra.mrb[0].mxu0 %v1757
      %v1817 = vpop.f32.mrb[0].mxu0
      %v1818 = vadd.f32 %v1719, %v1817
      %v1819 = vpop.f32.mrb[0].mxu0
      %v1820 = vpop.f32.mrb[0].mxu0
      %v1821 = vadd.f32 %v1724, %v1820
      %v1822 = vpop.f32.mrb[0].mxu0
      %1823 = vdwg.mxu0
      %v1824 = vmul.f32 %v1794, 0.01
      %v1825 = vmul.f32 %v1797, 0.01
      %v1826 = vmul.f32 %v1802, 0.01
      %v1827 = vmul.f32 %v1805, 0.01
      %v1828 = vmul.f32 %v1810, 0.01
      %v1829 = vmul.f32 %v1813, 0.01
      %v1830 = vmul.f32 %v1818, 0.01
      %v1831 = vmul.f32 %v1821, 0.01
      %v1832 = vmax.f32 %v1794, %v1824
      %v1833 = vmax.f32 %v1797, %v1825
      %v1834 = vmax.f32 %v1802, %v1826
      %v1835 = vmax.f32 %v1805, %v1827
      %v1836 = vmax.f32 %v1810, %v1828
      %v1837 = vmax.f32 %v1813, %v1829
      %v1838 = vmax.f32 %v1818, %v1830
      %v1839 = vmax.f32 %v1821, %v1831
      %v1840 = vpack.c.bf16 %v1833, %v1832
      %v1841 = vpack.c.bf16 %v1835, %v1834
      %v1842 = vpack.c.bf16 %v1837, %v1836
      %v1843 = vpack.c.bf16 %v1839, %v1838
      %v1844 = vld [vmem:[%s23] sm:$0xf]
      %v1845 = vld [vmem:[%s23 + $0x4] sm:$0xf]
      %v1848 = vunpack.c.l.b16 %v1844
      %v1849 = vunpack.c.l.b16 %v1845
      %v1850 = vpack.c.b16 %v1849, %v1848
      %vm1852 = vcmask 130048
      %v1854 = vsel %vm1852, %v1840, 0
      %v1857 = vsel %vm1852, %v1841, 0
      %v1860 = vsel %vm1852, %v1842, 0
      %v1863 = vsel %vm1852, %v1843, 0
      %1865 = vmatprep.subr.bf16.mxu0 0
      %1866 = vmatpush1.bf16.msra.mxu0 %v1850
      %1867 = vmatprep.subr.bf16.mxu0 0
      %1868 = vmatpush1.bf16.msra.mxu0 0
      %1869 = vmatprep.subr.bf16.mxu0 0
      %1870 = vmatpush1.bf16.msra.mxu0 0
      %1871 = vmatprep.subr.bf16.mxu0 0
      %1872 = vmatpush1.bf16.msra.mxu0 0
      %1873 = vmatprep.subr.bf16.mxu0 0
      %1874 = vmatpush1.bf16.msra.mxu0 0
      %1875 = vmatprep.subr.bf16.mxu0 0
      %1876 = vmatpush1.bf16.msra.mxu0 0
      %1877 = vmatprep.subr.bf16.mxu0 0
      %1878 = vmatpush1.bf16.msra.mxu0 0
      %1879 = vmatprep.subr.bf16.mxu0 0
      %1880 = vmatpush1.bf16.msra.mxu0 0
      %1881 = vmatprep.subr.bf16.mxu0 0
      %1882 = vmatpush1.bf16.msra.mxu0 0
      %1883 = vmatprep.subr.bf16.mxu0 0
      %1884 = vmatpush1.bf16.msra.mxu0 0
      %1885 = vmatprep.subr.bf16.mxu0 0
      %1886 = vmatpush1.bf16.msra.mxu0 0
      %1887 = vmatprep.subr.bf16.mxu0 0
      %1888 = vmatpush1.bf16.msra.mxu0 0
      %1889 = vmatprep.subr.bf16.mxu0 0
      %1890 = vmatpush1.bf16.msra.mxu0 0
      %1891 = vmatprep.subr.bf16.mxu0 0
      %1892 = vmatpush1.bf16.msra.mxu0 0
      %1893 = vmatprep.subr.bf16.mxu0 0
      %1894 = vmatpush1.bf16.msra.mxu0 0
      %1895 = vmatprep.subr.bf16.mxu0 0
      %1896 = vmatpush1.bf16.msra.mxu0 0
      %1897 = vmatprep.mubr.bf16.mxu0 0
      %1898 = vmatmul.mubr.bf16.gmra.mrb[0].mxu0 %v1854
      %v1899 = vpop.f32.mrb[0].mxu0
      %v1900 = vadd.f32 0.0, %v1899
      %v1901 = vpop.f32.mrb[0].mxu0
      %v1902 = vpop.f32.mrb[0].mxu0
      %v1903 = vadd.f32 0.0, %v1902
      %v1904 = vpop.f32.mrb[0].mxu0
      %1905 = vmatprep.mubr.bf16.mxu0 0
      %1906 = vmatmul.mubr.bf16.gmra.mrb[0].mxu0 %v1857
      %v1907 = vpop.f32.mrb[0].mxu0
      %v1908 = vadd.f32 0.0, %v1907
      %v1909 = vpop.f32.mrb[0].mxu0
      %v1910 = vpop.f32.mrb[0].mxu0
      %v1911 = vadd.f32 0.0, %v1910
      %v1912 = vpop.f32.mrb[0].mxu0
      %1913 = vmatprep.mubr.bf16.mxu0 0
      %1914 = vmatmul.mubr.bf16.gmra.mrb[0].mxu0 %v1860
      %v1915 = vpop.f32.mrb[0].mxu0
      %v1916 = vadd.f32 0.0, %v1915
      %v1917 = vpop.f32.mrb[0].mxu0
      %v1918 = vpop.f32.mrb[0].mxu0
      %v1919 = vadd.f32 0.0, %v1918
      %v1920 = vpop.f32.mrb[0].mxu0
      %1921 = vmatprep.mubr.bf16.mxu0 0
      %1922 = vmatmul.mubr.bf16.gmra.mrb[0].mxu0 %v1863
      %v1923 = vpop.f32.mrb[0].mxu0
      %v1924 = vadd.f32 0.0, %v1923
      %v1925 = vpop.f32.mrb[0].mxu0
      %v1926 = vpop.f32.mrb[0].mxu0
      %v1927 = vadd.f32 0.0, %v1926
      %v1928 = vpop.f32.mrb[0].mxu0
      %1929 = vdwg.mxu0
      %v1930 = vld [vmem:[%s967] sm:$0xff]
      %v1931 = vld [vmem:[%s967 + $0x8] sm:$0xff]
      %v1932 = vld [vmem:[%s27] sm:$0xff]
      %v1933 = vld [vmem:[%s27 + $0x8] sm:$0xff]
      %v1934 = vld [vmem:[%s27 + $0x10] sm:$0xff]
      %v1935 = vld [vmem:[%s27 + $0x18] sm:$0xff]
      %v1936 = vld [vmem:[%s27 + $0x20] sm:$0xff]
      %v1937 = vld [vmem:[%s27 + $0x28] sm:$0xff]
      %v1938 = vld [vmem:[%s27 + $0x30] sm:$0xff]
      %v1939 = vld [vmem:[%s27 + $0x38] sm:$0xff]
      %v1940 = vld [vmem:[%s27 + $0x40] sm:$0xff]
      %v1941 = vld [vmem:[%s27 + $0x48] sm:$0xff]
      %v1942 = vld [vmem:[%s29] sm:$0xff]
      %v1943 = vld [vmem:[%s29 + $0x8] sm:$0xff]
      %v1944 = vld [vmem:[%s29 + $0x10] sm:$0xff]
      %v1945 = vld [vmem:[%s29 + $0x18] sm:$0xff]
      %v1946 = vld [vmem:[%s29 + $0x20] sm:$0xff]
      %v1947 = vld [vmem:[%s29 + $0x28] sm:$0xff]
      %v1948 = vld [vmem:[%s29 + $0x30] sm:$0xff]
      %v1949 = vld [vmem:[%s29 + $0x38] sm:$0xff]
      %v1950 = vld [vmem:[%s29 + $0x40] sm:$0xff]
      %v1951 = vld [vmem:[%s29 + $0x48] sm:$0xff]
      %v1952 = vld [vmem:[%s25] sm:$0xf]
      %1963 = vrot.lane.b32.xlu0 %v1900, 72
      %v1964 = vpop.permute.xlu0 %1963
      %1965 = vrot.lane.b32.xlu0 %v1903, 72
      %v1966 = vpop.permute.xlu0 %1965
      %1967 = vrot.lane.b32.xlu0 %v1908, 72
      %v1968 = vpop.permute.xlu0 %1967
      %1969 = vrot.lane.b32.xlu0 %v1911, 72
      %v1970 = vpop.permute.xlu0 %1969
      %1971 = vrot.lane.b32.xlu0 %v1916, 72
      %v1972 = vpop.permute.xlu0 %1971
      %1973 = vrot.lane.b32.xlu0 %v1919, 72
      %v1974 = vpop.permute.xlu0 %1973
      %1975 = vrot.lane.b32.xlu0 %v1924, 72
      %v1976 = vpop.permute.xlu0 %1975
      %1977 = vrot.lane.b32.xlu0 %v1927, 72
      %v1978 = vpop.permute.xlu0 %1977
      %1979 = vrot.lane.b32.xlu0 %v1930, 72
      %v1980 = vpop.permute.xlu0 %1979
      %1981 = vrot.lane.b32.xlu0 %v1931, 72
      %v1982 = vpop.permute.xlu0 %1981
      %1993 = vrot.lane.b32.xlu0 %v1900, 8
      %v1994 = vpop.permute.xlu0 %1993
      %1995 = vrot.lane.b32.xlu0 %v1903, 8
      %v1996 = vpop.permute.xlu0 %1995
      %1997 = vrot.lane.b32.xlu0 %v1908, 8
      %v1998 = vpop.permute.xlu0 %1997
      %1999 = vrot.lane.b32.xlu0 %v1911, 8
      %v2000 = vpop.permute.xlu0 %1999
      %2001 = vrot.lane.b32.xlu0 %v1916, 8
      %v2002 = vpop.permute.xlu0 %2001
      %2003 = vrot.lane.b32.xlu0 %v1919, 8
      %v2004 = vpop.permute.xlu0 %2003
      %2005 = vrot.lane.b32.xlu0 %v1924, 8
      %v2006 = vpop.permute.xlu0 %2005
      %2007 = vrot.lane.b32.xlu0 %v1927, 8
      %v2008 = vpop.permute.xlu0 %2007
      %2009 = vrot.lane.b32.xlu0 %v1930, 8
      %v2010 = vpop.permute.xlu0 %2009
      %2011 = vrot.lane.b32.xlu0 %v1931, 8
      %v2012 = vpop.permute.xlu0 %2011
      %vm2023 = vcmask 64512
      %v2024 = vsel %vm2023, %v1964, %v1994
      %v2025 = vsel %vm2023, %v1966, %v1996
      %v2026 = vsel %vm2023, %v1968, %v1998
      %v2027 = vsel %vm2023, %v1970, %v2000
      %v2028 = vsel %vm2023, %v1972, %v2002
      %v2029 = vsel %vm2023, %v1974, %v2004
      %v2030 = vsel %vm2023, %v1976, %v2006
      %v2031 = vsel %vm2023, %v1978, %v2008
      %v2032 = vsel %vm2023, %v1980, %v2010
      %v2033 = vsel %vm2023, %v1982, %v2012
      %v2034 = vlaneseq
      %v2035 = vshrl.u32 %v2034, 7
      %v2036 = vsub.s32 0, %v2035
      %v2037 = vrot.slane %v1952, %v2036
      %v2038 = vmul.f32 %v2024, %v2037
      %v2039 = vmul.f32 %v2025, %v2037
      %v2040 = vmul.f32 %v2026, %v2037
      %v2041 = vmul.f32 %v2027, %v2037
      %v2042 = vmul.f32 %v2028, %v2037
      %v2043 = vmul.f32 %v2029, %v2037
      %v2044 = vmul.f32 %v2030, %v2037
      %v2045 = vmul.f32 %v2031, %v2037
      %v2046 = vmul.f32 %v2032, %v2037
      %v2047 = vmul.f32 %v2033, %v2037
      %2049 = vset.pattern.permute.xlu0 0
      %2050 = vperm.xlu0 %2049, %v1932
      %v2051 = vpop.permute.xlu0 %2050
      %2054 = vset.pattern.permute.xlu0 0
      %2055 = vperm.xlu0 %2054, %v1933
      %v2056 = vpop.permute.xlu0 %2055
      %2059 = vset.pattern.permute.xlu0 0
      %2060 = vperm.xlu0 %2059, %v1934
      %v2061 = vpop.permute.xlu0 %2060
      %2064 = vset.pattern.permute.xlu0 0
      %2065 = vperm.xlu0 %2064, %v1935
      %v2066 = vpop.permute.xlu0 %2065
      %2069 = vset.pattern.permute.xlu0 0
      %2070 = vperm.xlu0 %2069, %v1936
      %v2071 = vpop.permute.xlu0 %2070
      %2074 = vset.pattern.permute.xlu0 0
      %2075 = vperm.xlu0 %2074, %v1937
      %v2076 = vpop.permute.xlu0 %2075
      %2079 = vset.pattern.permute.xlu0 0
      %2080 = vperm.xlu0 %2079, %v1938
      %v2081 = vpop.permute.xlu0 %2080
      %2084 = vset.pattern.permute.xlu0 0
      %2085 = vperm.xlu0 %2084, %v1939
      %v2086 = vpop.permute.xlu0 %2085
      %2089 = vset.pattern.permute.xlu0 0
      %2090 = vperm.xlu0 %2089, %v1940
      %v2091 = vpop.permute.xlu0 %2090
      %2094 = vset.pattern.permute.xlu0 0
      %2095 = vperm.xlu0 %2094, %v1941
      %v2096 = vpop.permute.xlu0 %2095
      %v2098 = vmul.f32 %v2038, %v2051
      %v2099 = vmul.f32 %v2039, %v2056
      %v2100 = vmul.f32 %v2040, %v2061
      %v2101 = vmul.f32 %v2041, %v2066
      %v2102 = vmul.f32 %v2042, %v2071
      %v2103 = vmul.f32 %v2043, %v2076
      %v2104 = vmul.f32 %v2044, %v2081
      %v2105 = vmul.f32 %v2045, %v2086
      %v2106 = vmul.f32 %v2046, %v2091
      %v2107 = vmul.f32 %v2047, %v2096
      %2108 = vset.pattern.permute.xlu0 1
      %2109 = vperm.xlu0 %2108, %v1932
      %v2110 = vpop.permute.xlu0 %2109
      %2112 = vset.pattern.permute.xlu0 1
      %2113 = vperm.xlu0 %2112, %v1933
      %v2114 = vpop.permute.xlu0 %2113
      %2116 = vset.pattern.permute.xlu0 1
      %2117 = vperm.xlu0 %2116, %v1934
      %v2118 = vpop.permute.xlu0 %2117
      %2120 = vset.pattern.permute.xlu0 1
      %2121 = vperm.xlu0 %2120, %v1935
      %v2122 = vpop.permute.xlu0 %2121
      %2124 = vset.pattern.permute.xlu0 1
      %2125 = vperm.xlu0 %2124, %v1936
      %v2126 = vpop.permute.xlu0 %2125
      %2128 = vset.pattern.permute.xlu0 1
      %2129 = vperm.xlu0 %2128, %v1937
      %v2130 = vpop.permute.xlu0 %2129
      %2132 = vset.pattern.permute.xlu0 1
      %2133 = vperm.xlu0 %2132, %v1938
      %v2134 = vpop.permute.xlu0 %2133
      %2136 = vset.pattern.permute.xlu0 1
      %2137 = vperm.xlu0 %2136, %v1939
      %v2138 = vpop.permute.xlu0 %2137
      %2140 = vset.pattern.permute.xlu0 1
      %2141 = vperm.xlu0 %2140, %v1940
      %v2142 = vpop.permute.xlu0 %2141
      %2144 = vset.pattern.permute.xlu0 1
      %2145 = vperm.xlu0 %2144, %v1941
      %v2146 = vpop.permute.xlu0 %2145
      %v2148 = vmul.f32 %v2038, %v2110
      %v2149 = vmul.f32 %v2039, %v2114
      %v2150 = vmul.f32 %v2040, %v2118
      %v2151 = vmul.f32 %v2041, %v2122
      %v2152 = vmul.f32 %v2042, %v2126
      %v2153 = vmul.f32 %v2043, %v2130
      %v2154 = vmul.f32 %v2044, %v2134
      %v2155 = vmul.f32 %v2045, %v2138
      %v2156 = vmul.f32 %v2046, %v2142
      %v2157 = vmul.f32 %v2047, %v2146
      %2158 = vset.pattern.permute.xlu0 2
      %2159 = vperm.xlu0 %2158, %v1932
      %v2160 = vpop.permute.xlu0 %2159
      %2162 = vset.pattern.permute.xlu0 2
      %2163 = vperm.xlu0 %2162, %v1933
      %v2164 = vpop.permute.xlu0 %2163
      %2166 = vset.pattern.permute.xlu0 2
      %2167 = vperm.xlu0 %2166, %v1934
      %v2168 = vpop.permute.xlu0 %2167
      %2170 = vset.pattern.permute.xlu0 2
      %2171 = vperm.xlu0 %2170, %v1935
      %v2172 = vpop.permute.xlu0 %2171
      %2174 = vset.pattern.permute.xlu0 2
      %2175 = vperm.xlu0 %2174, %v1936
      %v2176 = vpop.permute.xlu0 %2175
      %2178 = vset.pattern.permute.xlu0 2
      %2179 = vperm.xlu0 %2178, %v1937
      %v2180 = vpop.permute.xlu0 %2179
      %2182 = vset.pattern.permute.xlu0 2
      %2183 = vperm.xlu0 %2182, %v1938
      %v2184 = vpop.permute.xlu0 %2183
      %2186 = vset.pattern.permute.xlu0 2
      %2187 = vperm.xlu0 %2186, %v1939
      %v2188 = vpop.permute.xlu0 %2187
      %2190 = vset.pattern.permute.xlu0 2
      %2191 = vperm.xlu0 %2190, %v1940
      %v2192 = vpop.permute.xlu0 %2191
      %2194 = vset.pattern.permute.xlu0 2
      %2195 = vperm.xlu0 %2194, %v1941
      %v2196 = vpop.permute.xlu0 %2195
      %v2198 = vmul.f32 %v2038, %v2160
      %v2199 = vmul.f32 %v2039, %v2164
      %v2200 = vmul.f32 %v2040, %v2168
      %v2201 = vmul.f32 %v2041, %v2172
      %v2202 = vmul.f32 %v2042, %v2176
      %v2203 = vmul.f32 %v2043, %v2180
      %v2204 = vmul.f32 %v2044, %v2184
      %v2205 = vmul.f32 %v2045, %v2188
      %v2206 = vmul.f32 %v2046, %v2192
      %v2207 = vmul.f32 %v2047, %v2196
      %2208 = vset.pattern.permute.xlu0 3
      %2209 = vperm.xlu0 %2208, %v1932
      %v2210 = vpop.permute.xlu0 %2209
      %2212 = vset.pattern.permute.xlu0 3
      %2213 = vperm.xlu0 %2212, %v1933
      %v2214 = vpop.permute.xlu0 %2213
      %2216 = vset.pattern.permute.xlu0 3
      %2217 = vperm.xlu0 %2216, %v1934
      %v2218 = vpop.permute.xlu0 %2217
      %2220 = vset.pattern.permute.xlu0 3
      %2221 = vperm.xlu0 %2220, %v1935
      %v2222 = vpop.permute.xlu0 %2221
      %2224 = vset.pattern.permute.xlu0 3
      %2225 = vperm.xlu0 %2224, %v1936
      %v2226 = vpop.permute.xlu0 %2225
      %2228 = vset.pattern.permute.xlu0 3
      %2229 = vperm.xlu0 %2228, %v1937
      %v2230 = vpop.permute.xlu0 %2229
      %2232 = vset.pattern.permute.xlu0 3
      %2233 = vperm.xlu0 %2232, %v1938
      %v2234 = vpop.permute.xlu0 %2233
      %2236 = vset.pattern.permute.xlu0 3
      %2237 = vperm.xlu0 %2236, %v1939
      %v2238 = vpop.permute.xlu0 %2237
      %2240 = vset.pattern.permute.xlu0 3
      %2241 = vperm.xlu0 %2240, %v1940
      %v2242 = vpop.permute.xlu0 %2241
      %2244 = vset.pattern.permute.xlu0 3
      %2245 = vperm.xlu0 %2244, %v1941
      %v2246 = vpop.permute.xlu0 %2245
      %v2248 = vmul.f32 %v1900, %v2210
      %v2249 = vmul.f32 %v1903, %v2214
      %v2250 = vmul.f32 %v1908, %v2218
      %v2251 = vmul.f32 %v1911, %v2222
      %v2252 = vmul.f32 %v1916, %v2226
      %v2253 = vmul.f32 %v1919, %v2230
      %v2254 = vmul.f32 %v1924, %v2234
      %v2255 = vmul.f32 %v1927, %v2238
      %v2256 = vmul.f32 %v1930, %v2242
      %v2257 = vmul.f32 %v1931, %v2246
      %v2258 = vadd.f32 %v2098, %v2248
      %v2259 = vadd.f32 %v2099, %v2249
      %v2260 = vadd.f32 %v2100, %v2250
      %v2261 = vadd.f32 %v2101, %v2251
      %v2262 = vadd.f32 %v2102, %v2252
      %v2263 = vadd.f32 %v2103, %v2253
      %v2264 = vadd.f32 %v2104, %v2254
      %v2265 = vadd.f32 %v2105, %v2255
      %v2266 = vadd.f32 %v2106, %v2256
      %v2267 = vadd.f32 %v2107, %v2257
      %2268 = vset.pattern.permute.xlu0 4
      %2269 = vperm.xlu0 %2268, %v1932
      %v2270 = vpop.permute.xlu0 %2269
      %2272 = vset.pattern.permute.xlu0 4
      %2273 = vperm.xlu0 %2272, %v1933
      %v2274 = vpop.permute.xlu0 %2273
      %2276 = vset.pattern.permute.xlu0 4
      %2277 = vperm.xlu0 %2276, %v1934
      %v2278 = vpop.permute.xlu0 %2277
      %2280 = vset.pattern.permute.xlu0 4
      %2281 = vperm.xlu0 %2280, %v1935
      %v2282 = vpop.permute.xlu0 %2281
      %2284 = vset.pattern.permute.xlu0 4
      %2285 = vperm.xlu0 %2284, %v1936
      %v2286 = vpop.permute.xlu0 %2285
      %2288 = vset.pattern.permute.xlu0 4
      %2289 = vperm.xlu0 %2288, %v1937
      %v2290 = vpop.permute.xlu0 %2289
      %2292 = vset.pattern.permute.xlu0 4
      %2293 = vperm.xlu0 %2292, %v1938
      %v2294 = vpop.permute.xlu0 %2293
      %2296 = vset.pattern.permute.xlu0 4
      %2297 = vperm.xlu0 %2296, %v1939
      %v2298 = vpop.permute.xlu0 %2297
      %2300 = vset.pattern.permute.xlu0 4
      %2301 = vperm.xlu0 %2300, %v1940
      %v2302 = vpop.permute.xlu0 %2301
      %2304 = vset.pattern.permute.xlu0 4
      %2305 = vperm.xlu0 %2304, %v1941
      %v2306 = vpop.permute.xlu0 %2305
      %v2308 = vmul.f32 %v1900, %v2270
      %v2309 = vmul.f32 %v1903, %v2274
      %v2310 = vmul.f32 %v1908, %v2278
      %v2311 = vmul.f32 %v1911, %v2282
      %v2312 = vmul.f32 %v1916, %v2286
      %v2313 = vmul.f32 %v1919, %v2290
      %v2314 = vmul.f32 %v1924, %v2294
      %v2315 = vmul.f32 %v1927, %v2298
      %v2316 = vmul.f32 %v1930, %v2302
      %v2317 = vmul.f32 %v1931, %v2306
      %v2318 = vadd.f32 %v2148, %v2308
      %v2319 = vadd.f32 %v2149, %v2309
      %v2320 = vadd.f32 %v2150, %v2310
      %v2321 = vadd.f32 %v2151, %v2311
      %v2322 = vadd.f32 %v2152, %v2312
      %v2323 = vadd.f32 %v2153, %v2313
      %v2324 = vadd.f32 %v2154, %v2314
      %v2325 = vadd.f32 %v2155, %v2315
      %v2326 = vadd.f32 %v2156, %v2316
      %v2327 = vadd.f32 %v2157, %v2317
      %2328 = vset.pattern.permute.xlu0 5
      %2329 = vperm.xlu0 %2328, %v1932
      %v2330 = vpop.permute.xlu0 %2329
      %2332 = vset.pattern.permute.xlu0 5
      %2333 = vperm.xlu0 %2332, %v1933
      %v2334 = vpop.permute.xlu0 %2333
      %2336 = vset.pattern.permute.xlu0 5
      %2337 = vperm.xlu0 %2336, %v1934
      %v2338 = vpop.permute.xlu0 %2337
      %2340 = vset.pattern.permute.xlu0 5
      %2341 = vperm.xlu0 %2340, %v1935
      %v2342 = vpop.permute.xlu0 %2341
      %2344 = vset.pattern.permute.xlu0 5
      %2345 = vperm.xlu0 %2344, %v1936
      %v2346 = vpop.permute.xlu0 %2345
      %2348 = vset.pattern.permute.xlu0 5
      %2349 = vperm.xlu0 %2348, %v1937
      %v2350 = vpop.permute.xlu0 %2349
      %2352 = vset.pattern.permute.xlu0 5
      %2353 = vperm.xlu0 %2352, %v1938
      %v2354 = vpop.permute.xlu0 %2353
      %2356 = vset.pattern.permute.xlu0 5
      %2357 = vperm.xlu0 %2356, %v1939
      %v2358 = vpop.permute.xlu0 %2357
      %2360 = vset.pattern.permute.xlu0 5
      %2361 = vperm.xlu0 %2360, %v1940
      %v2362 = vpop.permute.xlu0 %2361
      %2364 = vset.pattern.permute.xlu0 5
      %2365 = vperm.xlu0 %2364, %v1941
      %v2366 = vpop.permute.xlu0 %2365
      %v2368 = vmul.f32 %v1900, %v2330
      %v2369 = vmul.f32 %v1903, %v2334
      %v2370 = vmul.f32 %v1908, %v2338
      %v2371 = vmul.f32 %v1911, %v2342
      %v2372 = vmul.f32 %v1916, %v2346
      %v2373 = vmul.f32 %v1919, %v2350
      %v2374 = vmul.f32 %v1924, %v2354
      %v2375 = vmul.f32 %v1927, %v2358
      %v2376 = vmul.f32 %v1930, %v2362
      %v2377 = vmul.f32 %v1931, %v2366
      %v2378 = vadd.f32 %v2198, %v2368
      %v2379 = vadd.f32 %v2199, %v2369
      %v2380 = vadd.f32 %v2200, %v2370
      %v2381 = vadd.f32 %v2201, %v2371
      %v2382 = vadd.f32 %v2202, %v2372
      %v2383 = vadd.f32 %v2203, %v2373
      %v2384 = vadd.f32 %v2204, %v2374
      %v2385 = vadd.f32 %v2205, %v2375
      %v2386 = vadd.f32 %v2206, %v2376
      %v2387 = vadd.f32 %v2207, %v2377
      %2388 = vrot.lane.b32.xlu0 %v1900, 120
      %v2389 = vpop.permute.xlu0 %2388
      %2390 = vrot.lane.b32.xlu0 %v1903, 120
      %v2391 = vpop.permute.xlu0 %2390
      %2392 = vrot.lane.b32.xlu0 %v1908, 120
      %v2393 = vpop.permute.xlu0 %2392
      %2394 = vrot.lane.b32.xlu0 %v1911, 120
      %v2395 = vpop.permute.xlu0 %2394
      %2396 = vrot.lane.b32.xlu0 %v1916, 120
      %v2397 = vpop.permute.xlu0 %2396
      %2398 = vrot.lane.b32.xlu0 %v1919, 120
      %v2399 = vpop.permute.xlu0 %2398
      %2400 = vrot.lane.b32.xlu0 %v1924, 120
      %v2401 = vpop.permute.xlu0 %2400
      %2402 = vrot.lane.b32.xlu0 %v1927, 120
      %v2403 = vpop.permute.xlu0 %2402
      %2404 = vrot.lane.b32.xlu0 %v1930, 120
      %v2405 = vpop.permute.xlu0 %2404
      %2406 = vrot.lane.b32.xlu0 %v1931, 120
      %v2407 = vpop.permute.xlu0 %2406
      %2418 = vrot.lane.b32.xlu0 %v1900, 56
      %v2419 = vpop.permute.xlu0 %2418
      %2420 = vrot.lane.b32.xlu0 %v1903, 56
      %v2421 = vpop.permute.xlu0 %2420
      %2422 = vrot.lane.b32.xlu0 %v1908, 56
      %v2423 = vpop.permute.xlu0 %2422
      %2424 = vrot.lane.b32.xlu0 %v1911, 56
      %v2425 = vpop.permute.xlu0 %2424
      %2426 = vrot.lane.b32.xlu0 %v1916, 56
      %v2427 = vpop.permute.xlu0 %2426
      %2428 = vrot.lane.b32.xlu0 %v1919, 56
      %v2429 = vpop.permute.xlu0 %2428
      %2430 = vrot.lane.b32.xlu0 %v1924, 56
      %v2431 = vpop.permute.xlu0 %2430
      %2432 = vrot.lane.b32.xlu0 %v1927, 56
      %v2433 = vpop.permute.xlu0 %2432
      %2434 = vrot.lane.b32.xlu0 %v1930, 56
      %v2435 = vpop.permute.xlu0 %2434
      %2436 = vrot.lane.b32.xlu0 %v1931, 56
      %v2437 = vpop.permute.xlu0 %2436
      %vm2448 = vcmask 457728
      %v2449 = vsel %vm2448, %v2389, %v2419
      %v2450 = vsel %vm2448, %v2391, %v2421
      %v2451 = vsel %vm2448, %v2393, %v2423
      %v2452 = vsel %vm2448, %v2395, %v2425
      %v2453 = vsel %vm2448, %v2397, %v2427
      %v2454 = vsel %vm2448, %v2399, %v2429
      %v2455 = vsel %vm2448, %v2401, %v2431
      %v2456 = vsel %vm2448, %v2403, %v2433
      %v2457 = vsel %vm2448, %v2405, %v2435
      %v2458 = vsel %vm2448, %v2407, %v2437
      %v2459 = vlaneseq
      %v2460 = vshrl.u32 %v2459, 7
      %v2461 = vsub.s32 1, %v2460
      %v2462 = vrot.slane %v1952, %v2461
      %v2463 = vmul.f32 %v2449, %v2462
      %v2464 = vmul.f32 %v2450, %v2462
      %v2465 = vmul.f32 %v2451, %v2462
      %v2466 = vmul.f32 %v2452, %v2462
      %v2467 = vmul.f32 %v2453, %v2462
      %v2468 = vmul.f32 %v2454, %v2462
      %v2469 = vmul.f32 %v2455, %v2462
      %v2470 = vmul.f32 %v2456, %v2462
      %v2471 = vmul.f32 %v2457, %v2462
      %v2472 = vmul.f32 %v2458, %v2462
      %2473 = vset.pattern.permute.xlu0 6
      %2474 = vperm.xlu0 %2473, %v1932
      %v2475 = vpop.permute.xlu0 %2474
      %2477 = vset.pattern.permute.xlu0 6
      %2478 = vperm.xlu0 %2477, %v1933
      %v2479 = vpop.permute.xlu0 %2478
      %2481 = vset.pattern.permute.xlu0 6
      %2482 = vperm.xlu0 %2481, %v1934
      %v2483 = vpop.permute.xlu0 %2482
      %2485 = vset.pattern.permute.xlu0 6
      %2486 = vperm.xlu0 %2485, %v1935
      %v2487 = vpop.permute.xlu0 %2486
      %2489 = vset.pattern.permute.xlu0 6
      %2490 = vperm.xlu0 %2489, %v1936
      %v2491 = vpop.permute.xlu0 %2490
      %2493 = vset.pattern.permute.xlu0 6
      %2494 = vperm.xlu0 %2493, %v1937
      %v2495 = vpop.permute.xlu0 %2494
      %2497 = vset.pattern.permute.xlu0 6
      %2498 = vperm.xlu0 %2497, %v1938
      %v2499 = vpop.permute.xlu0 %2498
      %2501 = vset.pattern.permute.xlu0 6
      %2502 = vperm.xlu0 %2501, %v1939
      %v2503 = vpop.permute.xlu0 %2502
      %2505 = vset.pattern.permute.xlu0 6
      %2506 = vperm.xlu0 %2505, %v1940
      %v2507 = vpop.permute.xlu0 %2506
      %2509 = vset.pattern.permute.xlu0 6
      %2510 = vperm.xlu0 %2509, %v1941
      %v2511 = vpop.permute.xlu0 %2510
      %v2513 = vmul.f32 %v2463, %v2475
      %v2514 = vmul.f32 %v2464, %v2479
      %v2515 = vmul.f32 %v2465, %v2483
      %v2516 = vmul.f32 %v2466, %v2487
      %v2517 = vmul.f32 %v2467, %v2491
      %v2518 = vmul.f32 %v2468, %v2495
      %v2519 = vmul.f32 %v2469, %v2499
      %v2520 = vmul.f32 %v2470, %v2503
      %v2521 = vmul.f32 %v2471, %v2507
      %v2522 = vmul.f32 %v2472, %v2511
      %v2523 = vadd.f32 %v2258, %v2513
      %v2524 = vadd.f32 %v2259, %v2514
      %v2525 = vadd.f32 %v2260, %v2515
      %v2526 = vadd.f32 %v2261, %v2516
      %v2527 = vadd.f32 %v2262, %v2517
      %v2528 = vadd.f32 %v2263, %v2518
      %v2529 = vadd.f32 %v2264, %v2519
      %v2530 = vadd.f32 %v2265, %v2520
      %v2531 = vadd.f32 %v2266, %v2521
      %v2532 = vadd.f32 %v2267, %v2522
      %2533 = vset.pattern.permute.xlu0 7
      %2534 = vperm.xlu0 %2533, %v1932
      %v2535 = vpop.permute.xlu0 %2534
      %2537 = vset.pattern.permute.xlu0 7
      %2538 = vperm.xlu0 %2537, %v1933
      %v2539 = vpop.permute.xlu0 %2538
      %2541 = vset.pattern.permute.xlu0 7
      %2542 = vperm.xlu0 %2541, %v1934
      %v2543 = vpop.permute.xlu0 %2542
      %2545 = vset.pattern.permute.xlu0 7
      %2546 = vperm.xlu0 %2545, %v1935
      %v2547 = vpop.permute.xlu0 %2546
      %2549 = vset.pattern.permute.xlu0 7
      %2550 = vperm.xlu0 %2549, %v1936
      %v2551 = vpop.permute.xlu0 %2550
      %2553 = vset.pattern.permute.xlu0 7
      %2554 = vperm.xlu0 %2553, %v1937
      %v2555 = vpop.permute.xlu0 %2554
      %2557 = vset.pattern.permute.xlu0 7
      %2558 = vperm.xlu0 %2557, %v1938
      %v2559 = vpop.permute.xlu0 %2558
      %2561 = vset.pattern.permute.xlu0 7
      %2562 = vperm.xlu0 %2561, %v1939
      %v2563 = vpop.permute.xlu0 %2562
      %2565 = vset.pattern.permute.xlu0 7
      %2566 = vperm.xlu0 %2565, %v1940
      %v2567 = vpop.permute.xlu0 %2566
      %2569 = vset.pattern.permute.xlu0 7
      %2570 = vperm.xlu0 %2569, %v1941
      %v2571 = vpop.permute.xlu0 %2570
      %v2573 = vmul.f32 %v2463, %v2535
      %v2574 = vmul.f32 %v2464, %v2539
      %v2575 = vmul.f32 %v2465, %v2543
      %v2576 = vmul.f32 %v2466, %v2547
      %v2577 = vmul.f32 %v2467, %v2551
      %v2578 = vmul.f32 %v2468, %v2555
      %v2579 = vmul.f32 %v2469, %v2559
      %v2580 = vmul.f32 %v2470, %v2563
      %v2581 = vmul.f32 %v2471, %v2567
      %v2582 = vmul.f32 %v2472, %v2571
      %v2583 = vadd.f32 %v2318, %v2573
      %v2584 = vadd.f32 %v2319, %v2574
      %v2585 = vadd.f32 %v2320, %v2575
      %v2586 = vadd.f32 %v2321, %v2576
      %v2587 = vadd.f32 %v2322, %v2577
      %v2588 = vadd.f32 %v2323, %v2578
      %v2589 = vadd.f32 %v2324, %v2579
      %v2590 = vadd.f32 %v2325, %v2580
      %v2591 = vadd.f32 %v2326, %v2581
      %v2592 = vadd.f32 %v2327, %v2582
      %2593 = vset.pattern.permute.xlu0 8
      %2594 = vperm.xlu0 %2593, %v1932
      %v2595 = vpop.permute.xlu0 %2594
      %2597 = vset.pattern.permute.xlu0 8
      %2598 = vperm.xlu0 %2597, %v1933
      %v2599 = vpop.permute.xlu0 %2598
      %2601 = vset.pattern.permute.xlu0 8
      %2602 = vperm.xlu0 %2601, %v1934
      %v2603 = vpop.permute.xlu0 %2602
      %2605 = vset.pattern.permute.xlu0 8
      %2606 = vperm.xlu0 %2605, %v1935
      %v2607 = vpop.permute.xlu0 %2606
      %2609 = vset.pattern.permute.xlu0 8
      %2610 = vperm.xlu0 %2609, %v1936
      %v2611 = vpop.permute.xlu0 %2610
      %2613 = vset.pattern.permute.xlu0 8
      %2614 = vperm.xlu0 %2613, %v1937
      %v2615 = vpop.permute.xlu0 %2614
      %2617 = vset.pattern.permute.xlu0 8
      %2618 = vperm.xlu0 %2617, %v1938
      %v2619 = vpop.permute.xlu0 %2618
      %2621 = vset.pattern.permute.xlu0 8
      %2622 = vperm.xlu0 %2621, %v1939
      %v2623 = vpop.permute.xlu0 %2622
      %2625 = vset.pattern.permute.xlu0 8
      %2626 = vperm.xlu0 %2625, %v1940
      %v2627 = vpop.permute.xlu0 %2626
      %2629 = vset.pattern.permute.xlu0 8
      %2630 = vperm.xlu0 %2629, %v1941
      %v2631 = vpop.permute.xlu0 %2630
      %v2633 = vmul.f32 %v2463, %v2595
      %v2634 = vmul.f32 %v2464, %v2599
      %v2635 = vmul.f32 %v2465, %v2603
      %v2636 = vmul.f32 %v2466, %v2607
      %v2637 = vmul.f32 %v2467, %v2611
      %v2638 = vmul.f32 %v2468, %v2615
      %v2639 = vmul.f32 %v2469, %v2619
      %v2640 = vmul.f32 %v2470, %v2623
      %v2641 = vmul.f32 %v2471, %v2627
      %v2642 = vmul.f32 %v2472, %v2631
      %v2643 = vadd.f32 %v2378, %v2633
      %v2644 = vadd.f32 %v2379, %v2634
      %v2645 = vadd.f32 %v2380, %v2635
      %v2646 = vadd.f32 %v2381, %v2636
      %v2647 = vadd.f32 %v2382, %v2637
      %v2648 = vadd.f32 %v2383, %v2638
      %v2649 = vadd.f32 %v2384, %v2639
      %v2650 = vadd.f32 %v2385, %v2640
      %v2651 = vadd.f32 %v2386, %v2641
      %v2652 = vadd.f32 %v2387, %v2642
      %2663 = vrot.lane.b32.xlu0 %v2523, 65
      %v2664 = vpop.permute.xlu0 %2663
      %2665 = vrot.lane.b32.xlu0 %v2524, 65
      %v2666 = vpop.permute.xlu0 %2665
      %2667 = vrot.lane.b32.xlu0 %v2525, 65
      %v2668 = vpop.permute.xlu0 %2667
      %2669 = vrot.lane.b32.xlu0 %v2526, 65
      %v2670 = vpop.permute.xlu0 %2669
      %2671 = vrot.lane.b32.xlu0 %v2527, 65
      %v2672 = vpop.permute.xlu0 %2671
      %2673 = vrot.lane.b32.xlu0 %v2528, 65
      %v2674 = vpop.permute.xlu0 %2673
      %2675 = vrot.lane.b32.xlu0 %v2529, 65
      %v2676 = vpop.permute.xlu0 %2675
      %2677 = vrot.lane.b32.xlu0 %v2530, 65
      %v2678 = vpop.permute.xlu0 %2677
      %2679 = vrot.lane.b32.xlu0 %v2531, 65
      %v2680 = vpop.permute.xlu0 %2679
      %2681 = vrot.lane.b32.xlu0 %v2532, 65
      %v2682 = vpop.permute.xlu0 %2681
      %2693 = vrot.lane.b32.xlu0 %v2523, 1
      %v2694 = vpop.permute.xlu0 %2693
      %2695 = vrot.lane.b32.xlu0 %v2524, 1
      %v2696 = vpop.permute.xlu0 %2695
      %2697 = vrot.lane.b32.xlu0 %v2525, 1
      %v2698 = vpop.permute.xlu0 %2697
      %2699 = vrot.lane.b32.xlu0 %v2526, 1
      %v2700 = vpop.permute.xlu0 %2699
      %2701 = vrot.lane.b32.xlu0 %v2527, 1
      %v2702 = vpop.permute.xlu0 %2701
      %2703 = vrot.lane.b32.xlu0 %v2528, 1
      %v2704 = vpop.permute.xlu0 %2703
      %2705 = vrot.lane.b32.xlu0 %v2529, 1
      %v2706 = vpop.permute.xlu0 %2705
      %2707 = vrot.lane.b32.xlu0 %v2530, 1
      %v2708 = vpop.permute.xlu0 %2707
      %2709 = vrot.lane.b32.xlu0 %v2531, 1
      %v2710 = vpop.permute.xlu0 %2709
      %2711 = vrot.lane.b32.xlu0 %v2532, 1
      %v2712 = vpop.permute.xlu0 %2711
      %v2723 = vsel %vm1531, %v2664, %v2694
      %v2724 = vsel %vm1531, %v2666, %v2696
      %v2725 = vsel %vm1531, %v2668, %v2698
      %v2726 = vsel %vm1531, %v2670, %v2700
      %v2727 = vsel %vm1531, %v2672, %v2702
      %v2728 = vsel %vm1531, %v2674, %v2704
      %v2729 = vsel %vm1531, %v2676, %v2706
      %v2730 = vsel %vm1531, %v2678, %v2708
      %v2731 = vsel %vm1531, %v2680, %v2710
      %v2732 = vsel %vm1531, %v2682, %v2712
      %v2733 = vlaneseq
      %v2734 = vshrl.u32 %v2733, 7
      %v2735 = vsub.s32 2, %v2734
      %v2736 = vrot.slane %v1952, %v2735
      %v2737 = vmul.f32 %v2723, %v2736
      %v2738 = vmul.f32 %v2724, %v2736
      %v2739 = vmul.f32 %v2725, %v2736
      %v2740 = vmul.f32 %v2726, %v2736
      %v2741 = vmul.f32 %v2727, %v2736
      %v2742 = vmul.f32 %v2728, %v2736
      %v2743 = vmul.f32 %v2729, %v2736
      %v2744 = vmul.f32 %v2730, %v2736
      %v2745 = vmul.f32 %v2731, %v2736
      %v2746 = vmul.f32 %v2732, %v2736
      %v2747 = vadd.f32 %v2583, %v2737
      %v2748 = vadd.f32 %v2584, %v2738
      %v2749 = vadd.f32 %v2585, %v2739
      %v2750 = vadd.f32 %v2586, %v2740
      %v2751 = vadd.f32 %v2587, %v2741
      %v2752 = vadd.f32 %v2588, %v2742
      %v2753 = vadd.f32 %v2589, %v2743
      %v2754 = vadd.f32 %v2590, %v2744
      %v2755 = vadd.f32 %v2591, %v2745
      %v2756 = vadd.f32 %v2592, %v2746
      %2767 = vrot.lane.b32.xlu0 %v2643, 127
      %v2768 = vpop.permute.xlu0 %2767
      %2769 = vrot.lane.b32.xlu0 %v2644, 127
      %v2770 = vpop.permute.xlu0 %2769
      %2771 = vrot.lane.b32.xlu0 %v2645, 127
      %v2772 = vpop.permute.xlu0 %2771
      %2773 = vrot.lane.b32.xlu0 %v2646, 127
      %v2774 = vpop.permute.xlu0 %2773
      %2775 = vrot.lane.b32.xlu0 %v2647, 127
      %v2776 = vpop.permute.xlu0 %2775
      %2777 = vrot.lane.b32.xlu0 %v2648, 127
      %v2778 = vpop.permute.xlu0 %2777
      %2779 = vrot.lane.b32.xlu0 %v2649, 127
      %v2780 = vpop.permute.xlu0 %2779
      %2781 = vrot.lane.b32.xlu0 %v2650, 127
      %v2782 = vpop.permute.xlu0 %2781
      %2783 = vrot.lane.b32.xlu0 %v2651, 127
      %v2784 = vpop.permute.xlu0 %2783
      %2785 = vrot.lane.b32.xlu0 %v2652, 127
      %v2786 = vpop.permute.xlu0 %2785
      %2797 = vrot.lane.b32.xlu0 %v2643, 63
      %v2798 = vpop.permute.xlu0 %2797
      %2799 = vrot.lane.b32.xlu0 %v2644, 63
      %v2800 = vpop.permute.xlu0 %2799
      %2801 = vrot.lane.b32.xlu0 %v2645, 63
      %v2802 = vpop.permute.xlu0 %2801
      %2803 = vrot.lane.b32.xlu0 %v2646, 63
      %v2804 = vpop.permute.xlu0 %2803
      %2805 = vrot.lane.b32.xlu0 %v2647, 63
      %v2806 = vpop.permute.xlu0 %2805
      %2807 = vrot.lane.b32.xlu0 %v2648, 63
      %v2808 = vpop.permute.xlu0 %2807
      %2809 = vrot.lane.b32.xlu0 %v2649, 63
      %v2810 = vpop.permute.xlu0 %2809
      %2811 = vrot.lane.b32.xlu0 %v2650, 63
      %v2812 = vpop.permute.xlu0 %2811
      %2813 = vrot.lane.b32.xlu0 %v2651, 63
      %v2814 = vpop.permute.xlu0 %2813
      %2815 = vrot.lane.b32.xlu0 %v2652, 63
      %v2816 = vpop.permute.xlu0 %2815
      %vm2827 = vcmask 515072
      %v2828 = vsel %vm2827, %v2768, %v2798
      %v2829 = vsel %vm2827, %v2770, %v2800
      %v2830 = vsel %vm2827, %v2772, %v2802
      %v2831 = vsel %vm2827, %v2774, %v2804
      %v2832 = vsel %vm2827, %v2776, %v2806
      %v2833 = vsel %vm2827, %v2778, %v2808
      %v2834 = vsel %vm2827, %v2780, %v2810
      %v2835 = vsel %vm2827, %v2782, %v2812
      %v2836 = vsel %vm2827, %v2784, %v2814
      %v2837 = vsel %vm2827, %v2786, %v2816
      %v2838 = vlaneseq
      %v2839 = vshrl.u32 %v2838, 7
      %v2840 = vsub.s32 3, %v2839
      %v2841 = vrot.slane %v1952, %v2840
      %v2842 = vmul.f32 %v2828, %v2841
      %v2843 = vmul.f32 %v2829, %v2841
      %v2844 = vmul.f32 %v2830, %v2841
      %v2845 = vmul.f32 %v2831, %v2841
      %v2846 = vmul.f32 %v2832, %v2841
      %v2847 = vmul.f32 %v2833, %v2841
      %v2848 = vmul.f32 %v2834, %v2841
      %v2849 = vmul.f32 %v2835, %v2841
      %v2850 = vmul.f32 %v2836, %v2841
      %v2851 = vmul.f32 %v2837, %v2841
      %v2852 = vadd.f32 %v2747, %v2842
      %v2853 = vadd.f32 %v2748, %v2843
      %v2854 = vadd.f32 %v2749, %v2844
      %v2855 = vadd.f32 %v2750, %v2845
      %v2856 = vadd.f32 %v2751, %v2846
      %v2857 = vadd.f32 %v2752, %v2847
      %v2858 = vadd.f32 %v2753, %v2848
      %v2859 = vadd.f32 %v2754, %v2849
      %v2860 = vadd.f32 %v2755, %v2850
      %v2861 = vadd.f32 %v2756, %v2851
      %2863 = vset.pattern.permute.xlu0 0
      %2864 = vperm.xlu0 %2863, %v1942
      %v2865 = vpop.permute.xlu0 %2864
      %2868 = vset.pattern.permute.xlu0 0
      %2869 = vperm.xlu0 %2868, %v1943
      %v2870 = vpop.permute.xlu0 %2869
      %2873 = vset.pattern.permute.xlu0 0
      %2874 = vperm.xlu0 %2873, %v1944
      %v2875 = vpop.permute.xlu0 %2874
      %2878 = vset.pattern.permute.xlu0 0
      %2879 = vperm.xlu0 %2878, %v1945
      %v2880 = vpop.permute.xlu0 %2879
      %2883 = vset.pattern.permute.xlu0 0
      %2884 = vperm.xlu0 %2883, %v1946
      %v2885 = vpop.permute.xlu0 %2884
      %2888 = vset.pattern.permute.xlu0 0
      %2889 = vperm.xlu0 %2888, %v1947
      %v2890 = vpop.permute.xlu0 %2889
      %2893 = vset.pattern.permute.xlu0 0
      %2894 = vperm.xlu0 %2893, %v1948
      %v2895 = vpop.permute.xlu0 %2894
      %2898 = vset.pattern.permute.xlu0 0
      %2899 = vperm.xlu0 %2898, %v1949
      %v2900 = vpop.permute.xlu0 %2899
      %2903 = vset.pattern.permute.xlu0 0
      %2904 = vperm.xlu0 %2903, %v1950
      %v2905 = vpop.permute.xlu0 %2904
      %2908 = vset.pattern.permute.xlu0 0
      %2909 = vperm.xlu0 %2908, %v1951
      %v2910 = vpop.permute.xlu0 %2909
      %v2912 = vadd.f32 %v2852, %v2865
      %v2913 = vadd.f32 %v2853, %v2870
      %v2914 = vadd.f32 %v2854, %v2875
      %v2915 = vadd.f32 %v2855, %v2880
      %v2916 = vadd.f32 %v2856, %v2885
      %v2917 = vadd.f32 %v2857, %v2890
      %v2918 = vadd.f32 %v2858, %v2895
      %v2919 = vadd.f32 %v2859, %v2900
      %v2920 = vadd.f32 %v2860, %v2905
      %v2921 = vadd.f32 %v2861, %v2910
      %v2922 = vmul.f32 %v2912, 0.01
      %v2923 = vmul.f32 %v2913, 0.01
      %v2924 = vmul.f32 %v2914, 0.01
      %v2925 = vmul.f32 %v2915, 0.01
      %v2926 = vmul.f32 %v2916, 0.01
      %v2927 = vmul.f32 %v2917, 0.01
      %v2928 = vmul.f32 %v2918, 0.01
      %v2929 = vmul.f32 %v2919, 0.01
      %v2930 = vmul.f32 %v2920, 0.01
      %v2931 = vmul.f32 %v2921, 0.01
      %v2932 = vmax.f32 %v2912, %v2922
      %v2933 = vmax.f32 %v2913, %v2923
      %v2934 = vmax.f32 %v2914, %v2924
      %v2935 = vmax.f32 %v2915, %v2925
      %v2936 = vmax.f32 %v2916, %v2926
      %v2937 = vmax.f32 %v2917, %v2927
      %v2938 = vmax.f32 %v2918, %v2928
      %v2939 = vmax.f32 %v2919, %v2929
      %v2940 = vmax.f32 %v2920, %v2930
      %v2941 = vmax.f32 %v2921, %v2931
      %v2942 = vld [vmem:[%s31] sm:$0xf]
      %v2943 = vld [vmem:[%s31 + $0x4] sm:$0xf]
      %v2944 = vld [vmem:[%s31 + $0x8] sm:$0xf]
      %v2945 = vld [vmem:[%s31 + $0xc] sm:$0xf]
      %v2946 = vpack.c.bf16 %v2933, %v2932
      %v2947 = vpack.c.bf16 %v2935, %v2934
      %v2948 = vpack.c.bf16 %v2937, %v2936
      %v2949 = vpack.c.bf16 %v2939, %v2938
      %v2950 = vpack.c.bf16 %v2941, %v2940
      %v2951 = vld [vmem:[%s33] sm:$0xff]
      %v2952 = vld [vmem:[%s33 + $0x8] sm:$0xff]
      %v2953 = vld [vmem:[%s33 + $0x10] sm:$0xff]
      %v2954 = vld [vmem:[%s33 + $0x18] sm:$0xff]
      %2956 = vset.pattern.permute.xlu0 0
      %2957 = vperm.xlu0 %2956, %v2951
      %v2958 = vpop.permute.xlu0 %2957
      %2961 = vset.pattern.permute.xlu0 0
      %2962 = vperm.xlu0 %2961, %v2952
      %v2963 = vpop.permute.xlu0 %2962
      %2966 = vset.pattern.permute.xlu0 0
      %2967 = vperm.xlu0 %2966, %v2953
      %v2968 = vpop.permute.xlu0 %2967
      %2971 = vset.pattern.permute.xlu0 0
      %2972 = vperm.xlu0 %2971, %v2954
      %v2973 = vpop.permute.xlu0 %2972
      %v2979 = vunpack.c.l.b16 %v2942
      %v2980 = vunpack.c.l.b16 %v2943
      %v2981 = vunpack.c.l.b16 %v2944
      %v2982 = vunpack.c.l.b16 %v2945
      %v2983 = vpack.c.b16 %v2980, %v2979
      %v2984 = vpack.c.b16 %v2982, %v2981
      %vm2985 = vcmask 654336
      %v2987 = vsel %vm2985, %v2983, 0
      %v2990 = vsel %vm2985, %v2984, 0
      %2992 = vmatprep.subr.bf16.mxu0 0
      %2993 = vmatpush1.bf16.msra.mxu0 %v2946
      %2994 = vmatprep.subr.bf16.mxu0 0
      %2995 = vmatpush1.bf16.msra.mxu0 %v2947
      %2996 = vmatprep.subr.bf16.mxu0 0
      %2997 = vmatpush1.bf16.msra.mxu0 %v2948
      %2998 = vmatprep.subr.bf16.mxu0 0
      %2999 = vmatpush1.bf16.msra.mxu0 %v2949
      %3000 = vmatprep.subr.bf16.mxu0 0
      %3001 = vmatpush1.bf16.msra.mxu0 %v2950
      %3002 = vmatprep.subr.bf16.mxu0 0
      %3003 = vmatpush1.bf16.msra.mxu0 0
      %3004 = vmatprep.subr.bf16.mxu0 0
      %3005 = vmatpush1.bf16.msra.mxu0 0
      %3006 = vmatprep.subr.bf16.mxu0 0
      %3007 = vmatpush1.bf16.msra.mxu0 0
      %3008 = vmatprep.subr.bf16.mxu0 0
      %3009 = vmatpush1.bf16.msra.mxu0 0
      %3010 = vmatprep.subr.bf16.mxu0 0
      %3011 = vmatpush1.bf16.msra.mxu0 0
      %3012 = vmatprep.subr.bf16.mxu0 0
      %3013 = vmatpush1.bf16.msra.mxu0 0
      %3014 = vmatprep.subr.bf16.mxu0 0
      %3015 = vmatpush1.bf16.msra.mxu0 0
      %3016 = vmatprep.subr.bf16.mxu0 0
      %3017 = vmatpush1.bf16.msra.mxu0 0
      %3018 = vmatprep.subr.bf16.mxu0 0
      %3019 = vmatpush1.bf16.msra.mxu0 0
      %3020 = vmatprep.subr.bf16.mxu0 0
      %3021 = vmatpush1.bf16.msra.mxu0 0
      %3022 = vmatprep.subr.bf16.mxu0 0
      %3023 = vmatpush1.bf16.msra.mxu0 0
      %3024 = vmatprep.mubr.bf16.mxu0 0
      %3025 = vmatmul.mubr.bf16.gmra.mrb[0].mxu0 %v2987
      %v3026 = vpop.f32.mrb[0].mxu0
      %v3027 = vadd.f32 %v2958, %v3026
      %v3028 = vpop.f32.mrb[0].mxu0
      %v3029 = vpop.f32.mrb[0].mxu0
      %v3030 = vadd.f32 %v2963, %v3029
      %v3031 = vpop.f32.mrb[0].mxu0
      %3032 = vmatprep.mubr.bf16.mxu0 0
      %3033 = vmatmul.mubr.bf16.gmra.mrb[0].mxu0 %v2990
      %v3034 = vpop.f32.mrb[0].mxu0
      %v3035 = vadd.f32 %v2968, %v3034
      %v3036 = vpop.f32.mrb[0].mxu0
      %v3037 = vpop.f32.mrb[0].mxu0
      %v3038 = vadd.f32 %v2973, %v3037
      %v3039 = vpop.f32.mrb[0].mxu0
      %3040 = vdwg.mxu0
      %v3041 = vmul.f32 %v3027, 0.01
      %v3042 = vmul.f32 %v3030, 0.01
      %v3043 = vmul.f32 %v3035, 0.01
      %v3044 = vmul.f32 %v3038, 0.01
      %v3045 = vmax.f32 %v3027, %v3041
      %v3046 = vmax.f32 %v3030, %v3042
      %v3047 = vmax.f32 %v3035, %v3043
      %v3048 = vmax.f32 %v3038, %v3044
      %v3049 = vpack.c.bf16 %v3046, %v3045
      %v3050 = vpack.c.bf16 %v3048, %v3047
      %v3051 = vld [vmem:[%s35] sm:$0xff]
      %v3052 = vld [vmem:[%s35 + $0x8] sm:$0xff]
      %v3053 = vld [vmem:[%s35 + $0x10] sm:$0xff]
      %v3054 = vld [vmem:[%s35 + $0x18] sm:$0xff]
      %v3055 = vld [vmem:[%s35 + $0x20] sm:$0xff]
      %v3056 = vld [vmem:[%s35 + $0x28] sm:$0xff]
      %v3057 = vld [vmem:[%s35 + $0x30] sm:$0xff]
      %v3058 = vld [vmem:[%s35 + $0x38] sm:$0xff]
      %v3067 = vunpack.c.l.b16 %v3051
      %v3068 = vunpack.c.h.b16 %v3051
      %v3069 = vunpack.c.l.b16 %v3052
      %v3070 = vunpack.c.h.b16 %v3052
      %v3071 = vunpack.c.l.b16 %v3053
      %v3072 = vunpack.c.h.b16 %v3053
      %v3073 = vunpack.c.l.b16 %v3054
      %v3074 = vunpack.c.h.b16 %v3054
      %v3075 = vunpack.c.l.b16 %v3055
      %v3076 = vunpack.c.h.b16 %v3055
      %v3077 = vunpack.c.l.b16 %v3056
      %v3078 = vunpack.c.h.b16 %v3056
      %v3079 = vunpack.c.l.b16 %v3057
      %v3080 = vunpack.c.h.b16 %v3057
      %v3081 = vunpack.c.l.b16 %v3058
      %v3082 = vunpack.c.h.b16 %v3058
      %v3083 = vpack.c.b16 %v3069, %v3067
      %v3084 = vpack.c.b16 %v3070, %v3068
      %v3085 = vpack.c.b16 %v3073, %v3071
      %v3086 = vpack.c.b16 %v3074, %v3072
      %v3087 = vpack.c.b16 %v3077, %v3075
      %v3088 = vpack.c.b16 %v3078, %v3076
      %v3089 = vpack.c.b16 %v3081, %v3079
      %v3090 = vpack.c.b16 %v3082, %v3080
      %vm3099 = vcmask 523264
      %v3101 = vsel %vm3099, %v3049, 0
      %v3104 = vsel %vm3099, %v3050, 0
      %3106 = vmatprep.subr.bf16.mxu0 %v3084
      %3107 = vmatpush1.bf16.msra.mxu0 %v3083
      %3108 = vmatprep.subr.bf16.mxu0 %v3086
      %3109 = vmatpush1.bf16.msra.mxu0 %v3085
      %3110 = vmatprep.subr.bf16.mxu0 %v3088
      %3111 = vmatpush1.bf16.msra.mxu0 %v3087
      %3112 = vmatprep.subr.bf16.mxu0 %v3090
      %3113 = vmatpush1.bf16.msra.mxu0 %v3089
      %3114 = vmatprep.subr.bf16.mxu0 0
      %3115 = vmatpush1.bf16.msra.mxu0 0
      %3116 = vmatprep.subr.bf16.mxu0 0
      %3117 = vmatpush1.bf16.msra.mxu0 0
      %3118 = vmatprep.subr.bf16.mxu0 0
      %3119 = vmatpush1.bf16.msra.mxu0 0
      %3120 = vmatprep.subr.bf16.mxu0 0
      %3121 = vmatpush1.bf16.msra.mxu0 0
      %3122 = vmatprep.subr.bf16.mxu0 0
      %3123 = vmatpush1.bf16.msra.mxu0 0
      %3124 = vmatprep.subr.bf16.mxu0 0
      %3125 = vmatpush1.bf16.msra.mxu0 0
      %3126 = vmatprep.subr.bf16.mxu0 0
      %3127 = vmatpush1.bf16.msra.mxu0 0
      %3128 = vmatprep.subr.bf16.mxu0 0
      %3129 = vmatpush1.bf16.msra.mxu0 0
      %3130 = vmatprep.subr.bf16.mxu0 0
      %3131 = vmatpush1.bf16.msra.mxu0 0
      %3132 = vmatprep.subr.bf16.mxu0 0
      %3133 = vmatpush1.bf16.msra.mxu0 0
      %3134 = vmatprep.subr.bf16.mxu0 0
      %3135 = vmatpush1.bf16.msra.mxu0 0
      %3136 = vmatprep.subr.bf16.mxu0 0
      %3137 = vmatpush1.bf16.msra.mxu0 0
      %3138 = vmatprep.mubr.bf16.mxu0 0
      %3139 = vmatmul.mubr.bf16.gmra.mrb[0].mxu0 %v3101
      %v3140 = vpop.f32.mrb[0].mxu0
      %v3141 = vadd.f32 0.0, %v3140
      %v3142 = vpop.f32.mrb[0].mxu0
      %v3143 = vadd.f32 0.0, %v3142
      %v3144 = vpop.f32.mrb[0].mxu0
      %v3145 = vadd.f32 0.0, %v3144
      %v3146 = vpop.f32.mrb[0].mxu0
      %v3147 = vadd.f32 0.0, %v3146
      %3148 = vmatprep.mubr.bf16.mxu0 0
      %3149 = vmatmul.mubr.bf16.gmra.mrb[0].mxu0 %v3104
      %v3150 = vpop.f32.mrb[0].mxu0
      %v3151 = vadd.f32 0.0, %v3150
      %v3152 = vpop.f32.mrb[0].mxu0
      %v3153 = vadd.f32 0.0, %v3152
      %v3154 = vpop.f32.mrb[0].mxu0
      %v3155 = vadd.f32 0.0, %v3154
      %v3156 = vpop.f32.mrb[0].mxu0
      %v3157 = vadd.f32 0.0, %v3156
      %3158 = vdwg.mxu0
      %v3159 = vld [vmem:[%s972] sm:$0xff]
      %v3160 = vld [vmem:[%s972 + $0x8] sm:$0xff]
      %v3161 = vld [vmem:[%s39] sm:$0xff]
      %v3162 = vld [vmem:[%s39 + $0x8] sm:$0xff]
      %v3163 = vld [vmem:[%s39 + $0x10] sm:$0xff]
      %v3164 = vld [vmem:[%s39 + $0x18] sm:$0xff]
      %v3165 = vld [vmem:[%s39 + $0x20] sm:$0xff]
      %v3166 = vld [vmem:[%s41] sm:$0xff]
      %v3167 = vld [vmem:[%s41 + $0x8] sm:$0xff]
      %v3168 = vld [vmem:[%s41 + $0x10] sm:$0xff]
      %v3169 = vld [vmem:[%s41 + $0x18] sm:$0xff]
      %v3170 = vld [vmem:[%s41 + $0x20] sm:$0xff]
      %v3171 = vld [vmem:[%s37] sm:$0xff]
      %3172 = vrot.lane.b32.xlu0 %v3141, 16
      %v3173 = vpop.permute.xlu0 %3172
      %3174 = vrot.lane.b32.xlu0 %v3145, 16
      %v3175 = vpop.permute.xlu0 %3174
      %3176 = vrot.lane.b32.xlu0 %v3151, 16
      %v3177 = vpop.permute.xlu0 %3176
      %3178 = vrot.lane.b32.xlu0 %v3155, 16
      %v3179 = vpop.permute.xlu0 %3178
      %3180 = vrot.lane.b32.xlu0 %v3159, 16
      %v3181 = vpop.permute.xlu0 %3180
      %3182 = vrot.lane.b32.xlu0 %v3143, 16
      %v3183 = vpop.permute.xlu0 %3182
      %3184 = vrot.lane.b32.xlu0 %v3147, 16
      %v3185 = vpop.permute.xlu0 %3184
      %3186 = vrot.lane.b32.xlu0 %v3153, 16
      %v3187 = vpop.permute.xlu0 %3186
      %3188 = vrot.lane.b32.xlu0 %v3157, 16
      %v3189 = vpop.permute.xlu0 %3188
      %3190 = vrot.lane.b32.xlu0 %v3160, 16
      %v3191 = vpop.permute.xlu0 %3190
      %v3192 = vlaneseq
      %v3193 = vand.u32 %v3192, 127
      %vm3194 = vcmp.lt.s32.totalorder %v3193, 16
      %v3195 = vsel %vm3194, %v3173, %v3183
      %v3196 = vsel %vm3194, %v3175, %v3185
      %v3197 = vsel %vm3194, %v3177, %v3187
      %v3198 = vsel %vm3194, %v3179, %v3189
      %v3199 = vsel %vm3194, %v3181, %v3191
      %v3200 = vsel %vm3194, %v3183, %v3173
      %v3201 = vsel %vm3194, %v3185, %v3175
      %v3202 = vsel %vm3194, %v3187, %v3177
      %v3203 = vsel %vm3194, %v3189, %v3179
      %v3204 = vsel %vm3194, %v3191, %v3181
      %v3206 = vlaneseq
      %v3207 = vshrl.u32 %v3206, 7
      %v3208 = vsub.s32 0, %v3207
      %v3209 = vrot.slane %v3171, %v3208
      %v3210 = vlaneseq
      %v3211 = vshrl.u32 %v3210, 7
      %v3212 = vsub.s32 4, %v3211
      %v3213 = vrot.slane %v3171, %v3212
      %v3216 = vlaneseq
      %v3217 = vshrl.u32 %v3216, 7
      %v3218 = vsub.s32 0, %v3217
      %v3219 = vrot.slane %v3209, %v3218
      %v3220 = vlaneseq
      %v3221 = vshrl.u32 %v3220, 7
      %v3222 = vsub.s32 0, %v3221
      %v3223 = vrot.slane %v3213, %v3222
      %v3224 = vmul.f32 %v3200, %v3219
      %v3225 = vmul.f32 %v3195, %v3223
      %v3226 = vmul.f32 %v3201, %v3219
      %v3227 = vmul.f32 %v3196, %v3223
      %v3228 = vmul.f32 %v3202, %v3219
      %v3229 = vmul.f32 %v3197, %v3223
      %v3230 = vmul.f32 %v3203, %v3219
      %v3231 = vmul.f32 %v3198, %v3223
      %v3232 = vmul.f32 %v3204, %v3219
      %v3233 = vmul.f32 %v3199, %v3223
      %3235 = vset.pattern.permute.xlu0 0
      %3236 = vperm.xlu0 %3235, %v3161
      %v3237 = vpop.permute.xlu0 %3236
      %3240 = vset.pattern.permute.xlu0 0
      %3241 = vperm.xlu0 %3240, %v3162
      %v3242 = vpop.permute.xlu0 %3241
      %3245 = vset.pattern.permute.xlu0 0
      %3246 = vperm.xlu0 %3245, %v3163
      %v3247 = vpop.permute.xlu0 %3246
      %3250 = vset.pattern.permute.xlu0 0
      %3251 = vperm.xlu0 %3250, %v3164
      %v3252 = vpop.permute.xlu0 %3251
      %3255 = vset.pattern.permute.xlu0 0
      %3256 = vperm.xlu0 %3255, %v3165
      %v3257 = vpop.permute.xlu0 %3256
      %v3259 = vmul.f32 %v3224, %v3237
      %v3260 = vmul.f32 %v3225, %v3237
      %v3261 = vmul.f32 %v3226, %v3242
      %v3262 = vmul.f32 %v3227, %v3242
      %v3263 = vmul.f32 %v3228, %v3247
      %v3264 = vmul.f32 %v3229, %v3247
      %v3265 = vmul.f32 %v3230, %v3252
      %v3266 = vmul.f32 %v3231, %v3252
      %v3267 = vmul.f32 %v3232, %v3257
      %v3268 = vmul.f32 %v3233, %v3257
      %3269 = vset.pattern.permute.xlu0 1
      %3270 = vperm.xlu0 %3269, %v3161
      %v3271 = vpop.permute.xlu0 %3270
      %3273 = vset.pattern.permute.xlu0 1
      %3274 = vperm.xlu0 %3273, %v3162
      %v3275 = vpop.permute.xlu0 %3274
      %3277 = vset.pattern.permute.xlu0 1
      %3278 = vperm.xlu0 %3277, %v3163
      %v3279 = vpop.permute.xlu0 %3278
      %3281 = vset.pattern.permute.xlu0 1
      %3282 = vperm.xlu0 %3281, %v3164
      %v3283 = vpop.permute.xlu0 %3282
      %3285 = vset.pattern.permute.xlu0 1
      %3286 = vperm.xlu0 %3285, %v3165
      %v3287 = vpop.permute.xlu0 %3286
      %v3289 = vmul.f32 %v3224, %v3271
      %v3290 = vmul.f32 %v3225, %v3271
      %v3291 = vmul.f32 %v3226, %v3275
      %v3292 = vmul.f32 %v3227, %v3275
      %v3293 = vmul.f32 %v3228, %v3279
      %v3294 = vmul.f32 %v3229, %v3279
      %v3295 = vmul.f32 %v3230, %v3283
      %v3296 = vmul.f32 %v3231, %v3283
      %v3297 = vmul.f32 %v3232, %v3287
      %v3298 = vmul.f32 %v3233, %v3287
      %3299 = vset.pattern.permute.xlu0 2
      %3300 = vperm.xlu0 %3299, %v3161
      %v3301 = vpop.permute.xlu0 %3300
      %3303 = vset.pattern.permute.xlu0 2
      %3304 = vperm.xlu0 %3303, %v3162
      %v3305 = vpop.permute.xlu0 %3304
      %3307 = vset.pattern.permute.xlu0 2
      %3308 = vperm.xlu0 %3307, %v3163
      %v3309 = vpop.permute.xlu0 %3308
      %3311 = vset.pattern.permute.xlu0 2
      %3312 = vperm.xlu0 %3311, %v3164
      %v3313 = vpop.permute.xlu0 %3312
      %3315 = vset.pattern.permute.xlu0 2
      %3316 = vperm.xlu0 %3315, %v3165
      %v3317 = vpop.permute.xlu0 %3316
      %v3319 = vmul.f32 %v3224, %v3301
      %v3320 = vmul.f32 %v3225, %v3301
      %v3321 = vmul.f32 %v3226, %v3305
      %v3322 = vmul.f32 %v3227, %v3305
      %v3323 = vmul.f32 %v3228, %v3309
      %v3324 = vmul.f32 %v3229, %v3309
      %v3325 = vmul.f32 %v3230, %v3313
      %v3326 = vmul.f32 %v3231, %v3313
      %v3327 = vmul.f32 %v3232, %v3317
      %v3328 = vmul.f32 %v3233, %v3317
      %3329 = vset.pattern.permute.xlu0 3
      %3330 = vperm.xlu0 %3329, %v3161
      %v3331 = vpop.permute.xlu0 %3330
      %3333 = vset.pattern.permute.xlu0 3
      %3334 = vperm.xlu0 %3333, %v3162
      %v3335 = vpop.permute.xlu0 %3334
      %3337 = vset.pattern.permute.xlu0 3
      %3338 = vperm.xlu0 %3337, %v3163
      %v3339 = vpop.permute.xlu0 %3338
      %3341 = vset.pattern.permute.xlu0 3
      %3342 = vperm.xlu0 %3341, %v3164
      %v3343 = vpop.permute.xlu0 %3342
      %3345 = vset.pattern.permute.xlu0 3
      %3346 = vperm.xlu0 %3345, %v3165
      %v3347 = vpop.permute.xlu0 %3346
      %v3349 = vmul.f32 %v3141, %v3331
      %v3350 = vmul.f32 %v3143, %v3331
      %v3351 = vmul.f32 %v3145, %v3335
      %v3352 = vmul.f32 %v3147, %v3335
      %v3353 = vmul.f32 %v3151, %v3339
      %v3354 = vmul.f32 %v3153, %v3339
      %v3355 = vmul.f32 %v3155, %v3343
      %v3356 = vmul.f32 %v3157, %v3343
      %v3357 = vmul.f32 %v3159, %v3347
      %v3358 = vmul.f32 %v3160, %v3347
      %v3359 = vadd.f32 %v3259, %v3349
      %v3360 = vadd.f32 %v3260, %v3350
      %v3361 = vadd.f32 %v3261, %v3351
      %v3362 = vadd.f32 %v3262, %v3352
      %v3363 = vadd.f32 %v3263, %v3353
      %v3364 = vadd.f32 %v3264, %v3354
      %v3365 = vadd.f32 %v3265, %v3355
      %v3366 = vadd.f32 %v3266, %v3356
      %v3367 = vadd.f32 %v3267, %v3357
      %v3368 = vadd.f32 %v3268, %v3358
      %3369 = vset.pattern.permute.xlu0 4
      %3370 = vperm.xlu0 %3369, %v3161
      %v3371 = vpop.permute.xlu0 %3370
      %3373 = vset.pattern.permute.xlu0 4
      %3374 = vperm.xlu0 %3373, %v3162
      %v3375 = vpop.permute.xlu0 %3374
      %3377 = vset.pattern.permute.xlu0 4
      %3378 = vperm.xlu0 %3377, %v3163
      %v3379 = vpop.permute.xlu0 %3378
      %3381 = vset.pattern.permute.xlu0 4
      %3382 = vperm.xlu0 %3381, %v3164
      %v3383 = vpop.permute.xlu0 %3382
      %3385 = vset.pattern.permute.xlu0 4
      %3386 = vperm.xlu0 %3385, %v3165
      %v3387 = vpop.permute.xlu0 %3386
      %v3389 = vmul.f32 %v3141, %v3371
      %v3390 = vmul.f32 %v3143, %v3371
      %v3391 = vmul.f32 %v3145, %v3375
      %v3392 = vmul.f32 %v3147, %v3375
      %v3393 = vmul.f32 %v3151, %v3379
      %v3394 = vmul.f32 %v3153, %v3379
      %v3395 = vmul.f32 %v3155, %v3383
      %v3396 = vmul.f32 %v3157, %v3383
      %v3397 = vmul.f32 %v3159, %v3387
      %v3398 = vmul.f32 %v3160, %v3387
      %v3399 = vadd.f32 %v3289, %v3389
      %v3400 = vadd.f32 %v3290, %v3390
      %v3401 = vadd.f32 %v3291, %v3391
      %v3402 = vadd.f32 %v3292, %v3392
      %v3403 = vadd.f32 %v3293, %v3393
      %v3404 = vadd.f32 %v3294, %v3394
      %v3405 = vadd.f32 %v3295, %v3395
      %v3406 = vadd.f32 %v3296, %v3396
      %v3407 = vadd.f32 %v3297, %v3397
      %v3408 = vadd.f32 %v3298, %v3398
      %3409 = vset.pattern.permute.xlu0 5
      %3410 = vperm.xlu0 %3409, %v3161
      %v3411 = vpop.permute.xlu0 %3410
      %3413 = vset.pattern.permute.xlu0 5
      %3414 = vperm.xlu0 %3413, %v3162
      %v3415 = vpop.permute.xlu0 %3414
      %3417 = vset.pattern.permute.xlu0 5
      %3418 = vperm.xlu0 %3417, %v3163
      %v3419 = vpop.permute.xlu0 %3418
      %3421 = vset.pattern.permute.xlu0 5
      %3422 = vperm.xlu0 %3421, %v3164
      %v3423 = vpop.permute.xlu0 %3422
      %3425 = vset.pattern.permute.xlu0 5
      %3426 = vperm.xlu0 %3425, %v3165
      %v3427 = vpop.permute.xlu0 %3426
      %v3429 = vmul.f32 %v3141, %v3411
      %v3430 = vmul.f32 %v3143, %v3411
      %v3431 = vmul.f32 %v3145, %v3415
      %v3432 = vmul.f32 %v3147, %v3415
      %v3433 = vmul.f32 %v3151, %v3419
      %v3434 = vmul.f32 %v3153, %v3419
      %v3435 = vmul.f32 %v3155, %v3423
      %v3436 = vmul.f32 %v3157, %v3423
      %v3437 = vmul.f32 %v3159, %v3427
      %v3438 = vmul.f32 %v3160, %v3427
      %v3439 = vadd.f32 %v3319, %v3429
      %v3440 = vadd.f32 %v3320, %v3430
      %v3441 = vadd.f32 %v3321, %v3431
      %v3442 = vadd.f32 %v3322, %v3432
      %v3443 = vadd.f32 %v3323, %v3433
      %v3444 = vadd.f32 %v3324, %v3434
      %v3445 = vadd.f32 %v3325, %v3435
      %v3446 = vadd.f32 %v3326, %v3436
      %v3447 = vadd.f32 %v3327, %v3437
      %v3448 = vadd.f32 %v3328, %v3438
      %3449 = vrot.lane.b32.xlu0 %v3141, 112
      %v3450 = vpop.permute.xlu0 %3449
      %3451 = vrot.lane.b32.xlu0 %v3145, 112
      %v3452 = vpop.permute.xlu0 %3451
      %3453 = vrot.lane.b32.xlu0 %v3151, 112
      %v3454 = vpop.permute.xlu0 %3453
      %3455 = vrot.lane.b32.xlu0 %v3155, 112
      %v3456 = vpop.permute.xlu0 %3455
      %3457 = vrot.lane.b32.xlu0 %v3159, 112
      %v3458 = vpop.permute.xlu0 %3457
      %3459 = vrot.lane.b32.xlu0 %v3143, 112
      %v3460 = vpop.permute.xlu0 %3459
      %3461 = vrot.lane.b32.xlu0 %v3147, 112
      %v3462 = vpop.permute.xlu0 %3461
      %3463 = vrot.lane.b32.xlu0 %v3153, 112
      %v3464 = vpop.permute.xlu0 %3463
      %3465 = vrot.lane.b32.xlu0 %v3157, 112
      %v3466 = vpop.permute.xlu0 %3465
      %3467 = vrot.lane.b32.xlu0 %v3160, 112
      %v3468 = vpop.permute.xlu0 %3467
      %vm3469 = vcmp.lt.s32.totalorder %v3193, 112
      %v3470 = vsel %vm3469, %v3450, %v3460
      %v3471 = vsel %vm3469, %v3452, %v3462
      %v3472 = vsel %vm3469, %v3454, %v3464
      %v3473 = vsel %vm3469, %v3456, %v3466
      %v3474 = vsel %vm3469, %v3458, %v3468
      %v3475 = vsel %vm3469, %v3460, %v3450
      %v3476 = vsel %vm3469, %v3462, %v3452
      %v3477 = vsel %vm3469, %v3464, %v3454
      %v3478 = vsel %vm3469, %v3466, %v3456
      %v3479 = vsel %vm3469, %v3468, %v3458
      %v3480 = vlaneseq
      %v3481 = vshrl.u32 %v3480, 7
      %v3482 = vsub.s32 1, %v3481
      %v3483 = vrot.slane %v3171, %v3482
      %v3484 = vlaneseq
      %v3485 = vshrl.u32 %v3484, 7
      %v3486 = vsub.s32 5, %v3485
      %v3487 = vrot.slane %v3171, %v3486
      %v3490 = vlaneseq
      %v3491 = vshrl.u32 %v3490, 7
      %v3492 = vsub.s32 1, %v3491
      %v3493 = vrot.slane %v3483, %v3492
      %v3494 = vlaneseq
      %v3495 = vshrl.u32 %v3494, 7
      %v3496 = vsub.s32 1, %v3495
      %v3497 = vrot.slane %v3487, %v3496
      %v3498 = vmul.f32 %v3470, %v3493
      %v3499 = vmul.f32 %v3475, %v3497
      %v3500 = vmul.f32 %v3471, %v3493
      %v3501 = vmul.f32 %v3476, %v3497
      %v3502 = vmul.f32 %v3472, %v3493
      %v3503 = vmul.f32 %v3477, %v3497
      %v3504 = vmul.f32 %v3473, %v3493
      %v3505 = vmul.f32 %v3478, %v3497
      %v3506 = vmul.f32 %v3474, %v3493
      %v3507 = vmul.f32 %v3479, %v3497
      %3508 = vset.pattern.permute.xlu0 6
      %3509 = vperm.xlu0 %3508, %v3161
      %v3510 = vpop.permute.xlu0 %3509
      %3512 = vset.pattern.permute.xlu0 6
      %3513 = vperm.xlu0 %3512, %v3162
      %v3514 = vpop.permute.xlu0 %3513
      %3516 = vset.pattern.permute.xlu0 6
      %3517 = vperm.xlu0 %3516, %v3163
      %v3518 = vpop.permute.xlu0 %3517
      %3520 = vset.pattern.permute.xlu0 6
      %3521 = vperm.xlu0 %3520, %v3164
      %v3522 = vpop.permute.xlu0 %3521
      %3524 = vset.pattern.permute.xlu0 6
      %3525 = vperm.xlu0 %3524, %v3165
      %v3526 = vpop.permute.xlu0 %3525
      %v3528 = vmul.f32 %v3498, %v3510
      %v3529 = vmul.f32 %v3499, %v3510
      %v3530 = vmul.f32 %v3500, %v3514
      %v3531 = vmul.f32 %v3501, %v3514
      %v3532 = vmul.f32 %v3502, %v3518
      %v3533 = vmul.f32 %v3503, %v3518
      %v3534 = vmul.f32 %v3504, %v3522
      %v3535 = vmul.f32 %v3505, %v3522
      %v3536 = vmul.f32 %v3506, %v3526
      %v3537 = vmul.f32 %v3507, %v3526
      %v3538 = vadd.f32 %v3359, %v3528
      %v3539 = vadd.f32 %v3360, %v3529
      %v3540 = vadd.f32 %v3361, %v3530
      %v3541 = vadd.f32 %v3362, %v3531
      %v3542 = vadd.f32 %v3363, %v3532
      %v3543 = vadd.f32 %v3364, %v3533
      %v3544 = vadd.f32 %v3365, %v3534
      %v3545 = vadd.f32 %v3366, %v3535
      %v3546 = vadd.f32 %v3367, %v3536
      %v3547 = vadd.f32 %v3368, %v3537
      %3548 = vset.pattern.permute.xlu0 7
      %3549 = vperm.xlu0 %3548, %v3161
      %v3550 = vpop.permute.xlu0 %3549
      %3552 = vset.pattern.permute.xlu0 7
      %3553 = vperm.xlu0 %3552, %v3162
      %v3554 = vpop.permute.xlu0 %3553
      %3556 = vset.pattern.permute.xlu0 7
      %3557 = vperm.xlu0 %3556, %v3163
      %v3558 = vpop.permute.xlu0 %3557
      %3560 = vset.pattern.permute.xlu0 7
      %3561 = vperm.xlu0 %3560, %v3164
      %v3562 = vpop.permute.xlu0 %3561
      %3564 = vset.pattern.permute.xlu0 7
      %3565 = vperm.xlu0 %3564, %v3165
      %v3566 = vpop.permute.xlu0 %3565
      %v3568 = vmul.f32 %v3498, %v3550
      %v3569 = vmul.f32 %v3499, %v3550
      %v3570 = vmul.f32 %v3500, %v3554
      %v3571 = vmul.f32 %v3501, %v3554
      %v3572 = vmul.f32 %v3502, %v3558
      %v3573 = vmul.f32 %v3503, %v3558
      %v3574 = vmul.f32 %v3504, %v3562
      %v3575 = vmul.f32 %v3505, %v3562
      %v3576 = vmul.f32 %v3506, %v3566
      %v3577 = vmul.f32 %v3507, %v3566
      %v3578 = vadd.f32 %v3399, %v3568
      %v3579 = vadd.f32 %v3400, %v3569
      %v3580 = vadd.f32 %v3401, %v3570
      %v3581 = vadd.f32 %v3402, %v3571
      %v3582 = vadd.f32 %v3403, %v3572
      %v3583 = vadd.f32 %v3404, %v3573
      %v3584 = vadd.f32 %v3405, %v3574
      %v3585 = vadd.f32 %v3406, %v3575
      %v3586 = vadd.f32 %v3407, %v3576
      %v3587 = vadd.f32 %v3408, %v3577
      %3588 = vset.pattern.permute.xlu0 8
      %3589 = vperm.xlu0 %3588, %v3161
      %v3590 = vpop.permute.xlu0 %3589
      %3592 = vset.pattern.permute.xlu0 8
      %3593 = vperm.xlu0 %3592, %v3162
      %v3594 = vpop.permute.xlu0 %3593
      %3596 = vset.pattern.permute.xlu0 8
      %3597 = vperm.xlu0 %3596, %v3163
      %v3598 = vpop.permute.xlu0 %3597
      %3600 = vset.pattern.permute.xlu0 8
      %3601 = vperm.xlu0 %3600, %v3164
      %v3602 = vpop.permute.xlu0 %3601
      %3604 = vset.pattern.permute.xlu0 8
      %3605 = vperm.xlu0 %3604, %v3165
      %v3606 = vpop.permute.xlu0 %3605
      %v3608 = vmul.f32 %v3498, %v3590
      %v3609 = vmul.f32 %v3499, %v3590
      %v3610 = vmul.f32 %v3500, %v3594
      %v3611 = vmul.f32 %v3501, %v3594
      %v3612 = vmul.f32 %v3502, %v3598
      %v3613 = vmul.f32 %v3503, %v3598
      %v3614 = vmul.f32 %v3504, %v3602
      %v3615 = vmul.f32 %v3505, %v3602
      %v3616 = vmul.f32 %v3506, %v3606
      %v3617 = vmul.f32 %v3507, %v3606
      %v3618 = vadd.f32 %v3439, %v3608
      %v3619 = vadd.f32 %v3440, %v3609
      %v3620 = vadd.f32 %v3441, %v3610
      %v3621 = vadd.f32 %v3442, %v3611
      %v3622 = vadd.f32 %v3443, %v3612
      %v3623 = vadd.f32 %v3444, %v3613
      %v3624 = vadd.f32 %v3445, %v3614
      %v3625 = vadd.f32 %v3446, %v3615
      %v3626 = vadd.f32 %v3447, %v3616
      %v3627 = vadd.f32 %v3448, %v3617
      %3628 = vrot.lane.b32.xlu0 %v3538, 1
      %v3629 = vpop.permute.xlu0 %3628
      %3630 = vrot.lane.b32.xlu0 %v3540, 1
      %v3631 = vpop.permute.xlu0 %3630
      %3632 = vrot.lane.b32.xlu0 %v3542, 1
      %v3633 = vpop.permute.xlu0 %3632
      %3634 = vrot.lane.b32.xlu0 %v3544, 1
      %v3635 = vpop.permute.xlu0 %3634
      %3636 = vrot.lane.b32.xlu0 %v3546, 1
      %v3637 = vpop.permute.xlu0 %3636
      %3638 = vrot.lane.b32.xlu0 %v3539, 1
      %v3639 = vpop.permute.xlu0 %3638
      %3640 = vrot.lane.b32.xlu0 %v3541, 1
      %v3641 = vpop.permute.xlu0 %3640
      %3642 = vrot.lane.b32.xlu0 %v3543, 1
      %v3643 = vpop.permute.xlu0 %3642
      %3644 = vrot.lane.b32.xlu0 %v3545, 1
      %v3645 = vpop.permute.xlu0 %3644
      %3646 = vrot.lane.b32.xlu0 %v3547, 1
      %v3647 = vpop.permute.xlu0 %3646
      %vm3648 = vcmp.lt.s32.totalorder %v3193, 1
      %v3649 = vsel %vm3648, %v3629, %v3639
      %v3650 = vsel %vm3648, %v3631, %v3641
      %v3651 = vsel %vm3648, %v3633, %v3643
      %v3652 = vsel %vm3648, %v3635, %v3645
      %v3653 = vsel %vm3648, %v3637, %v3647
      %v3654 = vsel %vm3648, %v3639, %v3629
      %v3655 = vsel %vm3648, %v3641, %v3631
      %v3656 = vsel %vm3648, %v3643, %v3633
      %v3657 = vsel %vm3648, %v3645, %v3635
      %v3658 = vsel %vm3648, %v3647, %v3637
      %v3659 = vlaneseq
      %v3660 = vshrl.u32 %v3659, 7
      %v3661 = vsub.s32 2, %v3660
      %v3662 = vrot.slane %v3171, %v3661
      %v3663 = vlaneseq
      %v3664 = vshrl.u32 %v3663, 7
      %v3665 = vsub.s32 6, %v3664
      %v3666 = vrot.slane %v3171, %v3665
      %v3669 = vlaneseq
      %v3670 = vshrl.u32 %v3669, 7
      %v3671 = vsub.s32 2, %v3670
      %v3672 = vrot.slane %v3662, %v3671
      %v3673 = vlaneseq
      %v3674 = vshrl.u32 %v3673, 7
      %v3675 = vsub.s32 2, %v3674
      %v3676 = vrot.slane %v3666, %v3675
      %v3677 = vmul.f32 %v3654, %v3672
      %v3678 = vmul.f32 %v3649, %v3676
      %v3679 = vmul.f32 %v3655, %v3672
      %v3680 = vmul.f32 %v3650, %v3676
      %v3681 = vmul.f32 %v3656, %v3672
      %v3682 = vmul.f32 %v3651, %v3676
      %v3683 = vmul.f32 %v3657, %v3672
      %v3684 = vmul.f32 %v3652, %v3676
      %v3685 = vmul.f32 %v3658, %v3672
      %v3686 = vmul.f32 %v3653, %v3676
      %v3687 = vadd.f32 %v3578, %v3677
      %v3688 = vadd.f32 %v3579, %v3678
      %v3689 = vadd.f32 %v3580, %v3679
      %v3690 = vadd.f32 %v3581, %v3680
      %v3691 = vadd.f32 %v3582, %v3681
      %v3692 = vadd.f32 %v3583, %v3682
      %v3693 = vadd.f32 %v3584, %v3683
      %v3694 = vadd.f32 %v3585, %v3684
      %v3695 = vadd.f32 %v3586, %v3685
      %v3696 = vadd.f32 %v3587, %v3686
      %3697 = vrot.lane.b32.xlu0 %v3618, 127
      %v3698 = vpop.permute.xlu0 %3697
      %3699 = vrot.lane.b32.xlu0 %v3620, 127
      %v3700 = vpop.permute.xlu0 %3699
      %3701 = vrot.lane.b32.xlu0 %v3622, 127
      %v3702 = vpop.permute.xlu0 %3701
      %3703 = vrot.lane.b32.xlu0 %v3624, 127
      %v3704 = vpop.permute.xlu0 %3703
      %3705 = vrot.lane.b32.xlu0 %v3626, 127
      %v3706 = vpop.permute.xlu0 %3705
      %3707 = vrot.lane.b32.xlu0 %v3619, 127
      %v3708 = vpop.permute.xlu0 %3707
      %3709 = vrot.lane.b32.xlu0 %v3621, 127
      %v3710 = vpop.permute.xlu0 %3709
      %3711 = vrot.lane.b32.xlu0 %v3623, 127
      %v3712 = vpop.permute.xlu0 %3711
      %3713 = vrot.lane.b32.xlu0 %v3625, 127
      %v3714 = vpop.permute.xlu0 %3713
      %3715 = vrot.lane.b32.xlu0 %v3627, 127
      %v3716 = vpop.permute.xlu0 %3715
      %vm3717 = vcmp.lt.s32.totalorder %v3193, 127
      %v3718 = vsel %vm3717, %v3698, %v3708
      %v3719 = vsel %vm3717, %v3700, %v3710
      %v3720 = vsel %vm3717, %v3702, %v3712
      %v3721 = vsel %vm3717, %v3704, %v3714
      %v3722 = vsel %vm3717, %v3706, %v3716
      %v3723 = vsel %vm3717, %v3708, %v3698
      %v3724 = vsel %vm3717, %v3710, %v3700
      %v3725 = vsel %vm3717, %v3712, %v3702
      %v3726 = vsel %vm3717, %v3714, %v3704
      %v3727 = vsel %vm3717, %v3716, %v3706
      %v3728 = vlaneseq
      %v3729 = vshrl.u32 %v3728, 7
      %v3730 = vsub.s32 3, %v3729
      %v3731 = vrot.slane %v3171, %v3730
      %v3732 = vlaneseq
      %v3733 = vshrl.u32 %v3732, 7
      %v3734 = vsub.s32 7, %v3733
      %v3735 = vrot.slane %v3171, %v3734
      %v3738 = vlaneseq
      %v3739 = vshrl.u32 %v3738, 7
      %v3740 = vsub.s32 3, %v3739
      %v3741 = vrot.slane %v3731, %v3740
      %v3742 = vlaneseq
      %v3743 = vshrl.u32 %v3742, 7
      %v3744 = vsub.s32 3, %v3743
      %v3745 = vrot.slane %v3735, %v3744
      %v3746 = vmul.f32 %v3718, %v3741
      %v3747 = vmul.f32 %v3723, %v3745
      %v3748 = vmul.f32 %v3719, %v3741
      %v3749 = vmul.f32 %v3724, %v3745
      %v3750 = vmul.f32 %v3720, %v3741
      %v3751 = vmul.f32 %v3725, %v3745
      %v3752 = vmul.f32 %v3721, %v3741
      %v3753 = vmul.f32 %v3726, %v3745
      %v3754 = vmul.f32 %v3722, %v3741
      %v3755 = vmul.f32 %v3727, %v3745
      %v3756 = vadd.f32 %v3687, %v3746
      %v3757 = vadd.f32 %v3688, %v3747
      %v3758 = vadd.f32 %v3689, %v3748
      %v3759 = vadd.f32 %v3690, %v3749
      %v3760 = vadd.f32 %v3691, %v3750
      %v3761 = vadd.f32 %v3692, %v3751
      %v3762 = vadd.f32 %v3693, %v3752
      %v3763 = vadd.f32 %v3694, %v3753
      %v3764 = vadd.f32 %v3695, %v3754
      %v3765 = vadd.f32 %v3696, %v3755
      %3767 = vset.pattern.permute.xlu0 0
      %3768 = vperm.xlu0 %3767, %v3166
      %v3769 = vpop.permute.xlu0 %3768
      %3772 = vset.pattern.permute.xlu0 0
      %3773 = vperm.xlu0 %3772, %v3167
      %v3774 = vpop.permute.xlu0 %3773
      %3777 = vset.pattern.permute.xlu0 0
      %3778 = vperm.xlu0 %3777, %v3168
      %v3779 = vpop.permute.xlu0 %3778
      %3782 = vset.pattern.permute.xlu0 0
      %3783 = vperm.xlu0 %3782, %v3169
      %v3784 = vpop.permute.xlu0 %3783
      %3787 = vset.pattern.permute.xlu0 0
      %3788 = vperm.xlu0 %3787, %v3170
      %v3789 = vpop.permute.xlu0 %3788
      %v3791 = vadd.f32 %v3756, %v3769
      %v3792 = vadd.f32 %v3757, %v3769
      %v3793 = vadd.f32 %v3758, %v3774
      %v3794 = vadd.f32 %v3759, %v3774
      %v3795 = vadd.f32 %v3760, %v3779
      %v3796 = vadd.f32 %v3761, %v3779
      %v3797 = vadd.f32 %v3762, %v3784
      %v3798 = vadd.f32 %v3763, %v3784
      %v3799 = vadd.f32 %v3764, %v3789
      %v3800 = vadd.f32 %v3765, %v3789
      %v3801 = vmul.f32 %v3791, 0.01
      %v3802 = vmul.f32 %v3792, 0.01
      %v3803 = vmul.f32 %v3793, 0.01
      %v3804 = vmul.f32 %v3794, 0.01
      %v3805 = vmul.f32 %v3795, 0.01
      %v3806 = vmul.f32 %v3796, 0.01
      %v3807 = vmul.f32 %v3797, 0.01
      %v3808 = vmul.f32 %v3798, 0.01
      %v3809 = vmul.f32 %v3799, 0.01
      %v3810 = vmul.f32 %v3800, 0.01
      %v3811 = vmax.f32 %v3791, %v3801
      %v3812 = vmax.f32 %v3792, %v3802
      %v3813 = vmax.f32 %v3793, %v3803
      %v3814 = vmax.f32 %v3794, %v3804
      %v3815 = vmax.f32 %v3795, %v3805
      %v3816 = vmax.f32 %v3796, %v3806
      %v3817 = vmax.f32 %v3797, %v3807
      %v3818 = vmax.f32 %v3798, %v3808
      %v3819 = vmax.f32 %v3799, %v3809
      %v3820 = vmax.f32 %v3800, %v3810
      %v3821 = vld [vmem:[%s43] sm:$0xf]
      %v3822 = vld [vmem:[%s43 + $0x4] sm:$0xf]
      %v3823 = vpack.c.bf16 %v3813, %v3811
      %v3824 = vpack.c.bf16 %v3814, %v3812
      %v3825 = vpack.c.bf16 %v3817, %v3815
      %v3826 = vpack.c.bf16 %v3818, %v3816
      %v3827 = vpack.c.bf16 %v3819, %v3819
      %v3828 = vpack.c.bf16 %v3820, %v3820
      %v3829 = vld [vmem:[%s45] sm:$0xff]
      %v3830 = vld [vmem:[%s45 + $0x8] sm:$0xff]
      %3832 = vset.pattern.permute.xlu0 0
      %3833 = vperm.xlu0 %3832, %v3829
      %v3834 = vpop.permute.xlu0 %3833
      %3837 = vset.pattern.permute.xlu0 0
      %3838 = vperm.xlu0 %3837, %v3830
      %v3839 = vpop.permute.xlu0 %3838
      %v3843 = vunpack.c.l.b16 %v3821
      %v3844 = vunpack.c.l.b16 %v3822
      %v3845 = vpack.c.b16 %v3844, %v3843
      %vm3846 = vcmask 326656
      %v3848 = vsel %vm3846, %v3845, 0
      %vm3850 = vcmask 1043456
      %v3852 = vsel %vm3850, %v3827, 0
      %v3855 = vsel %vm3850, %v3828, 0
      %3857 = vmatprep.subr.bf16.mxu0 %v3824
      %3858 = vmatpush1.bf16.msra.mxu0 %v3823
      %3859 = vmatprep.subr.bf16.mxu0 %v3826
      %3860 = vmatpush1.bf16.msra.mxu0 %v3825
      %3861 = vmatprep.subr.bf16.mxu0 %v3855
      %3862 = vmatpush1.bf16.msra.mxu0 %v3852
      %3863 = vmatprep.subr.bf16.mxu0 0
      %3864 = vmatpush1.bf16.msra.mxu0 0
      %3865 = vmatprep.subr.bf16.mxu0 0
      %3866 = vmatpush1.bf16.msra.mxu0 0
      %3867 = vmatprep.subr.bf16.mxu0 0
      %3868 = vmatpush1.bf16.msra.mxu0 0
      %3869 = vmatprep.subr.bf16.mxu0 0
      %3870 = vmatpush1.bf16.msra.mxu0 0
      %3871 = vmatprep.subr.bf16.mxu0 0
      %3872 = vmatpush1.bf16.msra.mxu0 0
      %3873 = vmatprep.subr.bf16.mxu0 0
      %3874 = vmatpush1.bf16.msra.mxu0 0
      %3875 = vmatprep.subr.bf16.mxu0 0
      %3876 = vmatpush1.bf16.msra.mxu0 0
      %3877 = vmatprep.subr.bf16.mxu0 0
      %3878 = vmatpush1.bf16.msra.mxu0 0
      %3879 = vmatprep.subr.bf16.mxu0 0
      %3880 = vmatpush1.bf16.msra.mxu0 0
      %3881 = vmatprep.subr.bf16.mxu0 0
      %3882 = vmatpush1.bf16.msra.mxu0 0
      %3883 = vmatprep.subr.bf16.mxu0 0
      %3884 = vmatpush1.bf16.msra.mxu0 0
      %3885 = vmatprep.subr.bf16.mxu0 0
      %3886 = vmatpush1.bf16.msra.mxu0 0
      %3887 = vmatprep.subr.bf16.mxu0 0
      %3888 = vmatpush1.bf16.msra.mxu0 0
      %3889 = vmatprep.mubr.bf16.mxu0 0
      %3890 = vmatmul.mubr.bf16.gmra.mrb[0].mxu0 %v3848
      %v3891 = vpop.f32.mrb[0].mxu0
      %v3892 = vadd.f32 %v3834, %v3891
      %v3893 = vpop.f32.mrb[0].mxu0
      %v3894 = vadd.f32 %v3834, %v3893
      %v3895 = vpop.f32.mrb[0].mxu0
      %v3896 = vadd.f32 %v3839, %v3895
      %v3897 = vpop.f32.mrb[0].mxu0
      %v3898 = vadd.f32 %v3839, %v3897
      %3899 = vdwg.mxu0
      %v3900 = vmul.f32 %v3892, 0.01
      %v3901 = vmul.f32 %v3894, 0.01
      %v3902 = vmul.f32 %v3896, 0.01
      %v3903 = vmul.f32 %v3898, 0.01
      %v3904 = vmax.f32 %v3892, %v3900
      %v3905 = vmax.f32 %v3894, %v3901
      %v3906 = vmax.f32 %v3896, %v3902
      %v3907 = vmax.f32 %v3898, %v3903
      %v3908 = vpack.c.bf16 %v3906, %v3904
      %v3909 = vpack.c.bf16 %v3907, %v3905
      %v3910 = vld [vmem:[%s47] sm:$0xff]
      %v3911 = vld [vmem:[%s47 + $0x8] sm:$0xff]
      %v3912 = vld [vmem:[%s47 + $0x10] sm:$0xff]
      %v3913 = vld [vmem:[%s47 + $0x18] sm:$0xff]
      %v3914 = vld [vmem:[%s47 + $0x20] sm:$0xff]
      %v3915 = vld [vmem:[%s47 + $0x28] sm:$0xff]
      %v3916 = vld [vmem:[%s47 + $0x30] sm:$0xff]
      %v3917 = vld [vmem:[%s47 + $0x38] sm:$0xff]
      %v3918 = vld [vmem:[%s47 + $0x40] sm:$0xff]
      %v3919 = vld [vmem:[%s47 + $0x48] sm:$0xff]
      %v3920 = vld [vmem:[%s47 + $0x50] sm:$0xff]
      %v3921 = vld [vmem:[%s47 + $0x58] sm:$0xff]
      %v3922 = vld [vmem:[%s47 + $0x60] sm:$0xff]
      %v3923 = vld [vmem:[%s47 + $0x68] sm:$0xff]
      %v3924 = vld [vmem:[%s47 + $0x70] sm:$0xff]
      %v3925 = vld [vmem:[%s47 + $0x78] sm:$0xff]
      %v3926 = vld [vmem:[%s47 + $0x80] sm:$0xff]
      %v3927 = vld [vmem:[%s47 + $0x88] sm:$0xff]
      %v3928 = vld [vmem:[%s47 + $0x90] sm:$0xff]
      %v3929 = vld [vmem:[%s47 + $0x98] sm:$0xff]
      %v3930 = vld [vmem:[%s47 + $0xa0] sm:$0xff]
      %v3931 = vld [vmem:[%s47 + $0xa8] sm:$0xff]
      %v3932 = vld [vmem:[%s47 + $0xb0] sm:$0xff]
      %v3933 = vld [vmem:[%s47 + $0xb8] sm:$0xff]
      %v3934 = vld [vmem:[%s47 + $0xc0] sm:$0xff]
      %v3935 = vld [vmem:[%s47 + $0xc8] sm:$0xff]
      %v3936 = vld [vmem:[%s47 + $0xd0] sm:$0xff]
      %v3937 = vld [vmem:[%s47 + $0xd8] sm:$0xff]
      %v3938 = vld [vmem:[%s47 + $0xe0] sm:$0xff]
      %v3939 = vld [vmem:[%s47 + $0xe8] sm:$0xff]
      %v3940 = vld [vmem:[%s47 + $0xf0] sm:$0xff]
      %v3941 = vld [vmem:[%s47 + $0xf8] sm:$0xff]
      %v3942 = vld [vmem:[%s47 + $0x100] sm:$0xff]
      %v3943 = vld [vmem:[%s47 + $0x108] sm:$0xff]
      %v3944 = vld [vmem:[%s47 + $0x110] sm:$0xff]
      %v3945 = vld [vmem:[%s47 + $0x118] sm:$0xff]
      %v3946 = vld [vmem:[%s47 + $0x120] sm:$0xff]
      %v3947 = vld [vmem:[%s47 + $0x128] sm:$0xff]
      %v3948 = vld [vmem:[%s47 + $0x130] sm:$0xff]
      %v3949 = vld [vmem:[%s47 + $0x138] sm:$0xff]
      %v3950 = vld [vmem:[%s47 + $0x140] sm:$0xff]
      %v3951 = vld [vmem:[%s47 + $0x148] sm:$0xff]
      %v3952 = vld [vmem:[%s47 + $0x150] sm:$0xff]
      %v3953 = vld [vmem:[%s47 + $0x158] sm:$0xff]
      %v3954 = vld [vmem:[%s47 + $0x160] sm:$0xff]
      %v3955 = vld [vmem:[%s47 + $0x168] sm:$0xff]
      %v3956 = vld [vmem:[%s47 + $0x170] sm:$0xff]
      %v3957 = vld [vmem:[%s47 + $0x178] sm:$0xff]
      %v3958 = vld [vmem:[%s47 + $0x180] sm:$0xff]
      %v3959 = vld [vmem:[%s47 + $0x188] sm:$0xff]
      %v3960 = vld [vmem:[%s47 + $0x190] sm:$0xff]
      %v3961 = vld [vmem:[%s47 + $0x198] sm:$0xff]
      %v3962 = vld [vmem:[%s47 + $0x1a0] sm:$0xff]
      %v3963 = vld [vmem:[%s47 + $0x1a8] sm:$0xff]
      %v3964 = vld [vmem:[%s47 + $0x1b0] sm:$0xff]
      %v3965 = vld [vmem:[%s47 + $0x1b8] sm:$0xff]
      %v3966 = vld [vmem:[%s47 + $0x1c0] sm:$0xff]
      %v3967 = vld [vmem:[%s47 + $0x1c8] sm:$0xff]
      %v3968 = vld [vmem:[%s47 + $0x1d0] sm:$0xff]
      %v3969 = vld [vmem:[%s47 + $0x1d8] sm:$0xff]
      %v3970 = vld [vmem:[%s47 + $0x1e0] sm:$0xff]
      %v3971 = vld [vmem:[%s47 + $0x1e8] sm:$0xff]
      %v3972 = vld [vmem:[%s47 + $0x1f0] sm:$0xff]
      %v3973 = vld [vmem:[%s47 + $0x1f8] sm:$0xff]
      %v3974 = vld [vmem:[%s47 + $0x200] sm:$0xff]
      %v3975 = vld [vmem:[%s47 + $0x208] sm:$0xff]
      %v3976 = vld [vmem:[%s47 + $0x210] sm:$0xff]
      %v3977 = vld [vmem:[%s47 + $0x218] sm:$0xff]
      %v3978 = vld [vmem:[%s47 + $0x220] sm:$0xff]
      %v3979 = vld [vmem:[%s47 + $0x228] sm:$0xff]
      %v3980 = vld [vmem:[%s47 + $0x230] sm:$0xff]
      %v3981 = vld [vmem:[%s47 + $0x238] sm:$0xff]
      %v3982 = vld [vmem:[%s47 + $0x240] sm:$0xff]
      %v3983 = vld [vmem:[%s47 + $0x248] sm:$0xff]
      %v3984 = vld [vmem:[%s47 + $0x250] sm:$0xff]
      %v3985 = vld [vmem:[%s47 + $0x258] sm:$0xff]
      %v3986 = vld [vmem:[%s47 + $0x260] sm:$0xff]
      %v3987 = vld [vmem:[%s47 + $0x268] sm:$0xff]
      %v3988 = vld [vmem:[%s47 + $0x270] sm:$0xff]
      %v3989 = vld [vmem:[%s47 + $0x278] sm:$0xff]
      %v3990 = vld [vmem:[%s47 + $0x280] sm:$0xff]
      %v3991 = vld [vmem:[%s47 + $0x288] sm:$0xff]
      %v3992 = vld [vmem:[%s47 + $0x290] sm:$0xff]
      %v3993 = vld [vmem:[%s47 + $0x298] sm:$0xff]
      %v3994 = vld [vmem:[%s47 + $0x2a0] sm:$0xff]
      %v3995 = vld [vmem:[%s47 + $0x2a8] sm:$0xff]
      %v3996 = vld [vmem:[%s47 + $0x2b0] sm:$0xff]
      %v3997 = vld [vmem:[%s47 + $0x2b8] sm:$0xff]
      %v3998 = vld [vmem:[%s47 + $0x2c0] sm:$0xff]
      %v3999 = vld [vmem:[%s47 + $0x2c8] sm:$0xff]
      %v4000 = vld [vmem:[%s47 + $0x2d0] sm:$0xff]
      %v4001 = vld [vmem:[%s47 + $0x2d8] sm:$0xff]
      %v4002 = vld [vmem:[%s47 + $0x2e0] sm:$0xff]
      %v4003 = vld [vmem:[%s47 + $0x2e8] sm:$0xff]
      %v4004 = vld [vmem:[%s47 + $0x2f0] sm:$0xff]
      %v4005 = vld [vmem:[%s47 + $0x2f8] sm:$0xff]
      %v4006 = vld [vmem:[%s47 + $0x300] sm:$0xff]
      %v4007 = vld [vmem:[%s47 + $0x308] sm:$0xff]
      %v4008 = vld [vmem:[%s47 + $0x310] sm:$0xff]
      %v4009 = vld [vmem:[%s47 + $0x318] sm:$0xff]
      %v4010 = vld [vmem:[%s47 + $0x320] sm:$0xff]
      %v4011 = vld [vmem:[%s47 + $0x328] sm:$0xff]
      %v4012 = vld [vmem:[%s47 + $0x330] sm:$0xff]
      %v4013 = vld [vmem:[%s47 + $0x338] sm:$0xff]
      %v4014 = vld [vmem:[%s47 + $0x340] sm:$0xff]
      %v4015 = vld [vmem:[%s47 + $0x348] sm:$0xff]
      %v4016 = vld [vmem:[%s47 + $0x350] sm:$0xff]
      %v4017 = vld [vmem:[%s47 + $0x358] sm:$0xff]
      %v4018 = vld [vmem:[%s47 + $0x360] sm:$0xff]
      %v4019 = vld [vmem:[%s47 + $0x368] sm:$0xff]
      %v4020 = vld [vmem:[%s47 + $0x370] sm:$0xff]
      %v4021 = vld [vmem:[%s47 + $0x378] sm:$0xff]
      %v4022 = vld [vmem:[%s47 + $0x380] sm:$0xff]
      %v4023 = vld [vmem:[%s47 + $0x388] sm:$0xff]
      %v4024 = vld [vmem:[%s47 + $0x390] sm:$0xff]
      %v4025 = vld [vmem:[%s47 + $0x398] sm:$0xff]
      %v4026 = vld [vmem:[%s47 + $0x3a0] sm:$0xff]
      %v4027 = vld [vmem:[%s47 + $0x3a8] sm:$0xff]
      %v4028 = vld [vmem:[%s47 + $0x3b0] sm:$0xff]
      %v4029 = vld [vmem:[%s47 + $0x3b8] sm:$0xff]
      %v4030 = vld [vmem:[%s47 + $0x3c0] sm:$0xff]
      %v4031 = vld [vmem:[%s47 + $0x3c8] sm:$0xff]
      %v4032 = vld [vmem:[%s47 + $0x3d0] sm:$0xff]
      %v4033 = vld [vmem:[%s47 + $0x3d8] sm:$0xff]
      %v4034 = vld [vmem:[%s47 + $0x3e0] sm:$0xff]
      %v4035 = vld [vmem:[%s47 + $0x3e8] sm:$0xff]
      %v4036 = vld [vmem:[%s47 + $0x3f0] sm:$0xff]
      %v4037 = vld [vmem:[%s47 + $0x3f8] sm:$0xff]
      %v4166 = vunpack.c.l.b16 %v3910
      %v4167 = vunpack.c.h.b16 %v3910
      %v4168 = vunpack.c.l.b16 %v3911
      %v4169 = vunpack.c.h.b16 %v3911
      %v4170 = vunpack.c.l.b16 %v3912
      %v4171 = vunpack.c.h.b16 %v3912
      %v4172 = vunpack.c.l.b16 %v3913
      %v4173 = vunpack.c.h.b16 %v3913
      %v4174 = vunpack.c.l.b16 %v3914
      %v4175 = vunpack.c.h.b16 %v3914
      %v4176 = vunpack.c.l.b16 %v3915
      %v4177 = vunpack.c.h.b16 %v3915
      %v4178 = vunpack.c.l.b16 %v3916
      %v4179 = vunpack.c.h.b16 %v3916
      %v4180 = vunpack.c.l.b16 %v3917
      %v4181 = vunpack.c.h.b16 %v3917
      %v4182 = vunpack.c.l.b16 %v3918
      %v4183 = vunpack.c.h.b16 %v3918
      %v4184 = vunpack.c.l.b16 %v3919
      %v4185 = vunpack.c.h.b16 %v3919
      %v4186 = vunpack.c.l.b16 %v3920
      %v4187 = vunpack.c.h.b16 %v3920
      %v4188 = vunpack.c.l.b16 %v3921
      %v4189 = vunpack.c.h.b16 %v3921
      %v4190 = vunpack.c.l.b16 %v3922
      %v4191 = vunpack.c.h.b16 %v3922
      %v4192 = vunpack.c.l.b16 %v3923
      %v4193 = vunpack.c.h.b16 %v3923
      %v4194 = vunpack.c.l.b16 %v3924
      %v4195 = vunpack.c.h.b16 %v3924
      %v4196 = vunpack.c.l.b16 %v3925
      %v4197 = vunpack.c.h.b16 %v3925
      %v4198 = vunpack.c.l.b16 %v3926
      %v4199 = vunpack.c.h.b16 %v3926
      %v4200 = vunpack.c.l.b16 %v3927
      %v4201 = vunpack.c.h.b16 %v3927
      %v4202 = vunpack.c.l.b16 %v3928
      %v4203 = vunpack.c.h.b16 %v3928
      %v4204 = vunpack.c.l.b16 %v3929
      %v4205 = vunpack.c.h.b16 %v3929
      %v4206 = vunpack.c.l.b16 %v3930
      %v4207 = vunpack.c.h.b16 %v3930
      %v4208 = vunpack.c.l.b16 %v3931
      %v4209 = vunpack.c.h.b16 %v3931
      %v4210 = vunpack.c.l.b16 %v3932
      %v4211 = vunpack.c.h.b16 %v3932
      %v4212 = vunpack.c.l.b16 %v3933
      %v4213 = vunpack.c.h.b16 %v3933
      %v4214 = vunpack.c.l.b16 %v3934
      %v4215 = vunpack.c.h.b16 %v3934
      %v4216 = vunpack.c.l.b16 %v3935
      %v4217 = vunpack.c.h.b16 %v3935
      %v4218 = vunpack.c.l.b16 %v3936
      %v4219 = vunpack.c.h.b16 %v3936
      %v4220 = vunpack.c.l.b16 %v3937
      %v4221 = vunpack.c.h.b16 %v3937
      %v4222 = vunpack.c.l.b16 %v3938
      %v4223 = vunpack.c.h.b16 %v3938
      %v4224 = vunpack.c.l.b16 %v3939
      %v4225 = vunpack.c.h.b16 %v3939
      %v4226 = vunpack.c.l.b16 %v3940
      %v4227 = vunpack.c.h.b16 %v3940
      %v4228 = vunpack.c.l.b16 %v3941
      %v4229 = vunpack.c.h.b16 %v3941
      %v4230 = vunpack.c.l.b16 %v3942
      %v4231 = vunpack.c.h.b16 %v3942
      %v4232 = vunpack.c.l.b16 %v3943
      %v4233 = vunpack.c.h.b16 %v3943
      %v4234 = vunpack.c.l.b16 %v3944
      %v4235 = vunpack.c.h.b16 %v3944
      %v4236 = vunpack.c.l.b16 %v3945
      %v4237 = vunpack.c.h.b16 %v3945
      %v4238 = vunpack.c.l.b16 %v3946
      %v4239 = vunpack.c.h.b16 %v3946
      %v4240 = vunpack.c.l.b16 %v3947
      %v4241 = vunpack.c.h.b16 %v3947
      %v4242 = vunpack.c.l.b16 %v3948
      %v4243 = vunpack.c.h.b16 %v3948
      %v4244 = vunpack.c.l.b16 %v3949
      %v4245 = vunpack.c.h.b16 %v3949
      %v4246 = vunpack.c.l.b16 %v3950
      %v4247 = vunpack.c.h.b16 %v3950
      %v4248 = vunpack.c.l.b16 %v3951
      %v4249 = vunpack.c.h.b16 %v3951
      %v4250 = vunpack.c.l.b16 %v3952
      %v4251 = vunpack.c.h.b16 %v3952
      %v4252 = vunpack.c.l.b16 %v3953
      %v4253 = vunpack.c.h.b16 %v3953
      %v4254 = vunpack.c.l.b16 %v3954
      %v4255 = vunpack.c.h.b16 %v3954
      %v4256 = vunpack.c.l.b16 %v3955
      %v4257 = vunpack.c.h.b16 %v3955
      %v4258 = vunpack.c.l.b16 %v3956
      %v4259 = vunpack.c.h.b16 %v3956
      %v4260 = vunpack.c.l.b16 %v3957
      %v4261 = vunpack.c.h.b16 %v3957
      %v4262 = vunpack.c.l.b16 %v3958
      %v4263 = vunpack.c.h.b16 %v3958
      %v4264 = vunpack.c.l.b16 %v3959
      %v4265 = vunpack.c.h.b16 %v3959
      %v4266 = vunpack.c.l.b16 %v3960
      %v4267 = vunpack.c.h.b16 %v3960
      %v4268 = vunpack.c.l.b16 %v3961
      %v4269 = vunpack.c.h.b16 %v3961
      %v4270 = vunpack.c.l.b16 %v3962
      %v4271 = vunpack.c.h.b16 %v3962
      %v4272 = vunpack.c.l.b16 %v3963
      %v4273 = vunpack.c.h.b16 %v3963
      %v4274 = vunpack.c.l.b16 %v3964
      %v4275 = vunpack.c.h.b16 %v3964
      %v4276 = vunpack.c.l.b16 %v3965
      %v4277 = vunpack.c.h.b16 %v3965
      %v4278 = vunpack.c.l.b16 %v3966
      %v4279 = vunpack.c.h.b16 %v3966
      %v4280 = vunpack.c.l.b16 %v3967
      %v4281 = vunpack.c.h.b16 %v3967
      %v4282 = vunpack.c.l.b16 %v3968
      %v4283 = vunpack.c.h.b16 %v3968
      %v4284 = vunpack.c.l.b16 %v3969
      %v4285 = vunpack.c.h.b16 %v3969
      %v4286 = vunpack.c.l.b16 %v3970
      %v4287 = vunpack.c.h.b16 %v3970
      %v4288 = vunpack.c.l.b16 %v3971
      %v4289 = vunpack.c.h.b16 %v3971
      %v4290 = vunpack.c.l.b16 %v3972
      %v4291 = vunpack.c.h.b16 %v3972
      %v4292 = vunpack.c.l.b16 %v3973
      %v4293 = vunpack.c.h.b16 %v3973
      %v4294 = vunpack.c.l.b16 %v3974
      %v4295 = vunpack.c.h.b16 %v3974
      %v4296 = vunpack.c.l.b16 %v3975
      %v4297 = vunpack.c.h.b16 %v3975
      %v4298 = vunpack.c.l.b16 %v3976
      %v4299 = vunpack.c.h.b16 %v3976
      %v4300 = vunpack.c.l.b16 %v3977
      %v4301 = vunpack.c.h.b16 %v3977
      %v4302 = vunpack.c.l.b16 %v3978
      %v4303 = vunpack.c.h.b16 %v3978
      %v4304 = vunpack.c.l.b16 %v3979
      %v4305 = vunpack.c.h.b16 %v3979
      %v4306 = vunpack.c.l.b16 %v3980
      %v4307 = vunpack.c.h.b16 %v3980
      %v4308 = vunpack.c.l.b16 %v3981
      %v4309 = vunpack.c.h.b16 %v3981
      %v4310 = vunpack.c.l.b16 %v3982
      %v4311 = vunpack.c.h.b16 %v3982
      %v4312 = vunpack.c.l.b16 %v3983
      %v4313 = vunpack.c.h.b16 %v3983
      %v4314 = vunpack.c.l.b16 %v3984
      %v4315 = vunpack.c.h.b16 %v3984
      %v4316 = vunpack.c.l.b16 %v3985
      %v4317 = vunpack.c.h.b16 %v3985
      %v4318 = vunpack.c.l.b16 %v3986
      %v4319 = vunpack.c.h.b16 %v3986
      %v4320 = vunpack.c.l.b16 %v3987
      %v4321 = vunpack.c.h.b16 %v3987
      %v4322 = vunpack.c.l.b16 %v3988
      %v4323 = vunpack.c.h.b16 %v3988
      %v4324 = vunpack.c.l.b16 %v3989
      %v4325 = vunpack.c.h.b16 %v3989
      %v4326 = vunpack.c.l.b16 %v3990
      %v4327 = vunpack.c.h.b16 %v3990
      %v4328 = vunpack.c.l.b16 %v3991
      %v4329 = vunpack.c.h.b16 %v3991
      %v4330 = vunpack.c.l.b16 %v3992
      %v4331 = vunpack.c.h.b16 %v3992
      %v4332 = vunpack.c.l.b16 %v3993
      %v4333 = vunpack.c.h.b16 %v3993
      %v4334 = vunpack.c.l.b16 %v3994
      %v4335 = vunpack.c.h.b16 %v3994
      %v4336 = vunpack.c.l.b16 %v3995
      %v4337 = vunpack.c.h.b16 %v3995
      %v4338 = vunpack.c.l.b16 %v3996
      %v4339 = vunpack.c.h.b16 %v3996
      %v4340 = vunpack.c.l.b16 %v3997
      %v4341 = vunpack.c.h.b16 %v3997
      %v4342 = vunpack.c.l.b16 %v3998
      %v4343 = vunpack.c.h.b16 %v3998
      %v4344 = vunpack.c.l.b16 %v3999
      %v4345 = vunpack.c.h.b16 %v3999
      %v4346 = vunpack.c.l.b16 %v4000
      %v4347 = vunpack.c.h.b16 %v4000
      %v4348 = vunpack.c.l.b16 %v4001
      %v4349 = vunpack.c.h.b16 %v4001
      %v4350 = vunpack.c.l.b16 %v4002
      %v4351 = vunpack.c.h.b16 %v4002
      %v4352 = vunpack.c.l.b16 %v4003
      %v4353 = vunpack.c.h.b16 %v4003
      %v4354 = vunpack.c.l.b16 %v4004
      %v4355 = vunpack.c.h.b16 %v4004
      %v4356 = vunpack.c.l.b16 %v4005
      %v4357 = vunpack.c.h.b16 %v4005
      %v4358 = vunpack.c.l.b16 %v4006
      %v4359 = vunpack.c.h.b16 %v4006
      %v4360 = vunpack.c.l.b16 %v4007
      %v4361 = vunpack.c.h.b16 %v4007
      %v4362 = vunpack.c.l.b16 %v4008
      %v4363 = vunpack.c.h.b16 %v4008
      %v4364 = vunpack.c.l.b16 %v4009
      %v4365 = vunpack.c.h.b16 %v4009
      %v4366 = vunpack.c.l.b16 %v4010
      %v4367 = vunpack.c.h.b16 %v4010
      %v4368 = vunpack.c.l.b16 %v4011
      %v4369 = vunpack.c.h.b16 %v4011
      %v4370 = vunpack.c.l.b16 %v4012
      %v4371 = vunpack.c.h.b16 %v4012
      %v4372 = vunpack.c.l.b16 %v4013
      %v4373 = vunpack.c.h.b16 %v4013
      %v4374 = vunpack.c.l.b16 %v4014
      %v4375 = vunpack.c.h.b16 %v4014
      %v4376 = vunpack.c.l.b16 %v4015
      %v4377 = vunpack.c.h.b16 %v4015
      %v4378 = vunpack.c.l.b16 %v4016
      %v4379 = vunpack.c.h.b16 %v4016
      %v4380 = vunpack.c.l.b16 %v4017
      %v4381 = vunpack.c.h.b16 %v4017
      %v4382 = vunpack.c.l.b16 %v4018
      %v4383 = vunpack.c.h.b16 %v4018
      %v4384 = vunpack.c.l.b16 %v4019
      %v4385 = vunpack.c.h.b16 %v4019
      %v4386 = vunpack.c.l.b16 %v4020
      %v4387 = vunpack.c.h.b16 %v4020
      %v4388 = vunpack.c.l.b16 %v4021
      %v4389 = vunpack.c.h.b16 %v4021
      %v4390 = vunpack.c.l.b16 %v4022
      %v4391 = vunpack.c.h.b16 %v4022
      %v4392 = vunpack.c.l.b16 %v4023
      %v4393 = vunpack.c.h.b16 %v4023
      %v4394 = vunpack.c.l.b16 %v4024
      %v4395 = vunpack.c.h.b16 %v4024
      %v4396 = vunpack.c.l.b16 %v4025
      %v4397 = vunpack.c.h.b16 %v4025
      %v4398 = vunpack.c.l.b16 %v4026
      %v4399 = vunpack.c.h.b16 %v4026
      %v4400 = vunpack.c.l.b16 %v4027
      %v4401 = vunpack.c.h.b16 %v4027
      %v4402 = vunpack.c.l.b16 %v4028
      %v4403 = vunpack.c.h.b16 %v4028
      %v4404 = vunpack.c.l.b16 %v4029
      %v4405 = vunpack.c.h.b16 %v4029
      %v4406 = vunpack.c.l.b16 %v4030
      %v4407 = vunpack.c.h.b16 %v4030
      %v4408 = vunpack.c.l.b16 %v4031
      %v4409 = vunpack.c.h.b16 %v4031
      %v4410 = vunpack.c.l.b16 %v4032
      %v4411 = vunpack.c.h.b16 %v4032
      %v4412 = vunpack.c.l.b16 %v4033
      %v4413 = vunpack.c.h.b16 %v4033
      %v4414 = vunpack.c.l.b16 %v4034
      %v4415 = vunpack.c.h.b16 %v4034
      %v4416 = vunpack.c.l.b16 %v4035
      %v4417 = vunpack.c.h.b16 %v4035
      %v4418 = vunpack.c.l.b16 %v4036
      %v4419 = vunpack.c.h.b16 %v4036
      %v4420 = vunpack.c.l.b16 %v4037
      %v4421 = vunpack.c.h.b16 %v4037
      %v4422 = vpack.c.b16 %v4174, %v4166
      %v4423 = vpack.c.b16 %v4175, %v4167
      %v4424 = vpack.c.b16 %v4176, %v4168
      %v4425 = vpack.c.b16 %v4177, %v4169
      %v4426 = vpack.c.b16 %v4178, %v4170
      %v4427 = vpack.c.b16 %v4179, %v4171
      %v4428 = vpack.c.b16 %v4180, %v4172
      %v4429 = vpack.c.b16 %v4181, %v4173
      %v4430 = vpack.c.b16 %v4190, %v4182
      %v4431 = vpack.c.b16 %v4191, %v4183
      %v4432 = vpack.c.b16 %v4192, %v4184
      %v4433 = vpack.c.b16 %v4193, %v4185
      %v4434 = vpack.c.b16 %v4194, %v4186
      %v4435 = vpack.c.b16 %v4195, %v4187
      %v4436 = vpack.c.b16 %v4196, %v4188
      %v4437 = vpack.c.b16 %v4197, %v4189
      %v4438 = vpack.c.b16 %v4206, %v4198
      %v4439 = vpack.c.b16 %v4207, %v4199
      %v4440 = vpack.c.b16 %v4208, %v4200
      %v4441 = vpack.c.b16 %v4209, %v4201
      %v4442 = vpack.c.b16 %v4210, %v4202
      %v4443 = vpack.c.b16 %v4211, %v4203
      %v4444 = vpack.c.b16 %v4212, %v4204
      %v4445 = vpack.c.b16 %v4213, %v4205
      %v4446 = vpack.c.b16 %v4222, %v4214
      %v4447 = vpack.c.b16 %v4223, %v4215
      %v4448 = vpack.c.b16 %v4224, %v4216
      %v4449 = vpack.c.b16 %v4225, %v4217
      %v4450 = vpack.c.b16 %v4226, %v4218
      %v4451 = vpack.c.b16 %v4227, %v4219
      %v4452 = vpack.c.b16 %v4228, %v4220
      %v4453 = vpack.c.b16 %v4229, %v4221
      %v4454 = vpack.c.b16 %v4238, %v4230
      %v4455 = vpack.c.b16 %v4239, %v4231
      %v4456 = vpack.c.b16 %v4240, %v4232
      %v4457 = vpack.c.b16 %v4241, %v4233
      %v4458 = vpack.c.b16 %v4242, %v4234
      %v4459 = vpack.c.b16 %v4243, %v4235
      %v4460 = vpack.c.b16 %v4244, %v4236
      %v4461 = vpack.c.b16 %v4245, %v4237
      %v4462 = vpack.c.b16 %v4254, %v4246
      %v4463 = vpack.c.b16 %v4255, %v4247
      %v4464 = vpack.c.b16 %v4256, %v4248
      %v4465 = vpack.c.b16 %v4257, %v4249
      %v4466 = vpack.c.b16 %v4258, %v4250
      %v4467 = vpack.c.b16 %v4259, %v4251
      %v4468 = vpack.c.b16 %v4260, %v4252
      %v4469 = vpack.c.b16 %v4261, %v4253
      %v4470 = vpack.c.b16 %v4270, %v4262
      %v4471 = vpack.c.b16 %v4271, %v4263
      %v4472 = vpack.c.b16 %v4272, %v4264
      %v4473 = vpack.c.b16 %v4273, %v4265
      %v4474 = vpack.c.b16 %v4274, %v4266
      %v4475 = vpack.c.b16 %v4275, %v4267
      %v4476 = vpack.c.b16 %v4276, %v4268
      %v4477 = vpack.c.b16 %v4277, %v4269
      %v4478 = vpack.c.b16 %v4286, %v4278
      %v4479 = vpack.c.b16 %v4287, %v4279
      %v4480 = vpack.c.b16 %v4288, %v4280
      %v4481 = vpack.c.b16 %v4289, %v4281
      %v4482 = vpack.c.b16 %v4290, %v4282
      %v4483 = vpack.c.b16 %v4291, %v4283
      %v4484 = vpack.c.b16 %v4292, %v4284
      %v4485 = vpack.c.b16 %v4293, %v4285
      %v4486 = vpack.c.b16 %v4302, %v4294
      %v4487 = vpack.c.b16 %v4303, %v4295
      %v4488 = vpack.c.b16 %v4304, %v4296
      %v4489 = vpack.c.b16 %v4305, %v4297
      %v4490 = vpack.c.b16 %v4306, %v4298
      %v4491 = vpack.c.b16 %v4307, %v4299
      %v4492 = vpack.c.b16 %v4308, %v4300
      %v4493 = vpack.c.b16 %v4309, %v4301
      %v4494 = vpack.c.b16 %v4318, %v4310
      %v4495 = vpack.c.b16 %v4319, %v4311
      %v4496 = vpack.c.b16 %v4320, %v4312
      %v4497 = vpack.c.b16 %v4321, %v4313
      %v4498 = vpack.c.b16 %v4322, %v4314
      %v4499 = vpack.c.b16 %v4323, %v4315
      %v4500 = vpack.c.b16 %v4324, %v4316
      %v4501 = vpack.c.b16 %v4325, %v4317
      %v4502 = vpack.c.b16 %v4334, %v4326
      %v4503 = vpack.c.b16 %v4335, %v4327
      %v4504 = vpack.c.b16 %v4336, %v4328
      %v4505 = vpack.c.b16 %v4337, %v4329
      %v4506 = vpack.c.b16 %v4338, %v4330
      %v4507 = vpack.c.b16 %v4339, %v4331
      %v4508 = vpack.c.b16 %v4340, %v4332
      %v4509 = vpack.c.b16 %v4341, %v4333
      %v4510 = vpack.c.b16 %v4350, %v4342
      %v4511 = vpack.c.b16 %v4351, %v4343
      %v4512 = vpack.c.b16 %v4352, %v4344
      %v4513 = vpack.c.b16 %v4353, %v4345
      %v4514 = vpack.c.b16 %v4354, %v4346
      %v4515 = vpack.c.b16 %v4355, %v4347
      %v4516 = vpack.c.b16 %v4356, %v4348
      %v4517 = vpack.c.b16 %v4357, %v4349
      %v4518 = vpack.c.b16 %v4366, %v4358
      %v4519 = vpack.c.b16 %v4367, %v4359
      %v4520 = vpack.c.b16 %v4368, %v4360
      %v4521 = vpack.c.b16 %v4369, %v4361
      %v4522 = vpack.c.b16 %v4370, %v4362
      %v4523 = vpack.c.b16 %v4371, %v4363
      %v4524 = vpack.c.b16 %v4372, %v4364
      %v4525 = vpack.c.b16 %v4373, %v4365
      %v4526 = vpack.c.b16 %v4382, %v4374
      %v4527 = vpack.c.b16 %v4383, %v4375
      %v4528 = vpack.c.b16 %v4384, %v4376
      %v4529 = vpack.c.b16 %v4385, %v4377
      %v4530 = vpack.c.b16 %v4386, %v4378
      %v4531 = vpack.c.b16 %v4387, %v4379
      %v4532 = vpack.c.b16 %v4388, %v4380
      %v4533 = vpack.c.b16 %v4389, %v4381
      %v4534 = vpack.c.b16 %v4398, %v4390
      %v4535 = vpack.c.b16 %v4399, %v4391
      %v4536 = vpack.c.b16 %v4400, %v4392
      %v4537 = vpack.c.b16 %v4401, %v4393
      %v4538 = vpack.c.b16 %v4402, %v4394
      %v4539 = vpack.c.b16 %v4403, %v4395
      %v4540 = vpack.c.b16 %v4404, %v4396
      %v4541 = vpack.c.b16 %v4405, %v4397
      %v4542 = vpack.c.b16 %v4414, %v4406
      %v4543 = vpack.c.b16 %v4415, %v4407
      %v4544 = vpack.c.b16 %v4416, %v4408
      %v4545 = vpack.c.b16 %v4417, %v4409
      %v4546 = vpack.c.b16 %v4418, %v4410
      %v4547 = vpack.c.b16 %v4419, %v4411
      %v4548 = vpack.c.b16 %v4420, %v4412
      %v4549 = vpack.c.b16 %v4421, %v4413
      %4678 = vmatprep.subr.bf16.mxu0 %v4423
      %4679 = vmatpush1.bf16.msra.mxu0 %v4422
      %4680 = vmatprep.subr.bf16.mxu0 %v4431
      %4681 = vmatpush1.bf16.msra.mxu0 %v4430
      %4682 = vmatprep.subr.bf16.mxu0 %v4439
      %4683 = vmatpush1.bf16.msra.mxu0 %v4438
      %4684 = vmatprep.subr.bf16.mxu0 %v4447
      %4685 = vmatpush1.bf16.msra.mxu0 %v4446
      %4686 = vmatprep.subr.bf16.mxu0 %v4455
      %4687 = vmatpush1.bf16.msra.mxu0 %v4454
      %4688 = vmatprep.subr.bf16.mxu0 %v4463
      %4689 = vmatpush1.bf16.msra.mxu0 %v4462
      %4690 = vmatprep.subr.bf16.mxu0 %v4471
      %4691 = vmatpush1.bf16.msra.mxu0 %v4470
      %4692 = vmatprep.subr.bf16.mxu0 %v4479
      %4693 = vmatpush1.bf16.msra.mxu0 %v4478
      %4694 = vmatprep.subr.bf16.mxu0 %v4487
      %4695 = vmatpush1.bf16.msra.mxu0 %v4486
      %4696 = vmatprep.subr.bf16.mxu0 %v4495
      %4697 = vmatpush1.bf16.msra.mxu0 %v4494
      %4698 = vmatprep.subr.bf16.mxu0 %v4503
      %4699 = vmatpush1.bf16.msra.mxu0 %v4502
      %4700 = vmatprep.subr.bf16.mxu0 %v4511
      %4701 = vmatpush1.bf16.msra.mxu0 %v4510
      %4702 = vmatprep.subr.bf16.mxu0 %v4519
      %4703 = vmatpush1.bf16.msra.mxu0 %v4518
      %4704 = vmatprep.subr.bf16.mxu0 %v4527
      %4705 = vmatpush1.bf16.msra.mxu0 %v4526
      %4706 = vmatprep.subr.bf16.mxu0 %v4535
      %4707 = vmatpush1.bf16.msra.mxu0 %v4534
      %4708 = vmatprep.subr.bf16.mxu0 %v4543
      %4709 = vmatpush1.bf16.msra.mxu0 %v4542
      %4710 = vmatprep.mubr.bf16.mxu0 %v3909
      %4711 = vmatmul.mubr.bf16.gmra.mrb[0].mxu0 %v3908
      %v4712 = vpop.f32.mrb[0].mxu0
      %v4713 = vadd.f32 0.0, %v4712
      %v4714 = vpop.f32.mrb[0].mxu0
      %v4715 = vadd.f32 0.0, %v4714
      %v4716 = vpop.f32.mrb[0].mxu0
      %v4717 = vadd.f32 0.0, %v4716
      %v4718 = vpop.f32.mrb[0].mxu0
      %v4719 = vadd.f32 0.0, %v4718
      %4720 = vdwg.mxu0
      %4721 = vmatprep.subr.bf16.mxu0 %v4425
      %4722 = vmatpush1.bf16.msra.mxu0 %v4424
      %4723 = vmatprep.subr.bf16.mxu0 %v4433
      %4724 = vmatpush1.bf16.msra.mxu0 %v4432
      %4725 = vmatprep.subr.bf16.mxu0 %v4441
      %4726 = vmatpush1.bf16.msra.mxu0 %v4440
      %4727 = vmatprep.subr.bf16.mxu0 %v4449
      %4728 = vmatpush1.bf16.msra.mxu0 %v4448
      %4729 = vmatprep.subr.bf16.mxu0 %v4457
      %4730 = vmatpush1.bf16.msra.mxu0 %v4456
      %4731 = vmatprep.subr.bf16.mxu0 %v4465
      %4732 = vmatpush1.bf16.msra.mxu0 %v4464
      %4733 = vmatprep.subr.bf16.mxu0 %v4473
      %4734 = vmatpush1.bf16.msra.mxu0 %v4472
      %4735 = vmatprep.subr.bf16.mxu0 %v4481
      %4736 = vmatpush1.bf16.msra.mxu0 %v4480
      %4737 = vmatprep.subr.bf16.mxu0 %v4489
      %4738 = vmatpush1.bf16.msra.mxu0 %v4488
      %4739 = vmatprep.subr.bf16.mxu0 %v4497
      %4740 = vmatpush1.bf16.msra.mxu0 %v4496
      %4741 = vmatprep.subr.bf16.mxu0 %v4505
      %4742 = vmatpush1.bf16.msra.mxu0 %v4504
      %4743 = vmatprep.subr.bf16.mxu0 %v4513
      %4744 = vmatpush1.bf16.msra.mxu0 %v4512
      %4745 = vmatprep.subr.bf16.mxu0 %v4521
      %4746 = vmatpush1.bf16.msra.mxu0 %v4520
      %4747 = vmatprep.subr.bf16.mxu0 %v4529
      %4748 = vmatpush1.bf16.msra.mxu0 %v4528
      %4749 = vmatprep.subr.bf16.mxu0 %v4537
      %4750 = vmatpush1.bf16.msra.mxu0 %v4536
      %4751 = vmatprep.subr.bf16.mxu0 %v4545
      %4752 = vmatpush1.bf16.msra.mxu0 %v4544
      %4753 = vmatprep.mubr.bf16.mxu0 %v3909
      %4754 = vmatmul.mubr.bf16.gmra.mrb[0].mxu0 %v3908
      %v4755 = vpop.f32.mrb[0].mxu0
      %v4756 = vadd.f32 0.0, %v4755
      %v4757 = vpop.f32.mrb[0].mxu0
      %v4758 = vadd.f32 0.0, %v4757
      %v4759 = vpop.f32.mrb[0].mxu0
      %v4760 = vadd.f32 0.0, %v4759
      %v4761 = vpop.f32.mrb[0].mxu0
      %v4762 = vadd.f32 0.0, %v4761
      %4763 = vdwg.mxu0
      %4764 = vmatprep.subr.bf16.mxu0 %v4427
      %4765 = vmatpush1.bf16.msra.mxu0 %v4426
      %4766 = vmatprep.subr.bf16.mxu0 %v4435
      %4767 = vmatpush1.bf16.msra.mxu0 %v4434
      %4768 = vmatprep.subr.bf16.mxu0 %v4443
      %4769 = vmatpush1.bf16.msra.mxu0 %v4442
      %4770 = vmatprep.subr.bf16.mxu0 %v4451
      %4771 = vmatpush1.bf16.msra.mxu0 %v4450
      %4772 = vmatprep.subr.bf16.mxu0 %v4459
      %4773 = vmatpush1.bf16.msra.mxu0 %v4458
      %4774 = vmatprep.subr.bf16.mxu0 %v4467
      %4775 = vmatpush1.bf16.msra.mxu0 %v4466
      %4776 = vmatprep.subr.bf16.mxu0 %v4475
      %4777 = vmatpush1.bf16.msra.mxu0 %v4474
      %4778 = vmatprep.subr.bf16.mxu0 %v4483
      %4779 = vmatpush1.bf16.msra.mxu0 %v4482
      %4780 = vmatprep.subr.bf16.mxu0 %v4491
      %4781 = vmatpush1.bf16.msra.mxu0 %v4490
      %4782 = vmatprep.subr.bf16.mxu0 %v4499
      %4783 = vmatpush1.bf16.msra.mxu0 %v4498
      %4784 = vmatprep.subr.bf16.mxu0 %v4507
      %4785 = vmatpush1.bf16.msra.mxu0 %v4506
      %4786 = vmatprep.subr.bf16.mxu0 %v4515
      %4787 = vmatpush1.bf16.msra.mxu0 %v4514
      %4788 = vmatprep.subr.bf16.mxu0 %v4523
      %4789 = vmatpush1.bf16.msra.mxu0 %v4522
      %4790 = vmatprep.subr.bf16.mxu0 %v4531
      %4791 = vmatpush1.bf16.msra.mxu0 %v4530
      %4792 = vmatprep.subr.bf16.mxu0 %v4539
      %4793 = vmatpush1.bf16.msra.mxu0 %v4538
      %4794 = vmatprep.subr.bf16.mxu0 %v4547
      %4795 = vmatpush1.bf16.msra.mxu0 %v4546
      %4796 = vmatprep.mubr.bf16.mxu0 %v3909
      %4797 = vmatmul.mubr.bf16.gmra.mrb[0].mxu0 %v3908
      %v4798 = vpop.f32.mrb[0].mxu0
      %v4799 = vadd.f32 0.0, %v4798
      %v4800 = vpop.f32.mrb[0].mxu0
      %v4801 = vadd.f32 0.0, %v4800
      %v4802 = vpop.f32.mrb[0].mxu0
      %v4803 = vadd.f32 0.0, %v4802
      %v4804 = vpop.f32.mrb[0].mxu0
      %v4805 = vadd.f32 0.0, %v4804
      %4806 = vdwg.mxu0
      %4807 = vmatprep.subr.bf16.mxu0 %v4429
      %4808 = vmatpush1.bf16.msra.mxu0 %v4428
      %4809 = vmatprep.subr.bf16.mxu0 %v4437
      %4810 = vmatpush1.bf16.msra.mxu0 %v4436
      %4811 = vmatprep.subr.bf16.mxu0 %v4445
      %4812 = vmatpush1.bf16.msra.mxu0 %v4444
      %4813 = vmatprep.subr.bf16.mxu0 %v4453
      %4814 = vmatpush1.bf16.msra.mxu0 %v4452
      %4815 = vmatprep.subr.bf16.mxu0 %v4461
      %4816 = vmatpush1.bf16.msra.mxu0 %v4460
      %4817 = vmatprep.subr.bf16.mxu0 %v4469
      %4818 = vmatpush1.bf16.msra.mxu0 %v4468
      %4819 = vmatprep.subr.bf16.mxu0 %v4477
      %4820 = vmatpush1.bf16.msra.mxu0 %v4476
      %4821 = vmatprep.subr.bf16.mxu0 %v4485
      %4822 = vmatpush1.bf16.msra.mxu0 %v4484
      %4823 = vmatprep.subr.bf16.mxu0 %v4493
      %4824 = vmatpush1.bf16.msra.mxu0 %v4492
      %4825 = vmatprep.subr.bf16.mxu0 %v4501
      %4826 = vmatpush1.bf16.msra.mxu0 %v4500
      %4827 = vmatprep.subr.bf16.mxu0 %v4509
      %4828 = vmatpush1.bf16.msra.mxu0 %v4508
      %4829 = vmatprep.subr.bf16.mxu0 %v4517
      %4830 = vmatpush1.bf16.msra.mxu0 %v4516
      %4831 = vmatprep.subr.bf16.mxu0 %v4525
      %4832 = vmatpush1.bf16.msra.mxu0 %v4524
      %4833 = vmatprep.subr.bf16.mxu0 %v4533
      %4834 = vmatpush1.bf16.msra.mxu0 %v4532
      %4835 = vmatprep.subr.bf16.mxu0 %v4541
      %4836 = vmatpush1.bf16.msra.mxu0 %v4540
      %4837 = vmatprep.subr.bf16.mxu0 %v4549
      %4838 = vmatpush1.bf16.msra.mxu0 %v4548
      %4839 = vmatprep.mubr.bf16.mxu0 %v3909
      %4840 = vmatmul.mubr.bf16.gmra.mrb[0].mxu0 %v3908
      %v4841 = vpop.f32.mrb[0].mxu0
      %v4842 = vadd.f32 0.0, %v4841
      %v4843 = vpop.f32.mrb[0].mxu0
      %v4844 = vadd.f32 0.0, %v4843
      %v4845 = vpop.f32.mrb[0].mxu0
      %v4846 = vadd.f32 0.0, %v4845
      %v4847 = vpop.f32.mrb[0].mxu0
      %v4848 = vadd.f32 0.0, %v4847
      %4849 = vdwg.mxu0
      %v4850 = vld [vmem:[%s977] sm:$0xff]
      %v4851 = vld [vmem:[%s977 + $0x8] sm:$0xff]
      %v4852 = vld [vmem:[%s977 + $0x10] sm:$0xff]
      %v4853 = vld [vmem:[%s977 + $0x18] sm:$0xff]
      %v4854 = vld [vmem:[%s977 + $0x20] sm:$0xff]
      %v4855 = vld [vmem:[%s977 + $0x28] sm:$0xff]
      %v4856 = vld [vmem:[%s977 + $0x30] sm:$0xff]
      %v4857 = vld [vmem:[%s977 + $0x38] sm:$0xff]
      %v4858 = vld [vmem:[%s51] sm:$0xff]
      %v4859 = vld [vmem:[%s51 + $0x8] sm:$0xff]
      %v4860 = vld [vmem:[%s51 + $0x10] sm:$0xff]
      %v4861 = vld [vmem:[%s53] sm:$0xff]
      %v4862 = vld [vmem:[%s53 + $0x8] sm:$0xff]
      %v4863 = vld [vmem:[%s53 + $0x10] sm:$0xff]
      %v4864 = vld [vmem:[%s49] sm:$0xff]
      %v4865 = vld [vmem:[%s49 + $0x8] sm:$0xff]
      %v4866 = vld [vmem:[%s49 + $0x10] sm:$0xff]
      %v4867 = vld [vmem:[%s49 + $0x18] sm:$0xff]
      %4868 = vrot.lane.b32.xlu0 %v4713, 32
      %v4869 = vpop.permute.xlu0 %4868
      %4870 = vrot.lane.b32.xlu0 %v4717, 32
      %v4871 = vpop.permute.xlu0 %4870
      %4872 = vrot.lane.b32.xlu0 %v4850, 32
      %v4873 = vpop.permute.xlu0 %4872
      %4874 = vrot.lane.b32.xlu0 %v4715, 32
      %v4875 = vpop.permute.xlu0 %4874
      %4876 = vrot.lane.b32.xlu0 %v4719, 32
      %v4877 = vpop.permute.xlu0 %4876
      %4878 = vrot.lane.b32.xlu0 %v4851, 32
      %v4879 = vpop.permute.xlu0 %4878
      %4880 = vrot.lane.b32.xlu0 %v4756, 32
      %v4881 = vpop.permute.xlu0 %4880
      %4882 = vrot.lane.b32.xlu0 %v4760, 32
      %v4883 = vpop.permute.xlu0 %4882
      %4884 = vrot.lane.b32.xlu0 %v4852, 32
      %v4885 = vpop.permute.xlu0 %4884
      %4886 = vrot.lane.b32.xlu0 %v4758, 32
      %v4887 = vpop.permute.xlu0 %4886
      %4888 = vrot.lane.b32.xlu0 %v4762, 32
      %v4889 = vpop.permute.xlu0 %4888
      %4890 = vrot.lane.b32.xlu0 %v4853, 32
      %v4891 = vpop.permute.xlu0 %4890
      %4892 = vrot.lane.b32.xlu0 %v4799, 32
      %v4893 = vpop.permute.xlu0 %4892
      %4894 = vrot.lane.b32.xlu0 %v4803, 32
      %v4895 = vpop.permute.xlu0 %4894
      %4896 = vrot.lane.b32.xlu0 %v4854, 32
      %v4897 = vpop.permute.xlu0 %4896
      %4898 = vrot.lane.b32.xlu0 %v4801, 32
      %v4899 = vpop.permute.xlu0 %4898
      %4900 = vrot.lane.b32.xlu0 %v4805, 32
      %v4901 = vpop.permute.xlu0 %4900
      %4902 = vrot.lane.b32.xlu0 %v4855, 32
      %v4903 = vpop.permute.xlu0 %4902
      %4904 = vrot.lane.b32.xlu0 %v4842, 32
      %v4905 = vpop.permute.xlu0 %4904
      %4906 = vrot.lane.b32.xlu0 %v4846, 32
      %v4907 = vpop.permute.xlu0 %4906
      %4908 = vrot.lane.b32.xlu0 %v4856, 32
      %v4909 = vpop.permute.xlu0 %4908
      %4910 = vrot.lane.b32.xlu0 %v4844, 32
      %v4911 = vpop.permute.xlu0 %4910
      %4912 = vrot.lane.b32.xlu0 %v4848, 32
      %v4913 = vpop.permute.xlu0 %4912
      %4914 = vrot.lane.b32.xlu0 %v4857, 32
      %v4915 = vpop.permute.xlu0 %4914
      %vm4916 = vcmp.lt.s32.totalorder %v3193, 32
      %v4917 = vsel %vm4916, %v4905, %v4911
      %v4918 = vsel %vm4916, %v4907, %v4913
      %v4919 = vsel %vm4916, %v4909, %v4915
      %v4920 = vsel %vm4916, %v4899, %v4905
      %v4921 = vsel %vm4916, %v4901, %v4907
      %v4922 = vsel %vm4916, %v4903, %v4909
      %v4923 = vsel %vm4916, %v4893, %v4899
      %v4924 = vsel %vm4916, %v4895, %v4901
      %v4925 = vsel %vm4916, %v4897, %v4903
      %v4926 = vsel %vm4916, %v4887, %v4893
      %v4927 = vsel %vm4916, %v4889, %v4895
      %v4928 = vsel %vm4916, %v4891, %v4897
      %v4929 = vsel %vm4916, %v4881, %v4887
      %v4930 = vsel %vm4916, %v4883, %v4889
      %v4931 = vsel %vm4916, %v4885, %v4891
      %v4932 = vsel %vm4916, %v4875, %v4881
      %v4933 = vsel %vm4916, %v4877, %v4883
      %v4934 = vsel %vm4916, %v4879, %v4885
      %v4935 = vsel %vm4916, %v4869, %v4875
      %v4936 = vsel %vm4916, %v4871, %v4877
      %v4937 = vsel %vm4916, %v4873, %v4879
      %v4938 = vsel %vm4916, %v4911, %v4869
      %v4939 = vsel %vm4916, %v4913, %v4871
      %v4940 = vsel %vm4916, %v4915, %v4873
      %v4945 = vlaneseq
      %v4946 = vshrl.u32 %v4945, 7
      %v4947 = vsub.s32 0, %v4946
      %v4948 = vrot.slane %v4864, %v4947
      %v4949 = vlaneseq
      %v4950 = vshrl.u32 %v4949, 7
      %v4951 = vsub.s32 4, %v4950
      %v4952 = vrot.slane %v4864, %v4951
      %v4953 = vlaneseq
      %v4954 = vshrl.u32 %v4953, 7
      %v4955 = vsub.s32 0, %v4954
      %v4956 = vrot.slane %v4865, %v4955
      %v4957 = vlaneseq
      %v4958 = vshrl.u32 %v4957, 7
      %v4959 = vsub.s32 4, %v4958
      %v4960 = vrot.slane %v4865, %v4959
      %v4961 = vlaneseq
      %v4962 = vshrl.u32 %v4961, 7
      %v4963 = vsub.s32 0, %v4962
      %v4964 = vrot.slane %v4866, %v4963
      %v4965 = vlaneseq
      %v4966 = vshrl.u32 %v4965, 7
      %v4967 = vsub.s32 4, %v4966
      %v4968 = vrot.slane %v4866, %v4967
      %v4969 = vlaneseq
      %v4970 = vshrl.u32 %v4969, 7
      %v4971 = vsub.s32 0, %v4970
      %v4972 = vrot.slane %v4867, %v4971
      %v4973 = vlaneseq
      %v4974 = vshrl.u32 %v4973, 7
      %v4975 = vsub.s32 4, %v4974
      %v4976 = vrot.slane %v4867, %v4975
      %v4985 = vlaneseq
      %v4986 = vshrl.u32 %v4985, 7
      %v4987 = vsub.s32 0, %v4986
      %v4988 = vrot.slane %v4948, %v4987
      %v4989 = vlaneseq
      %v4990 = vshrl.u32 %v4989, 7
      %v4991 = vsub.s32 0, %v4990
      %v4992 = vrot.slane %v4952, %v4991
      %v4993 = vlaneseq
      %v4994 = vshrl.u32 %v4993, 7
      %v4995 = vsub.s32 0, %v4994
      %v4996 = vrot.slane %v4956, %v4995
      %v4997 = vlaneseq
      %v4998 = vshrl.u32 %v4997, 7
      %v4999 = vsub.s32 0, %v4998
      %v5000 = vrot.slane %v4960, %v4999
      %v5001 = vlaneseq
      %v5002 = vshrl.u32 %v5001, 7
      %v5003 = vsub.s32 0, %v5002
      %v5004 = vrot.slane %v4964, %v5003
      %v5005 = vlaneseq
      %v5006 = vshrl.u32 %v5005, 7
      %v5007 = vsub.s32 0, %v5006
      %v5008 = vrot.slane %v4968, %v5007
      %v5009 = vlaneseq
      %v5010 = vshrl.u32 %v5009, 7
      %v5011 = vsub.s32 0, %v5010
      %v5012 = vrot.slane %v4972, %v5011
      %v5013 = vlaneseq
      %v5014 = vshrl.u32 %v5013, 7
      %v5015 = vsub.s32 0, %v5014
      %v5016 = vrot.slane %v4976, %v5015
      %v5017 = vmul.f32 %v4938, %v4988
      %v5018 = vmul.f32 %v4935, %v4992
      %v5019 = vmul.f32 %v4932, %v4996
      %v5020 = vmul.f32 %v4929, %v5000
      %v5021 = vmul.f32 %v4926, %v5004
      %v5022 = vmul.f32 %v4923, %v5008
      %v5023 = vmul.f32 %v4920, %v5012
      %v5024 = vmul.f32 %v4917, %v5016
      %v5025 = vmul.f32 %v4939, %v4988
      %v5026 = vmul.f32 %v4936, %v4992
      %v5027 = vmul.f32 %v4933, %v4996
      %v5028 = vmul.f32 %v4930, %v5000
      %v5029 = vmul.f32 %v4927, %v5004
      %v5030 = vmul.f32 %v4924, %v5008
      %v5031 = vmul.f32 %v4921, %v5012
      %v5032 = vmul.f32 %v4918, %v5016
      %v5033 = vmul.f32 %v4940, %v4988
      %v5034 = vmul.f32 %v4937, %v4992
      %v5035 = vmul.f32 %v4934, %v4996
      %v5036 = vmul.f32 %v4931, %v5000
      %v5037 = vmul.f32 %v4928, %v5004
      %v5038 = vmul.f32 %v4925, %v5008
      %v5039 = vmul.f32 %v4922, %v5012
      %v5040 = vmul.f32 %v4919, %v5016
      %5042 = vset.pattern.permute.xlu0 0
      %5043 = vperm.xlu0 %5042, %v4858
      %v5044 = vpop.permute.xlu0 %5043
      %5047 = vset.pattern.permute.xlu0 0
      %5048 = vperm.xlu0 %5047, %v4859
      %v5049 = vpop.permute.xlu0 %5048
      %5052 = vset.pattern.permute.xlu0 0
      %5053 = vperm.xlu0 %5052, %v4860
      %v5054 = vpop.permute.xlu0 %5053
      %v5056 = vmul.f32 %v5017, %v5044
      %v5057 = vmul.f32 %v5018, %v5044
      %v5058 = vmul.f32 %v5019, %v5044
      %v5059 = vmul.f32 %v5020, %v5044
      %v5060 = vmul.f32 %v5021, %v5044
      %v5061 = vmul.f32 %v5022, %v5044
      %v5062 = vmul.f32 %v5023, %v5044
      %v5063 = vmul.f32 %v5024, %v5044
      %v5064 = vmul.f32 %v5025, %v5049
      %v5065 = vmul.f32 %v5026, %v5049
      %v5066 = vmul.f32 %v5027, %v5049
      %v5067 = vmul.f32 %v5028, %v5049
      %v5068 = vmul.f32 %v5029, %v5049
      %v5069 = vmul.f32 %v5030, %v5049
      %v5070 = vmul.f32 %v5031, %v5049
      %v5071 = vmul.f32 %v5032, %v5049
      %v5072 = vmul.f32 %v5033, %v5054
      %v5073 = vmul.f32 %v5034, %v5054
      %v5074 = vmul.f32 %v5035, %v5054
      %v5075 = vmul.f32 %v5036, %v5054
      %v5076 = vmul.f32 %v5037, %v5054
      %v5077 = vmul.f32 %v5038, %v5054
      %v5078 = vmul.f32 %v5039, %v5054
      %v5079 = vmul.f32 %v5040, %v5054
      %5080 = vset.pattern.permute.xlu0 1
      %5081 = vperm.xlu0 %5080, %v4858
      %v5082 = vpop.permute.xlu0 %5081
      %5084 = vset.pattern.permute.xlu0 1
      %5085 = vperm.xlu0 %5084, %v4859
      %v5086 = vpop.permute.xlu0 %5085
      %5088 = vset.pattern.permute.xlu0 1
      %5089 = vperm.xlu0 %5088, %v4860
      %v5090 = vpop.permute.xlu0 %5089
      %v5092 = vmul.f32 %v5017, %v5082
      %v5093 = vmul.f32 %v5018, %v5082
      %v5094 = vmul.f32 %v5019, %v5082
      %v5095 = vmul.f32 %v5020, %v5082
      %v5096 = vmul.f32 %v5021, %v5082
      %v5097 = vmul.f32 %v5022, %v5082
      %v5098 = vmul.f32 %v5023, %v5082
      %v5099 = vmul.f32 %v5024, %v5082
      %v5100 = vmul.f32 %v5025, %v5086
      %v5101 = vmul.f32 %v5026, %v5086
      %v5102 = vmul.f32 %v5027, %v5086
      %v5103 = vmul.f32 %v5028, %v5086
      %v5104 = vmul.f32 %v5029, %v5086
      %v5105 = vmul.f32 %v5030, %v5086
      %v5106 = vmul.f32 %v5031, %v5086
      %v5107 = vmul.f32 %v5032, %v5086
      %v5108 = vmul.f32 %v5033, %v5090
      %v5109 = vmul.f32 %v5034, %v5090
      %v5110 = vmul.f32 %v5035, %v5090
      %v5111 = vmul.f32 %v5036, %v5090
      %v5112 = vmul.f32 %v5037, %v5090
      %v5113 = vmul.f32 %v5038, %v5090
      %v5114 = vmul.f32 %v5039, %v5090
      %v5115 = vmul.f32 %v5040, %v5090
      %5116 = vset.pattern.permute.xlu0 2
      %5117 = vperm.xlu0 %5116, %v4858
      %v5118 = vpop.permute.xlu0 %5117
      %5120 = vset.pattern.permute.xlu0 2
      %5121 = vperm.xlu0 %5120, %v4859
      %v5122 = vpop.permute.xlu0 %5121
      %5124 = vset.pattern.permute.xlu0 2
      %5125 = vperm.xlu0 %5124, %v4860
      %v5126 = vpop.permute.xlu0 %5125
      %v5128 = vmul.f32 %v5017, %v5118
      %v5129 = vmul.f32 %v5018, %v5118
      %v5130 = vmul.f32 %v5019, %v5118
      %v5131 = vmul.f32 %v5020, %v5118
      %v5132 = vmul.f32 %v5021, %v5118
      %v5133 = vmul.f32 %v5022, %v5118
      %v5134 = vmul.f32 %v5023, %v5118
      %v5135 = vmul.f32 %v5024, %v5118
      %v5136 = vmul.f32 %v5025, %v5122
      %v5137 = vmul.f32 %v5026, %v5122
      %v5138 = vmul.f32 %v5027, %v5122
      %v5139 = vmul.f32 %v5028, %v5122
      %v5140 = vmul.f32 %v5029, %v5122
      %v5141 = vmul.f32 %v5030, %v5122
      %v5142 = vmul.f32 %v5031, %v5122
      %v5143 = vmul.f32 %v5032, %v5122
      %v5144 = vmul.f32 %v5033, %v5126
      %v5145 = vmul.f32 %v5034, %v5126
      %v5146 = vmul.f32 %v5035, %v5126
      %v5147 = vmul.f32 %v5036, %v5126
      %v5148 = vmul.f32 %v5037, %v5126
      %v5149 = vmul.f32 %v5038, %v5126
      %v5150 = vmul.f32 %v5039, %v5126
      %v5151 = vmul.f32 %v5040, %v5126
      %5152 = vset.pattern.permute.xlu0 3
      %5153 = vperm.xlu0 %5152, %v4858
      %v5154 = vpop.permute.xlu0 %5153
      %5156 = vset.pattern.permute.xlu0 3
      %5157 = vperm.xlu0 %5156, %v4859
      %v5158 = vpop.permute.xlu0 %5157
      %5160 = vset.pattern.permute.xlu0 3
      %5161 = vperm.xlu0 %5160, %v4860
      %v5162 = vpop.permute.xlu0 %5161
      %v5164 = vmul.f32 %v4713, %v5154
      %v5165 = vmul.f32 %v4715, %v5154
      %v5166 = vmul.f32 %v4756, %v5154
      %v5167 = vmul.f32 %v4758, %v5154
      %v5168 = vmul.f32 %v4799, %v5154
      %v5169 = vmul.f32 %v4801, %v5154
      %v5170 = vmul.f32 %v4842, %v5154
      %v5171 = vmul.f32 %v4844, %v5154
      %v5172 = vmul.f32 %v4717, %v5158
      %v5173 = vmul.f32 %v4719, %v5158
      %v5174 = vmul.f32 %v4760, %v5158
      %v5175 = vmul.f32 %v4762, %v5158
      %v5176 = vmul.f32 %v4803, %v5158
      %v5177 = vmul.f32 %v4805, %v5158
      %v5178 = vmul.f32 %v4846, %v5158
      %v5179 = vmul.f32 %v4848, %v5158
      %v5180 = vmul.f32 %v4850, %v5162
      %v5181 = vmul.f32 %v4851, %v5162
      %v5182 = vmul.f32 %v4852, %v5162
      %v5183 = vmul.f32 %v4853, %v5162
      %v5184 = vmul.f32 %v4854, %v5162
      %v5185 = vmul.f32 %v4855, %v5162
      %v5186 = vmul.f32 %v4856, %v5162
      %v5187 = vmul.f32 %v4857, %v5162
      %v5188 = vadd.f32 %v5056, %v5164
      %v5189 = vadd.f32 %v5057, %v5165
      %v5190 = vadd.f32 %v5058, %v5166
      %v5191 = vadd.f32 %v5059, %v5167
      %v5192 = vadd.f32 %v5060, %v5168
      %v5193 = vadd.f32 %v5061, %v5169
      %v5194 = vadd.f32 %v5062, %v5170
      %v5195 = vadd.f32 %v5063, %v5171
      %v5196 = vadd.f32 %v5064, %v5172
      %v5197 = vadd.f32 %v5065, %v5173
      %v5198 = vadd.f32 %v5066, %v5174
      %v5199 = vadd.f32 %v5067, %v5175
      %v5200 = vadd.f32 %v5068, %v5176
      %v5201 = vadd.f32 %v5069, %v5177
      %v5202 = vadd.f32 %v5070, %v5178
      %v5203 = vadd.f32 %v5071, %v5179
      %v5204 = vadd.f32 %v5072, %v5180
      %v5205 = vadd.f32 %v5073, %v5181
      %v5206 = vadd.f32 %v5074, %v5182
      %v5207 = vadd.f32 %v5075, %v5183
      %v5208 = vadd.f32 %v5076, %v5184
      %v5209 = vadd.f32 %v5077, %v5185
      %v5210 = vadd.f32 %v5078, %v5186
      %v5211 = vadd.f32 %v5079, %v5187
      %5212 = vset.pattern.permute.xlu0 4
      %5213 = vperm.xlu0 %5212, %v4858
      %v5214 = vpop.permute.xlu0 %5213
      %5216 = vset.pattern.permute.xlu0 4
      %5217 = vperm.xlu0 %5216, %v4859
      %v5218 = vpop.permute.xlu0 %5217
      %5220 = vset.pattern.permute.xlu0 4
      %5221 = vperm.xlu0 %5220, %v4860
      %v5222 = vpop.permute.xlu0 %5221
      %v5224 = vmul.f32 %v4713, %v5214
      %v5225 = vmul.f32 %v4715, %v5214
      %v5226 = vmul.f32 %v4756, %v5214
      %v5227 = vmul.f32 %v4758, %v5214
      %v5228 = vmul.f32 %v4799, %v5214
      %v5229 = vmul.f32 %v4801, %v5214
      %v5230 = vmul.f32 %v4842, %v5214
      %v5231 = vmul.f32 %v4844, %v5214
      %v5232 = vmul.f32 %v4717, %v5218
      %v5233 = vmul.f32 %v4719, %v5218
      %v5234 = vmul.f32 %v4760, %v5218
      %v5235 = vmul.f32 %v4762, %v5218
      %v5236 = vmul.f32 %v4803, %v5218
      %v5237 = vmul.f32 %v4805, %v5218
      %v5238 = vmul.f32 %v4846, %v5218
      %v5239 = vmul.f32 %v4848, %v5218
      %v5240 = vmul.f32 %v4850, %v5222
      %v5241 = vmul.f32 %v4851, %v5222
      %v5242 = vmul.f32 %v4852, %v5222
      %v5243 = vmul.f32 %v4853, %v5222
      %v5244 = vmul.f32 %v4854, %v5222
      %v5245 = vmul.f32 %v4855, %v5222
      %v5246 = vmul.f32 %v4856, %v5222
      %v5247 = vmul.f32 %v4857, %v5222
      %v5248 = vadd.f32 %v5092, %v5224
      %v5249 = vadd.f32 %v5093, %v5225
      %v5250 = vadd.f32 %v5094, %v5226
      %v5251 = vadd.f32 %v5095, %v5227
      %v5252 = vadd.f32 %v5096, %v5228
      %v5253 = vadd.f32 %v5097, %v5229
      %v5254 = vadd.f32 %v5098, %v5230
      %v5255 = vadd.f32 %v5099, %v5231
      %v5256 = vadd.f32 %v5100, %v5232
      %v5257 = vadd.f32 %v5101, %v5233
      %v5258 = vadd.f32 %v5102, %v5234
      %v5259 = vadd.f32 %v5103, %v5235
      %v5260 = vadd.f32 %v5104, %v5236
      %v5261 = vadd.f32 %v5105, %v5237
      %v5262 = vadd.f32 %v5106, %v5238
      %v5263 = vadd.f32 %v5107, %v5239
      %v5264 = vadd.f32 %v5108, %v5240
      %v5265 = vadd.f32 %v5109, %v5241
      %v5266 = vadd.f32 %v5110, %v5242
      %v5267 = vadd.f32 %v5111, %v5243
      %v5268 = vadd.f32 %v5112, %v5244
      %v5269 = vadd.f32 %v5113, %v5245
      %v5270 = vadd.f32 %v5114, %v5246
      %v5271 = vadd.f32 %v5115, %v5247
      %5272 = vset.pattern.permute.xlu0 5
      %5273 = vperm.xlu0 %5272, %v4858
      %v5274 = vpop.permute.xlu0 %5273
      %5276 = vset.pattern.permute.xlu0 5
      %5277 = vperm.xlu0 %5276, %v4859
      %v5278 = vpop.permute.xlu0 %5277
      %5280 = vset.pattern.permute.xlu0 5
      %5281 = vperm.xlu0 %5280, %v4860
      %v5282 = vpop.permute.xlu0 %5281
      %v5284 = vmul.f32 %v4713, %v5274
      %v5285 = vmul.f32 %v4715, %v5274
      %v5286 = vmul.f32 %v4756, %v5274
      %v5287 = vmul.f32 %v4758, %v5274
      %v5288 = vmul.f32 %v4799, %v5274
      %v5289 = vmul.f32 %v4801, %v5274
      %v5290 = vmul.f32 %v4842, %v5274
      %v5291 = vmul.f32 %v4844, %v5274
      %v5292 = vmul.f32 %v4717, %v5278
      %v5293 = vmul.f32 %v4719, %v5278
      %v5294 = vmul.f32 %v4760, %v5278
      %v5295 = vmul.f32 %v4762, %v5278
      %v5296 = vmul.f32 %v4803, %v5278
      %v5297 = vmul.f32 %v4805, %v5278
      %v5298 = vmul.f32 %v4846, %v5278
      %v5299 = vmul.f32 %v4848, %v5278
      %v5300 = vmul.f32 %v4850, %v5282
      %v5301 = vmul.f32 %v4851, %v5282
      %v5302 = vmul.f32 %v4852, %v5282
      %v5303 = vmul.f32 %v4853, %v5282
      %v5304 = vmul.f32 %v4854, %v5282
      %v5305 = vmul.f32 %v4855, %v5282
      %v5306 = vmul.f32 %v4856, %v5282
      %v5307 = vmul.f32 %v4857, %v5282
      %v5308 = vadd.f32 %v5128, %v5284
      %v5309 = vadd.f32 %v5129, %v5285
      %v5310 = vadd.f32 %v5130, %v5286
      %v5311 = vadd.f32 %v5131, %v5287
      %v5312 = vadd.f32 %v5132, %v5288
      %v5313 = vadd.f32 %v5133, %v5289
      %v5314 = vadd.f32 %v5134, %v5290
      %v5315 = vadd.f32 %v5135, %v5291
      %v5316 = vadd.f32 %v5136, %v5292
      %v5317 = vadd.f32 %v5137, %v5293
      %v5318 = vadd.f32 %v5138, %v5294
      %v5319 = vadd.f32 %v5139, %v5295
      %v5320 = vadd.f32 %v5140, %v5296
      %v5321 = vadd.f32 %v5141, %v5297
      %v5322 = vadd.f32 %v5142, %v5298
      %v5323 = vadd.f32 %v5143, %v5299
      %v5324 = vadd.f32 %v5144, %v5300
      %v5325 = vadd.f32 %v5145, %v5301
      %v5326 = vadd.f32 %v5146, %v5302
      %v5327 = vadd.f32 %v5147, %v5303
      %v5328 = vadd.f32 %v5148, %v5304
      %v5329 = vadd.f32 %v5149, %v5305
      %v5330 = vadd.f32 %v5150, %v5306
      %v5331 = vadd.f32 %v5151, %v5307
      %5332 = vrot.lane.b32.xlu0 %v4713, 96
      %v5333 = vpop.permute.xlu0 %5332
      %5334 = vrot.lane.b32.xlu0 %v4717, 96
      %v5335 = vpop.permute.xlu0 %5334
      %5336 = vrot.lane.b32.xlu0 %v4850, 96
      %v5337 = vpop.permute.xlu0 %5336
      %5338 = vrot.lane.b32.xlu0 %v4715, 96
      %v5339 = vpop.permute.xlu0 %5338
      %5340 = vrot.lane.b32.xlu0 %v4719, 96
      %v5341 = vpop.permute.xlu0 %5340
      %5342 = vrot.lane.b32.xlu0 %v4851, 96
      %v5343 = vpop.permute.xlu0 %5342
      %5344 = vrot.lane.b32.xlu0 %v4756, 96
      %v5345 = vpop.permute.xlu0 %5344
      %5346 = vrot.lane.b32.xlu0 %v4760, 96
      %v5347 = vpop.permute.xlu0 %5346
      %5348 = vrot.lane.b32.xlu0 %v4852, 96
      %v5349 = vpop.permute.xlu0 %5348
      %5350 = vrot.lane.b32.xlu0 %v4758, 96
      %v5351 = vpop.permute.xlu0 %5350
      %5352 = vrot.lane.b32.xlu0 %v4762, 96
      %v5353 = vpop.permute.xlu0 %5352
      %5354 = vrot.lane.b32.xlu0 %v4853, 96
      %v5355 = vpop.permute.xlu0 %5354
      %5356 = vrot.lane.b32.xlu0 %v4799, 96
      %v5357 = vpop.permute.xlu0 %5356
      %5358 = vrot.lane.b32.xlu0 %v4803, 96
      %v5359 = vpop.permute.xlu0 %5358
      %5360 = vrot.lane.b32.xlu0 %v4854, 96
      %v5361 = vpop.permute.xlu0 %5360
      %5362 = vrot.lane.b32.xlu0 %v4801, 96
      %v5363 = vpop.permute.xlu0 %5362
      %5364 = vrot.lane.b32.xlu0 %v4805, 96
      %v5365 = vpop.permute.xlu0 %5364
      %5366 = vrot.lane.b32.xlu0 %v4855, 96
      %v5367 = vpop.permute.xlu0 %5366
      %5368 = vrot.lane.b32.xlu0 %v4842, 96
      %v5369 = vpop.permute.xlu0 %5368
      %5370 = vrot.lane.b32.xlu0 %v4846, 96
      %v5371 = vpop.permute.xlu0 %5370
      %5372 = vrot.lane.b32.xlu0 %v4856, 96
      %v5373 = vpop.permute.xlu0 %5372
      %5374 = vrot.lane.b32.xlu0 %v4844, 96
      %v5375 = vpop.permute.xlu0 %5374
      %5376 = vrot.lane.b32.xlu0 %v4848, 96
      %v5377 = vpop.permute.xlu0 %5376
      %5378 = vrot.lane.b32.xlu0 %v4857, 96
      %v5379 = vpop.permute.xlu0 %5378
      %vm5380 = vcmp.lt.s32.totalorder %v3193, 96
      %v5381 = vsel %vm5380, %v5369, %v5375
      %v5382 = vsel %vm5380, %v5371, %v5377
      %v5383 = vsel %vm5380, %v5373, %v5379
      %v5384 = vsel %vm5380, %v5363, %v5369
      %v5385 = vsel %vm5380, %v5365, %v5371
      %v5386 = vsel %vm5380, %v5367, %v5373
      %v5387 = vsel %vm5380, %v5357, %v5363
      %v5388 = vsel %vm5380, %v5359, %v5365
      %v5389 = vsel %vm5380, %v5361, %v5367
      %v5390 = vsel %vm5380, %v5351, %v5357
      %v5391 = vsel %vm5380, %v5353, %v5359
      %v5392 = vsel %vm5380, %v5355, %v5361
      %v5393 = vsel %vm5380, %v5345, %v5351
      %v5394 = vsel %vm5380, %v5347, %v5353
      %v5395 = vsel %vm5380, %v5349, %v5355
      %v5396 = vsel %vm5380, %v5339, %v5345
      %v5397 = vsel %vm5380, %v5341, %v5347
      %v5398 = vsel %vm5380, %v5343, %v5349
      %v5399 = vsel %vm5380, %v5333, %v5339
      %v5400 = vsel %vm5380, %v5335, %v5341
      %v5401 = vsel %vm5380, %v5337, %v5343
      %v5402 = vsel %vm5380, %v5375, %v5333
      %v5403 = vsel %vm5380, %v5377, %v5335
      %v5404 = vsel %vm5380, %v5379, %v5337
      %v5405 = vlaneseq
      %v5406 = vshrl.u32 %v5405, 7
      %v5407 = vsub.s32 1, %v5406
      %v5408 = vrot.slane %v4864, %v5407
      %v5409 = vlaneseq
      %v5410 = vshrl.u32 %v5409, 7
      %v5411 = vsub.s32 5, %v5410
      %v5412 = vrot.slane %v4864, %v5411
      %v5413 = vlaneseq
      %v5414 = vshrl.u32 %v5413, 7
      %v5415 = vsub.s32 1, %v5414
      %v5416 = vrot.slane %v4865, %v5415
      %v5417 = vlaneseq
      %v5418 = vshrl.u32 %v5417, 7
      %v5419 = vsub.s32 5, %v5418
      %v5420 = vrot.slane %v4865, %v5419
      %v5421 = vlaneseq
      %v5422 = vshrl.u32 %v5421, 7
      %v5423 = vsub.s32 1, %v5422
      %v5424 = vrot.slane %v4866, %v5423
      %v5425 = vlaneseq
      %v5426 = vshrl.u32 %v5425, 7
      %v5427 = vsub.s32 5, %v5426
      %v5428 = vrot.slane %v4866, %v5427
      %v5429 = vlaneseq
      %v5430 = vshrl.u32 %v5429, 7
      %v5431 = vsub.s32 1, %v5430
      %v5432 = vrot.slane %v4867, %v5431
      %v5433 = vlaneseq
      %v5434 = vshrl.u32 %v5433, 7
      %v5435 = vsub.s32 5, %v5434
      %v5436 = vrot.slane %v4867, %v5435
      %v5445 = vlaneseq
      %v5446 = vshrl.u32 %v5445, 7
      %v5447 = vsub.s32 1, %v5446
      %v5448 = vrot.slane %v5408, %v5447
      %v5449 = vlaneseq
      %v5450 = vshrl.u32 %v5449, 7
      %v5451 = vsub.s32 1, %v5450
      %v5452 = vrot.slane %v5412, %v5451
      %v5453 = vlaneseq
      %v5454 = vshrl.u32 %v5453, 7
      %v5455 = vsub.s32 1, %v5454
      %v5456 = vrot.slane %v5416, %v5455
      %v5457 = vlaneseq
      %v5458 = vshrl.u32 %v5457, 7
      %v5459 = vsub.s32 1, %v5458
      %v5460 = vrot.slane %v5420, %v5459
      %v5461 = vlaneseq
      %v5462 = vshrl.u32 %v5461, 7
      %v5463 = vsub.s32 1, %v5462
      %v5464 = vrot.slane %v5424, %v5463
      %v5465 = vlaneseq
      %v5466 = vshrl.u32 %v5465, 7
      %v5467 = vsub.s32 1, %v5466
      %v5468 = vrot.slane %v5428, %v5467
      %v5469 = vlaneseq
      %v5470 = vshrl.u32 %v5469, 7
      %v5471 = vsub.s32 1, %v5470
      %v5472 = vrot.slane %v5432, %v5471
      %v5473 = vlaneseq
      %v5474 = vshrl.u32 %v5473, 7
      %v5475 = vsub.s32 1, %v5474
      %v5476 = vrot.slane %v5436, %v5475
      %v5477 = vmul.f32 %v5399, %v5448
      %v5478 = vmul.f32 %v5396, %v5452
      %v5479 = vmul.f32 %v5393, %v5456
      %v5480 = vmul.f32 %v5390, %v5460
      %v5481 = vmul.f32 %v5387, %v5464
      %v5482 = vmul.f32 %v5384, %v5468
      %v5483 = vmul.f32 %v5381, %v5472
      %v5484 = vmul.f32 %v5402, %v5476
      %v5485 = vmul.f32 %v5400, %v5448
      %v5486 = vmul.f32 %v5397, %v5452
      %v5487 = vmul.f32 %v5394, %v5456
      %v5488 = vmul.f32 %v5391, %v5460
      %v5489 = vmul.f32 %v5388, %v5464
      %v5490 = vmul.f32 %v5385, %v5468
      %v5491 = vmul.f32 %v5382, %v5472
      %v5492 = vmul.f32 %v5403, %v5476
      %v5493 = vmul.f32 %v5401, %v5448
      %v5494 = vmul.f32 %v5398, %v5452
      %v5495 = vmul.f32 %v5395, %v5456
      %v5496 = vmul.f32 %v5392, %v5460
      %v5497 = vmul.f32 %v5389, %v5464
      %v5498 = vmul.f32 %v5386, %v5468
      %v5499 = vmul.f32 %v5383, %v5472
      %v5500 = vmul.f32 %v5404, %v5476
      %5501 = vset.pattern.permute.xlu0 6
      %5502 = vperm.xlu0 %5501, %v4858
      %v5503 = vpop.permute.xlu0 %5502
      %5505 = vset.pattern.permute.xlu0 6
      %5506 = vperm.xlu0 %5505, %v4859
      %v5507 = vpop.permute.xlu0 %5506
      %5509 = vset.pattern.permute.xlu0 6
      %5510 = vperm.xlu0 %5509, %v4860
      %v5511 = vpop.permute.xlu0 %5510
      %v5513 = vmul.f32 %v5477, %v5503
      %v5514 = vmul.f32 %v5478, %v5503
      %v5515 = vmul.f32 %v5479, %v5503
      %v5516 = vmul.f32 %v5480, %v5503
      %v5517 = vmul.f32 %v5481, %v5503
      %v5518 = vmul.f32 %v5482, %v5503
      %v5519 = vmul.f32 %v5483, %v5503
      %v5520 = vmul.f32 %v5484, %v5503
      %v5521 = vmul.f32 %v5485, %v5507
      %v5522 = vmul.f32 %v5486, %v5507
      %v5523 = vmul.f32 %v5487, %v5507
      %v5524 = vmul.f32 %v5488, %v5507
      %v5525 = vmul.f32 %v5489, %v5507
      %v5526 = vmul.f32 %v5490, %v5507
      %v5527 = vmul.f32 %v5491, %v5507
      %v5528 = vmul.f32 %v5492, %v5507
      %v5529 = vmul.f32 %v5493, %v5511
      %v5530 = vmul.f32 %v5494, %v5511
      %v5531 = vmul.f32 %v5495, %v5511
      %v5532 = vmul.f32 %v5496, %v5511
      %v5533 = vmul.f32 %v5497, %v5511
      %v5534 = vmul.f32 %v5498, %v5511
      %v5535 = vmul.f32 %v5499, %v5511
      %v5536 = vmul.f32 %v5500, %v5511
      %v5537 = vadd.f32 %v5188, %v5513
      %v5538 = vadd.f32 %v5189, %v5514
      %v5539 = vadd.f32 %v5190, %v5515
      %v5540 = vadd.f32 %v5191, %v5516
      %v5541 = vadd.f32 %v5192, %v5517
      %v5542 = vadd.f32 %v5193, %v5518
      %v5543 = vadd.f32 %v5194, %v5519
      %v5544 = vadd.f32 %v5195, %v5520
      %v5545 = vadd.f32 %v5196, %v5521
      %v5546 = vadd.f32 %v5197, %v5522
      %v5547 = vadd.f32 %v5198, %v5523
      %v5548 = vadd.f32 %v5199, %v5524
      %v5549 = vadd.f32 %v5200, %v5525
      %v5550 = vadd.f32 %v5201, %v5526
      %v5551 = vadd.f32 %v5202, %v5527
      %v5552 = vadd.f32 %v5203, %v5528
      %v5553 = vadd.f32 %v5204, %v5529
      %v5554 = vadd.f32 %v5205, %v5530
      %v5555 = vadd.f32 %v5206, %v5531
      %v5556 = vadd.f32 %v5207, %v5532
      %v5557 = vadd.f32 %v5208, %v5533
      %v5558 = vadd.f32 %v5209, %v5534
      %v5559 = vadd.f32 %v5210, %v5535
      %v5560 = vadd.f32 %v5211, %v5536
      %5561 = vset.pattern.permute.xlu0 7
      %5562 = vperm.xlu0 %5561, %v4858
      %v5563 = vpop.permute.xlu0 %5562
      %5565 = vset.pattern.permute.xlu0 7
      %5566 = vperm.xlu0 %5565, %v4859
      %v5567 = vpop.permute.xlu0 %5566
      %5569 = vset.pattern.permute.xlu0 7
      %5570 = vperm.xlu0 %5569, %v4860
      %v5571 = vpop.permute.xlu0 %5570
      %v5573 = vmul.f32 %v5477, %v5563
      %v5574 = vmul.f32 %v5478, %v5563
      %v5575 = vmul.f32 %v5479, %v5563
      %v5576 = vmul.f32 %v5480, %v5563
      %v5577 = vmul.f32 %v5481, %v5563
      %v5578 = vmul.f32 %v5482, %v5563
      %v5579 = vmul.f32 %v5483, %v5563
      %v5580 = vmul.f32 %v5484, %v5563
      %v5581 = vmul.f32 %v5485, %v5567
      %v5582 = vmul.f32 %v5486, %v5567
      %v5583 = vmul.f32 %v5487, %v5567
      %v5584 = vmul.f32 %v5488, %v5567
      %v5585 = vmul.f32 %v5489, %v5567
      %v5586 = vmul.f32 %v5490, %v5567
      %v5587 = vmul.f32 %v5491, %v5567
      %v5588 = vmul.f32 %v5492, %v5567
      %v5589 = vmul.f32 %v5493, %v5571
      %v5590 = vmul.f32 %v5494, %v5571
      %v5591 = vmul.f32 %v5495, %v5571
      %v5592 = vmul.f32 %v5496, %v5571
      %v5593 = vmul.f32 %v5497, %v5571
      %v5594 = vmul.f32 %v5498, %v5571
      %v5595 = vmul.f32 %v5499, %v5571
      %v5596 = vmul.f32 %v5500, %v5571
      %v5597 = vadd.f32 %v5248, %v5573
      %v5598 = vadd.f32 %v5249, %v5574
      %v5599 = vadd.f32 %v5250, %v5575
      %v5600 = vadd.f32 %v5251, %v5576
      %v5601 = vadd.f32 %v5252, %v5577
      %v5602 = vadd.f32 %v5253, %v5578
      %v5603 = vadd.f32 %v5254, %v5579
      %v5604 = vadd.f32 %v5255, %v5580
      %v5605 = vadd.f32 %v5256, %v5581
      %v5606 = vadd.f32 %v5257, %v5582
      %v5607 = vadd.f32 %v5258, %v5583
      %v5608 = vadd.f32 %v5259, %v5584
      %v5609 = vadd.f32 %v5260, %v5585
      %v5610 = vadd.f32 %v5261, %v5586
      %v5611 = vadd.f32 %v5262, %v5587
      %v5612 = vadd.f32 %v5263, %v5588
      %v5613 = vadd.f32 %v5264, %v5589
      %v5614 = vadd.f32 %v5265, %v5590
      %v5615 = vadd.f32 %v5266, %v5591
      %v5616 = vadd.f32 %v5267, %v5592
      %v5617 = vadd.f32 %v5268, %v5593
      %v5618 = vadd.f32 %v5269, %v5594
      %v5619 = vadd.f32 %v5270, %v5595
      %v5620 = vadd.f32 %v5271, %v5596
      %5621 = vset.pattern.permute.xlu0 8
      %5622 = vperm.xlu0 %5621, %v4858
      %v5623 = vpop.permute.xlu0 %5622
      %5625 = vset.pattern.permute.xlu0 8
      %5626 = vperm.xlu0 %5625, %v4859
      %v5627 = vpop.permute.xlu0 %5626
      %5629 = vset.pattern.permute.xlu0 8
      %5630 = vperm.xlu0 %5629, %v4860
      %v5631 = vpop.permute.xlu0 %5630
      %v5633 = vmul.f32 %v5477, %v5623
      %v5634 = vmul.f32 %v5478, %v5623
      %v5635 = vmul.f32 %v5479, %v5623
      %v5636 = vmul.f32 %v5480, %v5623
      %v5637 = vmul.f32 %v5481, %v5623
      %v5638 = vmul.f32 %v5482, %v5623
      %v5639 = vmul.f32 %v5483, %v5623
      %v5640 = vmul.f32 %v5484, %v5623
      %v5641 = vmul.f32 %v5485, %v5627
      %v5642 = vmul.f32 %v5486, %v5627
      %v5643 = vmul.f32 %v5487, %v5627
      %v5644 = vmul.f32 %v5488, %v5627
      %v5645 = vmul.f32 %v5489, %v5627
      %v5646 = vmul.f32 %v5490, %v5627
      %v5647 = vmul.f32 %v5491, %v5627
      %v5648 = vmul.f32 %v5492, %v5627
      %v5649 = vmul.f32 %v5493, %v5631
      %v5650 = vmul.f32 %v5494, %v5631
      %v5651 = vmul.f32 %v5495, %v5631
      %v5652 = vmul.f32 %v5496, %v5631
      %v5653 = vmul.f32 %v5497, %v5631
      %v5654 = vmul.f32 %v5498, %v5631
      %v5655 = vmul.f32 %v5499, %v5631
      %v5656 = vmul.f32 %v5500, %v5631
      %v5657 = vadd.f32 %v5308, %v5633
      %v5658 = vadd.f32 %v5309, %v5634
      %v5659 = vadd.f32 %v5310, %v5635
      %v5660 = vadd.f32 %v5311, %v5636
      %v5661 = vadd.f32 %v5312, %v5637
      %v5662 = vadd.f32 %v5313, %v5638
      %v5663 = vadd.f32 %v5314, %v5639
      %v5664 = vadd.f32 %v5315, %v5640
      %v5665 = vadd.f32 %v5316, %v5641
      %v5666 = vadd.f32 %v5317, %v5642
      %v5667 = vadd.f32 %v5318, %v5643
      %v5668 = vadd.f32 %v5319, %v5644
      %v5669 = vadd.f32 %v5320, %v5645
      %v5670 = vadd.f32 %v5321, %v5646
      %v5671 = vadd.f32 %v5322, %v5647
      %v5672 = vadd.f32 %v5323, %v5648
      %v5673 = vadd.f32 %v5324, %v5649
      %v5674 = vadd.f32 %v5325, %v5650
      %v5675 = vadd.f32 %v5326, %v5651
      %v5676 = vadd.f32 %v5327, %v5652
      %v5677 = vadd.f32 %v5328, %v5653
      %v5678 = vadd.f32 %v5329, %v5654
      %v5679 = vadd.f32 %v5330, %v5655
      %v5680 = vadd.f32 %v5331, %v5656
      %5681 = vrot.lane.b32.xlu0 %v5537, 1
      %v5682 = vpop.permute.xlu0 %5681
      %5683 = vrot.lane.b32.xlu0 %v5545, 1
      %v5684 = vpop.permute.xlu0 %5683
      %5685 = vrot.lane.b32.xlu0 %v5553, 1
      %v5686 = vpop.permute.xlu0 %5685
      %5687 = vrot.lane.b32.xlu0 %v5538, 1
      %v5688 = vpop.permute.xlu0 %5687
      %5689 = vrot.lane.b32.xlu0 %v5546, 1
      %v5690 = vpop.permute.xlu0 %5689
      %5691 = vrot.lane.b32.xlu0 %v5554, 1
      %v5692 = vpop.permute.xlu0 %5691
      %5693 = vrot.lane.b32.xlu0 %v5539, 1
      %v5694 = vpop.permute.xlu0 %5693
      %5695 = vrot.lane.b32.xlu0 %v5547, 1
      %v5696 = vpop.permute.xlu0 %5695
      %5697 = vrot.lane.b32.xlu0 %v5555, 1
      %v5698 = vpop.permute.xlu0 %5697
      %5699 = vrot.lane.b32.xlu0 %v5540, 1
      %v5700 = vpop.permute.xlu0 %5699
      %5701 = vrot.lane.b32.xlu0 %v5548, 1
      %v5702 = vpop.permute.xlu0 %5701
      %5703 = vrot.lane.b32.xlu0 %v5556, 1
      %v5704 = vpop.permute.xlu0 %5703
      %5705 = vrot.lane.b32.xlu0 %v5541, 1
      %v5706 = vpop.permute.xlu0 %5705
      %5707 = vrot.lane.b32.xlu0 %v5549, 1
      %v5708 = vpop.permute.xlu0 %5707
      %5709 = vrot.lane.b32.xlu0 %v5557, 1
      %v5710 = vpop.permute.xlu0 %5709
      %5711 = vrot.lane.b32.xlu0 %v5542, 1
      %v5712 = vpop.permute.xlu0 %5711
      %5713 = vrot.lane.b32.xlu0 %v5550, 1
      %v5714 = vpop.permute.xlu0 %5713
      %5715 = vrot.lane.b32.xlu0 %v5558, 1
      %v5716 = vpop.permute.xlu0 %5715
      %5717 = vrot.lane.b32.xlu0 %v5543, 1
      %v5718 = vpop.permute.xlu0 %5717
      %5719 = vrot.lane.b32.xlu0 %v5551, 1
      %v5720 = vpop.permute.xlu0 %5719
      %5721 = vrot.lane.b32.xlu0 %v5559, 1
      %v5722 = vpop.permute.xlu0 %5721
      %5723 = vrot.lane.b32.xlu0 %v5544, 1
      %v5724 = vpop.permute.xlu0 %5723
      %5725 = vrot.lane.b32.xlu0 %v5552, 1
      %v5726 = vpop.permute.xlu0 %5725
      %5727 = vrot.lane.b32.xlu0 %v5560, 1
      %v5728 = vpop.permute.xlu0 %5727
      %v5729 = vsel %vm3648, %v5718, %v5724
      %v5730 = vsel %vm3648, %v5720, %v5726
      %v5731 = vsel %vm3648, %v5722, %v5728
      %v5732 = vsel %vm3648, %v5712, %v5718
      %v5733 = vsel %vm3648, %v5714, %v5720
      %v5734 = vsel %vm3648, %v5716, %v5722
      %v5735 = vsel %vm3648, %v5706, %v5712
      %v5736 = vsel %vm3648, %v5708, %v5714
      %v5737 = vsel %vm3648, %v5710, %v5716
      %v5738 = vsel %vm3648, %v5700, %v5706
      %v5739 = vsel %vm3648, %v5702, %v5708
      %v5740 = vsel %vm3648, %v5704, %v5710
      %v5741 = vsel %vm3648, %v5694, %v5700
      %v5742 = vsel %vm3648, %v5696, %v5702
      %v5743 = vsel %vm3648, %v5698, %v5704
      %v5744 = vsel %vm3648, %v5688, %v5694
      %v5745 = vsel %vm3648, %v5690, %v5696
      %v5746 = vsel %vm3648, %v5692, %v5698
      %v5747 = vsel %vm3648, %v5682, %v5688
      %v5748 = vsel %vm3648, %v5684, %v5690
      %v5749 = vsel %vm3648, %v5686, %v5692
      %v5750 = vsel %vm3648, %v5724, %v5682
      %v5751 = vsel %vm3648, %v5726, %v5684
      %v5752 = vsel %vm3648, %v5728, %v5686
      %v5753 = vlaneseq
      %v5754 = vshrl.u32 %v5753, 7
      %v5755 = vsub.s32 2, %v5754
      %v5756 = vrot.slane %v4864, %v5755
      %v5757 = vlaneseq
      %v5758 = vshrl.u32 %v5757, 7
      %v5759 = vsub.s32 6, %v5758
      %v5760 = vrot.slane %v4864, %v5759
      %v5761 = vlaneseq
      %v5762 = vshrl.u32 %v5761, 7
      %v5763 = vsub.s32 2, %v5762
      %v5764 = vrot.slane %v4865, %v5763
      %v5765 = vlaneseq
      %v5766 = vshrl.u32 %v5765, 7
      %v5767 = vsub.s32 6, %v5766
      %v5768 = vrot.slane %v4865, %v5767
      %v5769 = vlaneseq
      %v5770 = vshrl.u32 %v5769, 7
      %v5771 = vsub.s32 2, %v5770
      %v5772 = vrot.slane %v4866, %v5771
      %v5773 = vlaneseq
      %v5774 = vshrl.u32 %v5773, 7
      %v5775 = vsub.s32 6, %v5774
      %v5776 = vrot.slane %v4866, %v5775
      %v5777 = vlaneseq
      %v5778 = vshrl.u32 %v5777, 7
      %v5779 = vsub.s32 2, %v5778
      %v5780 = vrot.slane %v4867, %v5779
      %v5781 = vlaneseq
      %v5782 = vshrl.u32 %v5781, 7
      %v5783 = vsub.s32 6, %v5782
      %v5784 = vrot.slane %v4867, %v5783
      %v5793 = vlaneseq
      %v5794 = vshrl.u32 %v5793, 7
      %v5795 = vsub.s32 2, %v5794
      %v5796 = vrot.slane %v5756, %v5795
      %v5797 = vlaneseq
      %v5798 = vshrl.u32 %v5797, 7
      %v5799 = vsub.s32 2, %v5798
      %v5800 = vrot.slane %v5760, %v5799
      %v5801 = vlaneseq
      %v5802 = vshrl.u32 %v5801, 7
      %v5803 = vsub.s32 2, %v5802
      %v5804 = vrot.slane %v5764, %v5803
      %v5805 = vlaneseq
      %v5806 = vshrl.u32 %v5805, 7
      %v5807 = vsub.s32 2, %v5806
      %v5808 = vrot.slane %v5768, %v5807
      %v5809 = vlaneseq
      %v5810 = vshrl.u32 %v5809, 7
      %v5811 = vsub.s32 2, %v5810
      %v5812 = vrot.slane %v5772, %v5811
      %v5813 = vlaneseq
      %v5814 = vshrl.u32 %v5813, 7
      %v5815 = vsub.s32 2, %v5814
      %v5816 = vrot.slane %v5776, %v5815
      %v5817 = vlaneseq
      %v5818 = vshrl.u32 %v5817, 7
      %v5819 = vsub.s32 2, %v5818
      %v5820 = vrot.slane %v5780, %v5819
      %v5821 = vlaneseq
      %v5822 = vshrl.u32 %v5821, 7
      %v5823 = vsub.s32 2, %v5822
      %v5824 = vrot.slane %v5784, %v5823
      %v5825 = vmul.f32 %v5750, %v5796
      %v5826 = vmul.f32 %v5747, %v5800
      %v5827 = vmul.f32 %v5744, %v5804
      %v5828 = vmul.f32 %v5741, %v5808
      %v5829 = vmul.f32 %v5738, %v5812
      %v5830 = vmul.f32 %v5735, %v5816
      %v5831 = vmul.f32 %v5732, %v5820
      %v5832 = vmul.f32 %v5729, %v5824
      %v5833 = vmul.f32 %v5751, %v5796
      %v5834 = vmul.f32 %v5748, %v5800
      %v5835 = vmul.f32 %v5745, %v5804
      %v5836 = vmul.f32 %v5742, %v5808
      %v5837 = vmul.f32 %v5739, %v5812
      %v5838 = vmul.f32 %v5736, %v5816
      %v5839 = vmul.f32 %v5733, %v5820
      %v5840 = vmul.f32 %v5730, %v5824
      %v5841 = vmul.f32 %v5752, %v5796
      %v5842 = vmul.f32 %v5749, %v5800
      %v5843 = vmul.f32 %v5746, %v5804
      %v5844 = vmul.f32 %v5743, %v5808
      %v5845 = vmul.f32 %v5740, %v5812
      %v5846 = vmul.f32 %v5737, %v5816
      %v5847 = vmul.f32 %v5734, %v5820
      %v5848 = vmul.f32 %v5731, %v5824
      %v5849 = vadd.f32 %v5597, %v5825
      %v5850 = vadd.f32 %v5598, %v5826
      %v5851 = vadd.f32 %v5599, %v5827
      %v5852 = vadd.f32 %v5600, %v5828
      %v5853 = vadd.f32 %v5601, %v5829
      %v5854 = vadd.f32 %v5602, %v5830
      %v5855 = vadd.f32 %v5603, %v5831
      %v5856 = vadd.f32 %v5604, %v5832
      %v5857 = vadd.f32 %v5605, %v5833
      %v5858 = vadd.f32 %v5606, %v5834
      %v5859 = vadd.f32 %v5607, %v5835
      %v5860 = vadd.f32 %v5608, %v5836
      %v5861 = vadd.f32 %v5609, %v5837
      %v5862 = vadd.f32 %v5610, %v5838
      %v5863 = vadd.f32 %v5611, %v5839
      %v5864 = vadd.f32 %v5612, %v5840
      %v5865 = vadd.f32 %v5613, %v5841
      %v5866 = vadd.f32 %v5614, %v5842
      %v5867 = vadd.f32 %v5615, %v5843
      %v5868 = vadd.f32 %v5616, %v5844
      %v5869 = vadd.f32 %v5617, %v5845
      %v5870 = vadd.f32 %v5618, %v5846
      %v5871 = vadd.f32 %v5619, %v5847
      %v5872 = vadd.f32 %v5620, %v5848
      %5873 = vrot.lane.b32.xlu0 %v5657, 127
      %v5874 = vpop.permute.xlu0 %5873
      %5875 = vrot.lane.b32.xlu0 %v5665, 127
      %v5876 = vpop.permute.xlu0 %5875
      %5877 = vrot.lane.b32.xlu0 %v5673, 127
      %v5878 = vpop.permute.xlu0 %5877
      %5879 = vrot.lane.b32.xlu0 %v5658, 127
      %v5880 = vpop.permute.xlu0 %5879
      %5881 = vrot.lane.b32.xlu0 %v5666, 127
      %v5882 = vpop.permute.xlu0 %5881
      %5883 = vrot.lane.b32.xlu0 %v5674, 127
      %v5884 = vpop.permute.xlu0 %5883
      %5885 = vrot.lane.b32.xlu0 %v5659, 127
      %v5886 = vpop.permute.xlu0 %5885
      %5887 = vrot.lane.b32.xlu0 %v5667, 127
      %v5888 = vpop.permute.xlu0 %5887
      %5889 = vrot.lane.b32.xlu0 %v5675, 127
      %v5890 = vpop.permute.xlu0 %5889
      %5891 = vrot.lane.b32.xlu0 %v5660, 127
      %v5892 = vpop.permute.xlu0 %5891
      %5893 = vrot.lane.b32.xlu0 %v5668, 127
      %v5894 = vpop.permute.xlu0 %5893
      %5895 = vrot.lane.b32.xlu0 %v5676, 127
      %v5896 = vpop.permute.xlu0 %5895
      %5897 = vrot.lane.b32.xlu0 %v5661, 127
      %v5898 = vpop.permute.xlu0 %5897
      %5899 = vrot.lane.b32.xlu0 %v5669, 127
      %v5900 = vpop.permute.xlu0 %5899
      %5901 = vrot.lane.b32.xlu0 %v5677, 127
      %v5902 = vpop.permute.xlu0 %5901
      %5903 = vrot.lane.b32.xlu0 %v5662, 127
      %v5904 = vpop.permute.xlu0 %5903
      %5905 = vrot.lane.b32.xlu0 %v5670, 127
      %v5906 = vpop.permute.xlu0 %5905
      %5907 = vrot.lane.b32.xlu0 %v5678, 127
      %v5908 = vpop.permute.xlu0 %5907
      %5909 = vrot.lane.b32.xlu0 %v5663, 127
      %v5910 = vpop.permute.xlu0 %5909
      %5911 = vrot.lane.b32.xlu0 %v5671, 127
      %v5912 = vpop.permute.xlu0 %5911
      %5913 = vrot.lane.b32.xlu0 %v5679, 127
      %v5914 = vpop.permute.xlu0 %5913
      %5915 = vrot.lane.b32.xlu0 %v5664, 127
      %v5916 = vpop.permute.xlu0 %5915
      %5917 = vrot.lane.b32.xlu0 %v5672, 127
      %v5918 = vpop.permute.xlu0 %5917
      %5919 = vrot.lane.b32.xlu0 %v5680, 127
      %v5920 = vpop.permute.xlu0 %5919
      %v5921 = vsel %vm3717, %v5910, %v5916
      %v5922 = vsel %vm3717, %v5912, %v5918
      %v5923 = vsel %vm3717, %v5914, %v5920
      %v5924 = vsel %vm3717, %v5904, %v5910
      %v5925 = vsel %vm3717, %v5906, %v5912
      %v5926 = vsel %vm3717, %v5908, %v5914
      %v5927 = vsel %vm3717, %v5898, %v5904
      %v5928 = vsel %vm3717, %v5900, %v5906
      %v5929 = vsel %vm3717, %v5902, %v5908
      %v5930 = vsel %vm3717, %v5892, %v5898
      %v5931 = vsel %vm3717, %v5894, %v5900
      %v5932 = vsel %vm3717, %v5896, %v5902
      %v5933 = vsel %vm3717, %v5886, %v5892
      %v5934 = vsel %vm3717, %v5888, %v5894
      %v5935 = vsel %vm3717, %v5890, %v5896
      %v5936 = vsel %vm3717, %v5880, %v5886
      %v5937 = vsel %vm3717, %v5882, %v5888
      %v5938 = vsel %vm3717, %v5884, %v5890
      %v5939 = vsel %vm3717, %v5874, %v5880
      %v5940 = vsel %vm3717, %v5876, %v5882
      %v5941 = vsel %vm3717, %v5878, %v5884
      %v5942 = vsel %vm3717, %v5916, %v5874
      %v5943 = vsel %vm3717, %v5918, %v5876
      %v5944 = vsel %vm3717, %v5920, %v5878
      %v5945 = vlaneseq
      %v5946 = vshrl.u32 %v5945, 7
      %v5947 = vsub.s32 3, %v5946
      %v5948 = vrot.slane %v4864, %v5947
      %v5949 = vlaneseq
      %v5950 = vshrl.u32 %v5949, 7
      %v5951 = vsub.s32 7, %v5950
      %v5952 = vrot.slane %v4864, %v5951
      %v5953 = vlaneseq
      %v5954 = vshrl.u32 %v5953, 7
      %v5955 = vsub.s32 3, %v5954
      %v5956 = vrot.slane %v4865, %v5955
      %v5957 = vlaneseq
      %v5958 = vshrl.u32 %v5957, 7
      %v5959 = vsub.s32 7, %v5958
      %v5960 = vrot.slane %v4865, %v5959
      %v5961 = vlaneseq
      %v5962 = vshrl.u32 %v5961, 7
      %v5963 = vsub.s32 3, %v5962
      %v5964 = vrot.slane %v4866, %v5963
      %v5965 = vlaneseq
      %v5966 = vshrl.u32 %v5965, 7
      %v5967 = vsub.s32 7, %v5966
      %v5968 = vrot.slane %v4866, %v5967
      %v5969 = vlaneseq
      %v5970 = vshrl.u32 %v5969, 7
      %v5971 = vsub.s32 3, %v5970
      %v5972 = vrot.slane %v4867, %v5971
      %v5973 = vlaneseq
      %v5974 = vshrl.u32 %v5973, 7
      %v5975 = vsub.s32 7, %v5974
      %v5976 = vrot.slane %v4867, %v5975
      %v5985 = vlaneseq
      %v5986 = vshrl.u32 %v5985, 7
      %v5987 = vsub.s32 3, %v5986
      %v5988 = vrot.slane %v5948, %v5987
      %v5989 = vlaneseq
      %v5990 = vshrl.u32 %v5989, 7
      %v5991 = vsub.s32 3, %v5990
      %v5992 = vrot.slane %v5952, %v5991
      %v5993 = vlaneseq
      %v5994 = vshrl.u32 %v5993, 7
      %v5995 = vsub.s32 3, %v5994
      %v5996 = vrot.slane %v5956, %v5995
      %v5997 = vlaneseq
      %v5998 = vshrl.u32 %v5997, 7
      %v5999 = vsub.s32 3, %v5998
      %v6000 = vrot.slane %v5960, %v5999
      %v6001 = vlaneseq
      %v6002 = vshrl.u32 %v6001, 7
      %v6003 = vsub.s32 3, %v6002
      %v6004 = vrot.slane %v5964, %v6003
      %v6005 = vlaneseq
      %v6006 = vshrl.u32 %v6005, 7
      %v6007 = vsub.s32 3, %v6006
      %v6008 = vrot.slane %v5968, %v6007
      %v6009 = vlaneseq
      %v6010 = vshrl.u32 %v6009, 7
      %v6011 = vsub.s32 3, %v6010
      %v6012 = vrot.slane %v5972, %v6011
      %v6013 = vlaneseq
      %v6014 = vshrl.u32 %v6013, 7
      %v6015 = vsub.s32 3, %v6014
      %v6016 = vrot.slane %v5976, %v6015
      %v6017 = vmul.f32 %v5939, %v5988
      %v6018 = vmul.f32 %v5936, %v5992
      %v6019 = vmul.f32 %v5933, %v5996
      %v6020 = vmul.f32 %v5930, %v6000
      %v6021 = vmul.f32 %v5927, %v6004
      %v6022 = vmul.f32 %v5924, %v6008
      %v6023 = vmul.f32 %v5921, %v6012
      %v6024 = vmul.f32 %v5942, %v6016
      %v6025 = vmul.f32 %v5940, %v5988
      %v6026 = vmul.f32 %v5937, %v5992
      %v6027 = vmul.f32 %v5934, %v5996
      %v6028 = vmul.f32 %v5931, %v6000
      %v6029 = vmul.f32 %v5928, %v6004
      %v6030 = vmul.f32 %v5925, %v6008
      %v6031 = vmul.f32 %v5922, %v6012
      %v6032 = vmul.f32 %v5943, %v6016
      %v6033 = vmul.f32 %v5941, %v5988
      %v6034 = vmul.f32 %v5938, %v5992
      %v6035 = vmul.f32 %v5935, %v5996
      %v6036 = vmul.f32 %v5932, %v6000
      %v6037 = vmul.f32 %v5929, %v6004
      %v6038 = vmul.f32 %v5926, %v6008
      %v6039 = vmul.f32 %v5923, %v6012
      %v6040 = vmul.f32 %v5944, %v6016
      %v6041 = vadd.f32 %v5849, %v6017
      %v6042 = vadd.f32 %v5850, %v6018
      %v6043 = vadd.f32 %v5851, %v6019
      %v6044 = vadd.f32 %v5852, %v6020
      %v6045 = vadd.f32 %v5853, %v6021
      %v6046 = vadd.f32 %v5854, %v6022
      %v6047 = vadd.f32 %v5855, %v6023
      %v6048 = vadd.f32 %v5856, %v6024
      %v6049 = vadd.f32 %v5857, %v6025
      %v6050 = vadd.f32 %v5858, %v6026
      %v6051 = vadd.f32 %v5859, %v6027
      %v6052 = vadd.f32 %v5860, %v6028
      %v6053 = vadd.f32 %v5861, %v6029
      %v6054 = vadd.f32 %v5862, %v6030
      %v6055 = vadd.f32 %v5863, %v6031
      %v6056 = vadd.f32 %v5864, %v6032
      %v6057 = vadd.f32 %v5865, %v6033
      %v6058 = vadd.f32 %v5866, %v6034
      %v6059 = vadd.f32 %v5867, %v6035
      %v6060 = vadd.f32 %v5868, %v6036
      %v6061 = vadd.f32 %v5869, %v6037
      %v6062 = vadd.f32 %v5870, %v6038
      %v6063 = vadd.f32 %v5871, %v6039
      %v6064 = vadd.f32 %v5872, %v6040
      %6066 = vset.pattern.permute.xlu0 0
      %6067 = vperm.xlu0 %6066, %v4861
      %v6068 = vpop.permute.xlu0 %6067
      %6071 = vset.pattern.permute.xlu0 0
      %6072 = vperm.xlu0 %6071, %v4862
      %v6073 = vpop.permute.xlu0 %6072
      %6076 = vset.pattern.permute.xlu0 0
      %6077 = vperm.xlu0 %6076, %v4863
      %v6078 = vpop.permute.xlu0 %6077
      %v6080 = vadd.f32 %v6041, %v6068
      %v6081 = vadd.f32 %v6042, %v6068
      %v6082 = vadd.f32 %v6043, %v6068
      %v6083 = vadd.f32 %v6044, %v6068
      %v6084 = vadd.f32 %v6045, %v6068
      %v6085 = vadd.f32 %v6046, %v6068
      %v6086 = vadd.f32 %v6047, %v6068
      %v6087 = vadd.f32 %v6048, %v6068
      %v6088 = vadd.f32 %v6049, %v6073
      %v6089 = vadd.f32 %v6050, %v6073
      %v6090 = vadd.f32 %v6051, %v6073
      %v6091 = vadd.f32 %v6052, %v6073
      %v6092 = vadd.f32 %v6053, %v6073
      %v6093 = vadd.f32 %v6054, %v6073
      %v6094 = vadd.f32 %v6055, %v6073
      %v6095 = vadd.f32 %v6056, %v6073
      %v6096 = vadd.f32 %v6057, %v6078
      %v6097 = vadd.f32 %v6058, %v6078
      %v6098 = vadd.f32 %v6059, %v6078
      %v6099 = vadd.f32 %v6060, %v6078
      %v6100 = vadd.f32 %v6061, %v6078
      %v6101 = vadd.f32 %v6062, %v6078
      %v6102 = vadd.f32 %v6063, %v6078
      %v6103 = vadd.f32 %v6064, %v6078
      %v6104 = vmul.f32 %v6080, 0.01
      %v6105 = vmul.f32 %v6081, 0.01
      %v6106 = vmul.f32 %v6082, 0.01
      %v6107 = vmul.f32 %v6083, 0.01
      %v6108 = vmul.f32 %v6084, 0.01
      %v6109 = vmul.f32 %v6085, 0.01
      %v6110 = vmul.f32 %v6086, 0.01
      %v6111 = vmul.f32 %v6087, 0.01
      %v6112 = vmul.f32 %v6088, 0.01
      %v6113 = vmul.f32 %v6089, 0.01
      %v6114 = vmul.f32 %v6090, 0.01
      %v6115 = vmul.f32 %v6091, 0.01
      %v6116 = vmul.f32 %v6092, 0.01
      %v6117 = vmul.f32 %v6093, 0.01
      %v6118 = vmul.f32 %v6094, 0.01
      %v6119 = vmul.f32 %v6095, 0.01
      %v6120 = vmul.f32 %v6096, 0.01
      %v6121 = vmul.f32 %v6097, 0.01
      %v6122 = vmul.f32 %v6098, 0.01
      %v6123 = vmul.f32 %v6099, 0.01
      %v6124 = vmul.f32 %v6100, 0.01
      %v6125 = vmul.f32 %v6101, 0.01
      %v6126 = vmul.f32 %v6102, 0.01
      %v6127 = vmul.f32 %v6103, 0.01
      %v6128 = vmax.f32 %v6080, %v6104
      %v6129 = vmax.f32 %v6081, %v6105
      %v6130 = vmax.f32 %v6082, %v6106
      %v6131 = vmax.f32 %v6083, %v6107
      %v6132 = vmax.f32 %v6084, %v6108
      %v6133 = vmax.f32 %v6085, %v6109
      %v6134 = vmax.f32 %v6086, %v6110
      %v6135 = vmax.f32 %v6087, %v6111
      %v6136 = vmax.f32 %v6088, %v6112
      %v6137 = vmax.f32 %v6089, %v6113
      %v6138 = vmax.f32 %v6090, %v6114
      %v6139 = vmax.f32 %v6091, %v6115
      %v6140 = vmax.f32 %v6092, %v6116
      %v6141 = vmax.f32 %v6093, %v6117
      %v6142 = vmax.f32 %v6094, %v6118
      %v6143 = vmax.f32 %v6095, %v6119
      %v6144 = vmax.f32 %v6096, %v6120
      %v6145 = vmax.f32 %v6097, %v6121
      %v6146 = vmax.f32 %v6098, %v6122
      %v6147 = vmax.f32 %v6099, %v6123
      %v6148 = vmax.f32 %v6100, %v6124
      %v6149 = vmax.f32 %v6101, %v6125
      %v6150 = vmax.f32 %v6102, %v6126
      %v6151 = vmax.f32 %v6103, %v6127
      %v6152 = vld [vmem:[%s55] sm:$0xf]
      %v6153 = vpack.c.bf16 %v6136, %v6128
      %v6154 = vpack.c.bf16 %v6137, %v6129
      %v6155 = vpack.c.bf16 %v6138, %v6130
      %v6156 = vpack.c.bf16 %v6139, %v6131
      %v6157 = vpack.c.bf16 %v6140, %v6132
      %v6158 = vpack.c.bf16 %v6141, %v6133
      %v6159 = vpack.c.bf16 %v6142, %v6134
      %v6160 = vpack.c.bf16 %v6143, %v6135
      %v6161 = vpack.c.bf16 %v6144, %v6144
      %v6162 = vpack.c.bf16 %v6145, %v6145
      %v6163 = vpack.c.bf16 %v6146, %v6146
      %v6164 = vpack.c.bf16 %v6147, %v6147
      %v6165 = vpack.c.bf16 %v6148, %v6148
      %v6166 = vpack.c.bf16 %v6149, %v6149
      %v6167 = vpack.c.bf16 %v6150, %v6150
      %v6168 = vpack.c.bf16 %v6151, %v6151
      %v6169 = vld [vmem:[%s57] sm:$0xff]
      %6171 = vset.pattern.permute.xlu0 0
      %6172 = vperm.xlu0 %6171, %v6169
      %v6173 = vpop.permute.xlu0 %6172
      %vm6175 = vcmask 195584
      %v6177 = vsel %vm6175, %v6152, 0
      %v6180 = vsel %vm3850, %v6161, 0
      %v6183 = vsel %vm3850, %v6162, 0
      %v6186 = vsel %vm3850, %v6163, 0
      %v6189 = vsel %vm3850, %v6164, 0
      %v6192 = vsel %vm3850, %v6165, 0
      %v6195 = vsel %vm3850, %v6166, 0
      %v6198 = vsel %vm3850, %v6167, 0
      %v6201 = vsel %vm3850, %v6168, 0
      %6203 = vmatprep.subr.bf16.mxu0 %v6154
      %6204 = vmatpush1.bf16.msra.mxu0 %v6153
      %6205 = vmatprep.subr.bf16.mxu0 %v6183
      %6206 = vmatpush1.bf16.msra.mxu0 %v6180
      %6207 = vmatprep.subr.bf16.mxu0 0
      %6208 = vmatpush1.bf16.msra.mxu0 0
      %6209 = vmatprep.subr.bf16.mxu0 0
      %6210 = vmatpush1.bf16.msra.mxu0 0
      %6211 = vmatprep.subr.bf16.mxu0 0
      %6212 = vmatpush1.bf16.msra.mxu0 0
      %6213 = vmatprep.subr.bf16.mxu0 0
      %6214 = vmatpush1.bf16.msra.mxu0 0
      %6215 = vmatprep.subr.bf16.mxu0 0
      %6216 = vmatpush1.bf16.msra.mxu0 0
      %6217 = vmatprep.subr.bf16.mxu0 0
      %6218 = vmatpush1.bf16.msra.mxu0 0
      %6219 = vmatprep.subr.bf16.mxu0 0
      %6220 = vmatpush1.bf16.msra.mxu0 0
      %6221 = vmatprep.subr.bf16.mxu0 0
      %6222 = vmatpush1.bf16.msra.mxu0 0
      %6223 = vmatprep.subr.bf16.mxu0 0
      %6224 = vmatpush1.bf16.msra.mxu0 0
      %6225 = vmatprep.subr.bf16.mxu0 0
      %6226 = vmatpush1.bf16.msra.mxu0 0
      %6227 = vmatprep.subr.bf16.mxu0 0
      %6228 = vmatpush1.bf16.msra.mxu0 0
      %6229 = vmatprep.subr.bf16.mxu0 0
      %6230 = vmatpush1.bf16.msra.mxu0 0
      %6231 = vmatprep.subr.bf16.mxu0 0
      %6232 = vmatpush1.bf16.msra.mxu0 0
      %6233 = vmatprep.subr.bf16.mxu0 0
      %6234 = vmatpush1.bf16.msra.mxu0 0
      %6235 = vmatprep.mubr.bf16.mxu0 0
      %6236 = vmatmul.mubr.bf16.gmra.mrb[0].mxu0 %v6177
      %v6237 = vpop.f32.mrb[0].mxu0
      %v6238 = vadd.f32 %v6173, %v6237
      %v6239 = vpop.f32.mrb[0].mxu0
      %v6240 = vadd.f32 %v6173, %v6239
      %v6241 = vpop.f32.mrb[0].mxu0
      %v6242 = vpop.f32.mrb[0].mxu0
      %6243 = vdwg.mxu0
      %6244 = vmatprep.subr.bf16.mxu0 %v6156
      %6245 = vmatpush1.bf16.msra.mxu0 %v6155
      %6246 = vmatprep.subr.bf16.mxu0 %v6189
      %6247 = vmatpush1.bf16.msra.mxu0 %v6186
      %6248 = vmatprep.subr.bf16.mxu0 0
      %6249 = vmatpush1.bf16.msra.mxu0 0
      %6250 = vmatprep.subr.bf16.mxu0 0
      %6251 = vmatpush1.bf16.msra.mxu0 0
      %6252 = vmatprep.subr.bf16.mxu0 0
      %6253 = vmatpush1.bf16.msra.mxu0 0
      %6254 = vmatprep.subr.bf16.mxu0 0
      %6255 = vmatpush1.bf16.msra.mxu0 0
      %6256 = vmatprep.subr.bf16.mxu0 0
      %6257 = vmatpush1.bf16.msra.mxu0 0
      %6258 = vmatprep.subr.bf16.mxu0 0
      %6259 = vmatpush1.bf16.msra.mxu0 0
      %6260 = vmatprep.subr.bf16.mxu0 0
      %6261 = vmatpush1.bf16.msra.mxu0 0
      %6262 = vmatprep.subr.bf16.mxu0 0
      %6263 = vmatpush1.bf16.msra.mxu0 0
      %6264 = vmatprep.subr.bf16.mxu0 0
      %6265 = vmatpush1.bf16.msra.mxu0 0
      %6266 = vmatprep.subr.bf16.mxu0 0
      %6267 = vmatpush1.bf16.msra.mxu0 0
      %6268 = vmatprep.subr.bf16.mxu0 0
      %6269 = vmatpush1.bf16.msra.mxu0 0
      %6270 = vmatprep.subr.bf16.mxu0 0
      %6271 = vmatpush1.bf16.msra.mxu0 0
      %6272 = vmatprep.subr.bf16.mxu0 0
      %6273 = vmatpush1.bf16.msra.mxu0 0
      %6274 = vmatprep.subr.bf16.mxu0 0
      %6275 = vmatpush1.bf16.msra.mxu0 0
      %6276 = vmatprep.mubr.bf16.mxu0 0
      %6277 = vmatmul.mubr.bf16.gmra.mrb[0].mxu0 %v6177
      %v6278 = vpop.f32.mrb[0].mxu0
      %v6279 = vadd.f32 %v6173, %v6278
      %v6280 = vpop.f32.mrb[0].mxu0
      %v6281 = vadd.f32 %v6173, %v6280
      %v6282 = vpop.f32.mrb[0].mxu0
      %v6283 = vpop.f32.mrb[0].mxu0
      %6284 = vdwg.mxu0
      %6285 = vmatprep.subr.bf16.mxu0 %v6158
      %6286 = vmatpush1.bf16.msra.mxu0 %v6157
      %6287 = vmatprep.subr.bf16.mxu0 %v6195
      %6288 = vmatpush1.bf16.msra.mxu0 %v6192
      %6289 = vmatprep.subr.bf16.mxu0 0
      %6290 = vmatpush1.bf16.msra.mxu0 0
      %6291 = vmatprep.subr.bf16.mxu0 0
      %6292 = vmatpush1.bf16.msra.mxu0 0
      %6293 = vmatprep.subr.bf16.mxu0 0
      %6294 = vmatpush1.bf16.msra.mxu0 0
      %6295 = vmatprep.subr.bf16.mxu0 0
      %6296 = vmatpush1.bf16.msra.mxu0 0
      %6297 = vmatprep.subr.bf16.mxu0 0
      %6298 = vmatpush1.bf16.msra.mxu0 0
      %6299 = vmatprep.subr.bf16.mxu0 0
      %6300 = vmatpush1.bf16.msra.mxu0 0
      %6301 = vmatprep.subr.bf16.mxu0 0
      %6302 = vmatpush1.bf16.msra.mxu0 0
      %6303 = vmatprep.subr.bf16.mxu0 0
      %6304 = vmatpush1.bf16.msra.mxu0 0
      %6305 = vmatprep.subr.bf16.mxu0 0
      %6306 = vmatpush1.bf16.msra.mxu0 0
      %6307 = vmatprep.subr.bf16.mxu0 0
      %6308 = vmatpush1.bf16.msra.mxu0 0
      %6309 = vmatprep.subr.bf16.mxu0 0
      %6310 = vmatpush1.bf16.msra.mxu0 0
      %6311 = vmatprep.subr.bf16.mxu0 0
      %6312 = vmatpush1.bf16.msra.mxu0 0
      %6313 = vmatprep.subr.bf16.mxu0 0
      %6314 = vmatpush1.bf16.msra.mxu0 0
      %6315 = vmatprep.subr.bf16.mxu0 0
      %6316 = vmatpush1.bf16.msra.mxu0 0
      %6317 = vmatprep.mubr.bf16.mxu0 0
      %6318 = vmatmul.mubr.bf16.gmra.mrb[0].mxu0 %v6177
      %v6319 = vpop.f32.mrb[0].mxu0
      %v6320 = vadd.f32 %v6173, %v6319
      %v6321 = vpop.f32.mrb[0].mxu0
      %v6322 = vadd.f32 %v6173, %v6321
      %v6323 = vpop.f32.mrb[0].mxu0
      %v6324 = vpop.f32.mrb[0].mxu0
      %6325 = vdwg.mxu0
      %6326 = vmatprep.subr.bf16.mxu0 %v6160
      %6327 = vmatpush1.bf16.msra.mxu0 %v6159
      %6328 = vmatprep.subr.bf16.mxu0 %v6201
      %6329 = vmatpush1.bf16.msra.mxu0 %v6198
      %6330 = vmatprep.subr.bf16.mxu0 0
      %6331 = vmatpush1.bf16.msra.mxu0 0
      %6332 = vmatprep.subr.bf16.mxu0 0
      %6333 = vmatpush1.bf16.msra.mxu0 0
      %6334 = vmatprep.subr.bf16.mxu0 0
      %6335 = vmatpush1.bf16.msra.mxu0 0
      %6336 = vmatprep.subr.bf16.mxu0 0
      %6337 = vmatpush1.bf16.msra.mxu0 0
      %6338 = vmatprep.subr.bf16.mxu0 0
      %6339 = vmatpush1.bf16.msra.mxu0 0
      %6340 = vmatprep.subr.bf16.mxu0 0
      %6341 = vmatpush1.bf16.msra.mxu0 0
      %6342 = vmatprep.subr.bf16.mxu0 0
      %6343 = vmatpush1.bf16.msra.mxu0 0
      %6344 = vmatprep.subr.bf16.mxu0 0
      %6345 = vmatpush1.bf16.msra.mxu0 0
      %6346 = vmatprep.subr.bf16.mxu0 0
      %6347 = vmatpush1.bf16.msra.mxu0 0
      %6348 = vmatprep.subr.bf16.mxu0 0
      %6349 = vmatpush1.bf16.msra.mxu0 0
      %6350 = vmatprep.subr.bf16.mxu0 0
      %6351 = vmatpush1.bf16.msra.mxu0 0
      %6352 = vmatprep.subr.bf16.mxu0 0
      %6353 = vmatpush1.bf16.msra.mxu0 0
      %6354 = vmatprep.subr.bf16.mxu0 0
      %6355 = vmatpush1.bf16.msra.mxu0 0
      %6356 = vmatprep.subr.bf16.mxu0 0
      %6357 = vmatpush1.bf16.msra.mxu0 0
      %6358 = vmatprep.mubr.bf16.mxu0 0
      %6359 = vmatmul.mubr.bf16.gmra.mrb[0].mxu0 %v6177
      %v6360 = vpop.f32.mrb[0].mxu0
      %v6361 = vadd.f32 %v6173, %v6360
      %v6362 = vpop.f32.mrb[0].mxu0
      %v6363 = vadd.f32 %v6173, %v6362
      %v6364 = vpop.f32.mrb[0].mxu0
      %v6365 = vpop.f32.mrb[0].mxu0
      %6366 = vdwg.mxu0
      %v6367 = vmul.f32 %v6238, 0.01
      %v6368 = vmul.f32 %v6240, 0.01
      %v6369 = vmul.f32 %v6279, 0.01
      %v6370 = vmul.f32 %v6281, 0.01
      %v6371 = vmul.f32 %v6320, 0.01
      %v6372 = vmul.f32 %v6322, 0.01
      %v6373 = vmul.f32 %v6361, 0.01
      %v6374 = vmul.f32 %v6363, 0.01
      %v6375 = vmax.f32 %v6238, %v6367
      %v6376 = vmax.f32 %v6240, %v6368
      %v6377 = vmax.f32 %v6279, %v6369
      %v6378 = vmax.f32 %v6281, %v6370
      %v6379 = vmax.f32 %v6320, %v6371
      %v6380 = vmax.f32 %v6322, %v6372
      %v6381 = vmax.f32 %v6361, %v6373
      %v6382 = vmax.f32 %v6363, %v6374
      %6383 = vst [vmem:[%s982] sm:$0xff] %v6375
      %6384 = vst [vmem:[%s982 + $0x8] sm:$0xff] %v6376
      %6385 = vst [vmem:[%s982 + $0x10] sm:$0xff] %v6377
      %6386 = vst [vmem:[%s982 + $0x18] sm:$0xff] %v6378
      %6387 = vst [vmem:[%s982 + $0x20] sm:$0xff] %v6379
      %6388 = vst [vmem:[%s982 + $0x28] sm:$0xff] %v6380
      %6389 = vst [vmem:[%s982 + $0x30] sm:$0xff] %v6381
      %6390 = vst [vmem:[%s982 + $0x38] sm:$0xff] %v6382
      %p6391 = scmp.lt.s32.totalorder %s70, 1
      %s6392 = scalar_select %p6391, %s70, 1
      %s6393 = smul.addr %s6392, 8
      %s6394 = smul.addr %s6393, 8
      %s6395 = scalar_lea.vmem %s59, %s6394
      // Predicated region
      $region137: #{forward.1} parent=135 // pred_check
        %p6396 = pneg %p722
      $region138: #{forward.1} parent=135 // pred_check_branch
        %6398 = sbr.rel (%p6396) target = $region140
      $region139: #{forward.1} parent=135 // pred_region
        _
      $region140: #{forward.1} parent=135 // pred_fallthru
        _
    $region136: #{forward.1} parent=5 // pred_fallthru
      _
    %p6399 = scmp.le.s32.totalorder 2, %s65
    // Predicated region
    $region141: #{forward.1} parent=5 // pred_check
      %p6400 = pneg %p6399
    $region142: #{forward.1} parent=5 // pred_check_branch
      %6402 = sbr.rel (%p6400) target = $region144
    $region143: #{forward.1} parent=5 // pred_region
      %s6403 = ssub.s32 %s65, 2
      // Predicated region
      $region145: #{forward.1} parent=143 // pred_check
        %p6404 = pneg %p728
      $region146: #{forward.1} parent=143 // pred_check_branch
        %6406 = sbr.rel (%p6404) target = $region148
      $region147: #{forward.1} parent=143 // pred_region
        %p6407 = scmp.lt.s32.totalorder %s71, 1
        %s6408 = scalar_select %p6407, %s71, 1
        %s6409 = smul.addr %s6408, 8
        %s6410 = smul.addr %s6409, 8
        %s6411 = scalar_lea.vmem %s59, %s6410
      $region148: #{forward.1} parent=143 // pred_fallthru
        _
    $region144: #{forward.1} parent=5 // pred_fallthru
      _
  $region6: #{forward.1} parent=0 // loop_footer
    %s69 = sadd.s32 1, %s65
  $region7: #{forward.1} parent=0 // loop_footer_branch
    %64 = sbr.rel target = $region3
  $region8: #{forward.1} parent=0 // loop_exit
    _

</llo_original>
